<compile_context>
chip_gen: v7x
topology: tpu7x:2x2x1
jax: 0.10.0
libtpu: 0.0.40
codegen_flags: <defaults>
</compile_context>

<pallas_src>
import functools

import jax
import jax.numpy as jnp
from jax.experimental import pallas as pl
from jax.experimental.pallas import tpu as pltpu

EPS = 1e-5


def _vmem_limit_bytes():
    # Per-generation scoped-VMEM limit: ~96 MiB on v5e/v6e (128 MiB physical),
    # ~48 MiB on v7x (64 MiB physical); conservative fallback if unknown.
    try:
        cap = pltpu.get_tpu_info().vmem_capacity_bytes
        return int(min(96 * 1024 * 1024, cap * 3 // 4))
    except Exception:
        return 32 * 1024 * 1024


def _shift_lanes_zero(x, s):
    """out[:, p] = x[:, p + s] for p + s in [0, HW), else 0.  Static s."""
    if s == 0:
        return x
    c, n = x.shape
    z = jnp.zeros((c, abs(s)), x.dtype)
    if s > 0:
        return jnp.concatenate([x[:, s:], z], axis=1)
    return jnp.concatenate([z, x[:, :n + s]], axis=1)


# ----------------------------- Pallas kernels ------------------------------ #

def _conv3x3_stats_kernel(x_ref, w_ref, scale_ref, shift_ref,
                          y_ref, stats_ref,
                          *, H, W, Cin, Cout, fuse_input_bn_relu):
    """3x3 conv (stride 1, pad 1) on one batch element in C-major layout.

    x_ref block: (1, Cin, H*W) f32 (pixels on lanes -> lane-dense).
    w_ref:       (9, Cout, Cin) bf16, one (Cout, Cin) matrix per tap.
    Output y:    (1, Cout, H*W) f32, plus per-tile partial BN stats (sum,
    sum-of-squares) so BatchNorm never re-reads the activation from HBM.

    The previous layer's BN (scale/shift) + ReLU is optionally folded into the
    loaded input (f32 VPU math; MXU operands are cast to bf16 per tap).  The
    conv bias is intentionally omitted: with training-mode BatchNorm it is
    cancelled exactly by the batch-mean subtraction (NOT valid for eval-mode /
    running-stats BN).
    """
    HW = H * W
    x = x_ref[0]                                           # (Cin, HW) f32
    if fuse_input_bn_relu:
        x = jnp.maximum(x * scale_ref[...] + shift_ref[...], 0.0)

    # Column masks for the +/-1 lane shifts (taps that cross a row boundary
    # stay inside [0, HW) and must be zeroed explicitly).  The +/-W (row)
    # shifts need no mask: their out-of-image taps fall outside [0, HW) and
    # are zero-filled by _shift_lanes_zero.
    lane = jax.lax.broadcasted_iota(jnp.int32, (1, HW), 1)
    w_col = lane % W
    not_first_col = w_col >= 1            # valid outputs for dw = -1
    not_last_col = w_col < (W - 1)        # valid outputs for dw = +1

    acc = jnp.zeros((Cout, HW), jnp.float32)
    tap = 0
    for dh in (-1, 0, 1):
        for dw in (-1, 0, 1):
            xs = _shift_lanes_zero(x, dh * W + dw)
            if dw == -1:
                xs = jnp.where(not_first_col, xs, 0.0)
            elif dw == 1:
                xs = jnp.where(not_last_col, xs, 0.0)
            # bf16 MXU operands, f32 accumulation.
            acc += jax.lax.dot_general(
                w_ref[tap], xs.astype(jnp.bfloat16),
                dimension_numbers=(((1,), (0,)), ((), ())),
                preferred_element_type=jnp.float32)
            tap += 1

    y_ref[0] = acc

    # Per-tile partial BN statistics (lane reduce on the XLU); reduced across
    # the batch in tiny JAX glue -> the grid axis stays fully "parallel".
    s1 = jnp.sum(acc, axis=1, keepdims=True)               # (Cout, 1)
    s2 = jnp.sum(acc * acc, axis=1, keepdims=True)         # (Cout, 1)
    stats_ref[0] = jnp.concatenate([s1, s2], axis=1)       # (Cout, 2)


def _bn_relu_pool_kernel(y_ref, scale_ref, shift_ref, skip_ref, down_ref,
                         *, H, W, C):
    """Fused BatchNorm (precomputed scale/shift) + ReLU + 2x2/stride-2 max-pool.

    Operates on the (C, H*W) lane-dense layout.  The 2x2 window max is built
    from lane shifts; the stride-2 compaction transposes so the pixel axis
    sits on sublanes (lane dim C untouched), does a leading-dim reshape +
    static slice, and transposes back to the C-major output layout.
    """
    H2, W2 = H // 2, W // 2
    a = jnp.maximum(y_ref[0] * scale_ref[...] + shift_ref[...], 0.0)  # (C, HW)
    skip_ref[0] = a

    # Window max: kept positions p = (2*h2, 2*w2) never touch the zero fill.
    m = jnp.maximum(a, _shift_lanes_zero(a, 1))      # max over (w, w+1)
    m = jnp.maximum(m, _shift_lanes_zero(m, W))      # ... and (h, h+1)

    mt = m.T                                         # (HW, C)
    mt = mt.reshape(H2, 2, W2, 2, C)[:, 0, :, 0, :]  # even (h, w) -> (H2, W2, C)
    down_ref[0] = mt.reshape(H2 * W2, C).T           # (C, H2*W2)


# ------------------------------ wrappers ----------------------------------- #

def _conv3x3_stats(x_ncp, w_taps_bf16, in_scale, in_shift, *, H, W,
                   fuse_input_bn_relu):
    N, Cin, HW = x_ncp.shape
    Cout = w_taps_bf16.shape[1]
    kern = functools.partial(_conv3x3_stats_kernel, H=H, W=W, Cin=Cin,
                             Cout=Cout, fuse_input_bn_relu=fuse_input_bn_relu)
    # TODO(synk): for production images add an H-row-tile grid axis (with a
    # 1-row halo) so the block fits v7x's 64 MiB VMEM and pipelines deeply.
    y, stats = pl.pallas_call(
        kern,
        out_shape=(jax.ShapeDtypeStruct((N, Cout, HW), jnp.float32),
                   jax.ShapeDtypeStruct((N, Cout, 2), jnp.float32)),
        grid=(N,),
        in_specs=[
            pl.BlockSpec((1, Cin, HW), lambda n: (n, 0, 0)),
            pl.BlockSpec((9, Cout, Cin), lambda n: (0, 0, 0)),
            pl.BlockSpec((Cin, 1), lambda n: (0, 0)),
            pl.BlockSpec((Cin, 1), lambda n: (0, 0)),
        ],
        out_specs=(
            pl.BlockSpec((1, Cout, HW), lambda n: (n, 0, 0)),
            pl.BlockSpec((1, Cout, 2), lambda n: (n, 0, 0)),
        ),
        compiler_params=pltpu.CompilerParams(
            dimension_semantics=("parallel",),
            vmem_limit_bytes=_vmem_limit_bytes()),
    )(x_ncp, w_taps_bf16, in_scale, in_shift)
    return y, stats


def _bn_relu_pool(y_ncp, scale, shift, *, H, W):
    N, C, HW = y_ncp.shape
    H2, W2 = H // 2, W // 2
    kern = functools.partial(_bn_relu_pool_kernel, H=H, W=W, C=C)
    skip, down = pl.pallas_call(
        kern,
        out_shape=(jax.ShapeDtypeStruct((N, C, HW), jnp.float32),
                   jax.ShapeDtypeStruct((N, C, H2 * W2), jnp.float32)),
        grid=(N,),
        in_specs=[
            pl.BlockSpec((1, C, HW), lambda n: (n, 0, 0)),
            pl.BlockSpec((C, 1), lambda n: (0, 0)),
            pl.BlockSpec((C, 1), lambda n: (0, 0)),
        ],
        out_specs=(
            pl.BlockSpec((1, C, HW), lambda n: (n, 0, 0)),
            pl.BlockSpec((1, C, H2 * W2), lambda n: (n, 0, 0)),
        ),
        compiler_params=pltpu.CompilerParams(
            dimension_semantics=("parallel",),
            vmem_limit_bytes=_vmem_limit_bytes()),
    )(y_ncp, scale, shift)
    return skip, down


def _stats_to_affine(stats, gamma, beta, count):
    # Tiny (N, C, 2) -> (C,) reduction between kernels; finalizes training-mode
    # BatchNorm (biased variance) into a per-channel scale/shift.
    sums = jnp.sum(stats[:, :, 0], axis=0)
    sumsq = jnp.sum(stats[:, :, 1], axis=0)
    mean = sums / count
    # TODO(synk): Welford/Chan combine of the per-tile partials for huge N*H*W.
    var = jnp.maximum(sumsq / count - mean * mean, 0.0)
    scale = gamma * jax.lax.rsqrt(var + EPS)
    shift = beta - mean * scale
    return scale, shift


def downblock_forward(x_nchw, params):
    """x: (N, Cin, H, W) f32 -> (down (N,Cout,H/2,W/2), skip (N,Cout,H,W))."""
    N, Cin, H, W = x_nchw.shape
    # TODO(synk): PyTorch MaxPool2d(2) floors odd H/W; only even sizes here.
    assert H % 2 == 0 and W % 2 == 0
    Cout = params["w1"].shape[-1]
    H2, W2 = H // 2, W // 2
    count = N * H * W

    # NCHW kept end-to-end (C-major, pixels on lanes): these reshapes are free
    # views, so there are no HBM transpose passes at the module boundary.
    x = x_nchw.reshape(N, Cin, H * W)

    # (3,3,Cin,Cout) HWIO -> per-tap (Cout, Cin) matrices, bf16 for the MXU.
    w1 = jnp.transpose(params["w1"], (0, 1, 3, 2)).reshape(
        9, Cout, Cin).astype(jnp.bfloat16)
    w2 = jnp.transpose(params["w2"], (0, 1, 3, 2)).reshape(
        9, Cout, Cout).astype(jnp.bfloat16)

    # Conv biases b1/b2 are deliberately NOT applied in the Pallas path:
    # training-mode BatchNorm subtracts the batch mean, which cancels any
    # per-channel constant exactly (the f32 reference below keeps them).
    ones_in = jnp.ones((Cin, 1), jnp.float32)
    zeros_in = jnp.zeros((Cin, 1), jnp.float32)

    y1, st1 = _conv3x3_stats(x, w1, ones_in, zeros_in, H=H, W=W,
                             fuse_input_bn_relu=False)
    s1, t1 = _stats_to_affine(st1, params["gamma1"], params["beta1"], count)

    y2, st2 = _conv3x3_stats(y1, w2, s1.reshape(Cout, 1), t1.reshape(Cout, 1),
                             H=H, W=W, fuse_input_bn_relu=True)
    s2, t2 = _stats_to_affine(st2, params["gamma2"], params["beta2"], count)

    skip, down = _bn_relu_pool(y2, s2.reshape(Cout, 1), t2.reshape(Cout, 1),
                               H=H, W=W)
    return down.reshape(N, Cout, H2, W2), skip.reshape(N, Cout, H, W)


# --------------------------- pure-JAX reference ----------------------------- #

def _ref_conv(x_nchw, w_oihw, b):
    y = jax.lax.conv_general_dilated(
        x_nchw, w_oihw, window_strides=(1, 1), padding=((1, 1), (1, 1)),
        dimension_numbers=("NCHW", "OIHW", "NCHW"),
        precision=jax.lax.Precision.HIGHEST)
    return y + b[None, :, None, None]


def _ref_bn_relu(y, gamma, beta):
    mean = jnp.mean(y, axis=(0, 2, 3), keepdims=True)
    var = jnp.var(y, axis=(0, 2, 3), keepdims=True)
    yn = (y - mean) * jax.lax.rsqrt(var + EPS)
    return jnp.maximum(yn * gamma[None, :, None, None]
                       + beta[None, :, None, None], 0.0)


def downblock_reference(x_nchw, params):
    w1 = jnp.transpose(params["w1"], (3, 2, 0, 1))        # (3,3,I,O)->(O,I,3,3)
    w2 = jnp.transpose(params["w2"], (3, 2, 0, 1))
    a1 = _ref_bn_relu(_ref_conv(x_nchw, w1, params["b1"]),
                      params["gamma1"], params["beta1"])
    skip = _ref_bn_relu(_ref_conv(a1, w2, params["b2"]),
                        params["gamma2"], params["beta2"])
    N, C, H, W = skip.shape
    down = skip.reshape(N, C, H // 2, 2, W // 2, 2).max(axis=(3, 5))
    return down, skip


# --------------------------------- main ------------------------------------ #

if __name__ == "__main__":
    N, Cin, Cout, H, W = 2, 4, 8, 16, 16

    key = jax.random.PRNGKey(0)
    k_x, k_w1, k_b1, k_w2, k_b2 = jax.random.split(key, 5)

    x = jax.random.normal(k_x, (N, Cin, H, W), dtype=jnp.float32)

    # PyTorch conv weight layout (O,I,3,3) -> kernel layout (3,3,I,O);
    # BN: gamma=1, beta=0 (PyTorch defaults for a fresh module).
    w1_oihw = 0.1 * jax.random.normal(k_w1, (Cout, Cin, 3, 3), dtype=jnp.float32)
    w2_oihw = 0.1 * jax.random.normal(k_w2, (Cout, Cout, 3, 3), dtype=jnp.float32)
    params = {
        "w1": jnp.transpose(w1_oihw, (2, 3, 1, 0)),
        "b1": 0.05 * jax.random.normal(k_b1, (Cout,), dtype=jnp.float32),
        "gamma1": jnp.ones((Cout,), jnp.float32),
        "beta1": jnp.zeros((Cout,), jnp.float32),
        "w2": jnp.transpose(w2_oihw, (2, 3, 1, 0)),
        "b2": 0.05 * jax.random.normal(k_b2, (Cout,), dtype=jnp.float32),
        "gamma2": jnp.ones((Cout,), jnp.float32),
        "beta2": jnp.zeros((Cout,), jnp.float32),
    }

    down, skip = jax.jit(downblock_forward)(x, params)
    down = jax.block_until_ready(down)
    skip = jax.block_until_ready(skip)

    assert down.shape == (N, Cout, H // 2, W // 2), down.shape
    assert skip.shape == (N, Cout, H, W), skip.shape

    # Tolerance widened vs. the all-f32 version because the MXU operands are
    # now bf16 (f32 accumulation); BN renormalizes so the error stays small.
    down_ref, skip_ref = downblock_reference(x, params)
    assert jnp.allclose(skip, skip_ref, atol=3e-2, rtol=3e-2), "skip mismatch"
    assert jnp.allclose(down, down_ref, atol=3e-2, rtol=3e-2), "down mismatch"

    print("KERNEL_OK")
</pallas_src>

<mosaic_0001>
module attributes {stable_mosaic.version = 11 : i64} {
  func.func @_conv3x3_stats_kernel(%arg0: i32, %arg1: memref<1x4x256xf32, #tpu.memory_space<vmem>>, %arg2: memref<9x8x4xbf16, #tpu.memory_space<vmem>>, %arg3: memref<4x1xf32, #tpu.memory_space<vmem>>, %arg4: memref<4x1xf32, #tpu.memory_space<vmem>>, %arg5: memref<1x8x256xf32, #tpu.memory_space<vmem>>, %arg6: memref<1x8x2xf32, #tpu.memory_space<vmem>>) attributes {dimension_semantics = [#tpu.dimension_semantics<parallel>], iteration_bounds = array<i64: 2>, scalar_prefetch = 0 : i64, scratch_operands = 0 : i64, tpu.core_type = #tpu.core_type<tc>, window_params = [{transform_indices = @transform_0, window_bounds = array<i64: 1, 4, 256>}, {pipeline_mode = #tpu.pipeline_mode<synchronous>, transform_indices = @transform_1, window_bounds = array<i64: 9, 8, 4>}, {pipeline_mode = #tpu.pipeline_mode<synchronous>, transform_indices = @transform_2, window_bounds = array<i64: 4, 1>}, {pipeline_mode = #tpu.pipeline_mode<synchronous>, transform_indices = @transform_3, window_bounds = array<i64: 4, 1>}, {transform_indices = @transform_4, window_bounds = array<i64: 1, 8, 256>}, {transform_indices = @transform_5, window_bounds = array<i64: 1, 8, 2>}]} {
    %c0 = arith.constant 0 : index
    %c0_0 = arith.constant 0 : index
    %c0_1 = arith.constant 0 : index
    %0 = vector.load %arg1[%c0, %c0_0, %c0_1] : memref<1x4x256xf32, #tpu.memory_space<vmem>>, vector<1x4x256xf32>
    %1 = vector.shape_cast %0 : vector<1x4x256xf32> to vector<4x256xf32>
    %2 = tpu.iota {dimensions = array<i32: 1>} : vector<1x256xi32>
    %c16_i32 = arith.constant 16 : i32
    %c0_i32 = arith.constant 0 : i32
    %3 = arith.cmpi eq, %c16_i32, %c0_i32 : i32
    %c1_i32 = arith.constant 1 : i32
    %4 = arith.select %3, %c1_i32, %c16_i32 : i32
    %5 = vector.broadcast %4 : i32 to vector<1x256xi32>
    %6 = arith.remsi %2, %5 : vector<1x256xi32>
    %c0_i32_2 = arith.constant 0 : i32
    %7 = vector.broadcast %c0_i32_2 : i32 to vector<1x256xi32>
    %8 = arith.cmpi ne, %6, %7 : vector<1x256xi32>
    %c0_i32_3 = arith.constant 0 : i32
    %9 = vector.broadcast %c0_i32_3 : i32 to vector<1x256xi32>
    %10 = arith.cmpi slt, %6, %9 : vector<1x256xi32>
    %c0_i32_4 = arith.constant 0 : i32
    %11 = arith.cmpi slt, %4, %c0_i32_4 : i32
    %12 = vector.broadcast %11 : i1 to vector<1x256xi1>
    %13 = vector.broadcast %12 : vector<1x256xi1> to vector<1x256xi1>
    %14 = arith.xori %10, %13 : vector<1x256xi1>
    %15 = arith.andi %14, %8 : vector<1x256xi1>
    %16 = vector.broadcast %4 : i32 to vector<1x256xi32>
    %17 = arith.addi %6, %16 : vector<1x256xi32>
    %18 = arith.select %15, %17, %6 : vector<1x256xi1>, vector<1x256xi32>
    %c1_i32_5 = arith.constant 1 : i32
    %19 = vector.broadcast %c1_i32_5 : i32 to vector<1x256xi32>
    %20 = arith.cmpi sge, %18, %19 : vector<1x256xi32>
    %c15_i32 = arith.constant 15 : i32
    %21 = vector.broadcast %c15_i32 : i32 to vector<1x256xi32>
    %22 = arith.cmpi slt, %18, %21 : vector<1x256xi32>
    %cst = arith.constant 0.000000e+00 : f32
    %23 = vector.broadcast %cst : f32 to vector<8x256xf32>
    %cst_6 = arith.constant 0.000000e+00 : f32
    %24 = vector.broadcast %cst_6 : f32 to vector<4x17xf32>
    %25 = vector.extract_strided_slice %1 {offsets = [0, 0], sizes = [4, 239], strides = [1, 1]} : vector<4x256xf32> to vector<4x239xf32>
    %26 = tpu.concatenate %24, %25 in 1 : vector<4x17xf32>, vector<4x239xf32> -> vector<4x256xf32>
    %cst_7 = arith.constant 0.000000e+00 : f32
    %27 = vector.shape_cast %20 : vector<1x256xi1> to vector<1x256xi1>
    %28 = vector.broadcast %27 : vector<1x256xi1> to vector<4x256xi1>
    %29 = vector.broadcast %cst_7 : f32 to vector<4x256xf32>
    %30 = arith.select %28, %26, %29 : vector<4x256xi1>, vector<4x256xf32>
    %c0_8 = arith.constant 0 : index
    %c0_9 = arith.constant 0 : index
    %c0_10 = arith.constant 0 : index
    %31 = vector.load %arg2[%c0_8, %c0_9, %c0_10] : memref<9x8x4xbf16, #tpu.memory_space<vmem>>, vector<1x8x4xbf16>
    %32 = vector.shape_cast %31 : vector<1x8x4xbf16> to vector<8x4xbf16>
    %33 = arith.truncf %30 : vector<4x256xf32> to vector<4x256xbf16>
    %cst_11 = arith.constant dense<0.000000e+00> : vector<8x256xf32>
    %34 = tpu.matmul %32, %33, %cst_11 {dimension_numbers = #tpu.dot_dimension_numbers<[1], [0], [0], [1], [0, 0, 1, 1], [], []>} : vector<8x4xbf16>, vector<4x256xbf16>, vector<8x256xf32> -> vector<8x256xf32>
    %35 = arith.addf %23, %34 : vector<8x256xf32>
    %cst_12 = arith.constant 0.000000e+00 : f32
    %36 = vector.broadcast %cst_12 : f32 to vector<4x16xf32>
    %37 = vector.extract_strided_slice %1 {offsets = [0, 0], sizes = [4, 240], strides = [1, 1]} : vector<4x256xf32> to vector<4x240xf32>
    %38 = tpu.concatenate %36, %37 in 1 : vector<4x16xf32>, vector<4x240xf32> -> vector<4x256xf32>
    %c1 = arith.constant 1 : index
    %c0_13 = arith.constant 0 : index
    %c0_14 = arith.constant 0 : index
    %39 = vector.load %arg2[%c1, %c0_13, %c0_14] : memref<9x8x4xbf16, #tpu.memory_space<vmem>>, vector<1x8x4xbf16>
    %40 = vector.shape_cast %39 : vector<1x8x4xbf16> to vector<8x4xbf16>
    %41 = arith.truncf %38 : vector<4x256xf32> to vector<4x256xbf16>
    %cst_15 = arith.constant dense<0.000000e+00> : vector<8x256xf32>
    %42 = tpu.matmul %40, %41, %cst_15 {dimension_numbers = #tpu.dot_dimension_numbers<[1], [0], [0], [1], [0, 0, 1, 1], [], []>} : vector<8x4xbf16>, vector<4x256xbf16>, vector<8x256xf32> -> vector<8x256xf32>
    %43 = arith.addf %35, %42 : vector<8x256xf32>
    %cst_16 = arith.constant 0.000000e+00 : f32
    %44 = vector.broadcast %cst_16 : f32 to vector<4x15xf32>
    %45 = vector.extract_strided_slice %1 {offsets = [0, 0], sizes = [4, 241], strides = [1, 1]} : vector<4x256xf32> to vector<4x241xf32>
    %46 = tpu.concatenate %44, %45 in 1 : vector<4x15xf32>, vector<4x241xf32> -> vector<4x256xf32>
    %cst_17 = arith.constant 0.000000e+00 : f32
    %47 = vector.shape_cast %22 : vector<1x256xi1> to vector<1x256xi1>
    %48 = vector.broadcast %47 : vector<1x256xi1> to vector<4x256xi1>
    %49 = vector.broadcast %cst_17 : f32 to vector<4x256xf32>
    %50 = arith.select %48, %46, %49 : vector<4x256xi1>, vector<4x256xf32>
    %c2 = arith.constant 2 : index
    %c0_18 = arith.constant 0 : index
    %c0_19 = arith.constant 0 : index
    %51 = vector.load %arg2[%c2, %c0_18, %c0_19] : memref<9x8x4xbf16, #tpu.memory_space<vmem>>, vector<1x8x4xbf16>
    %52 = vector.shape_cast %51 : vector<1x8x4xbf16> to vector<8x4xbf16>
    %53 = arith.truncf %50 : vector<4x256xf32> to vector<4x256xbf16>
    %cst_20 = arith.constant dense<0.000000e+00> : vector<8x256xf32>
    %54 = tpu.matmul %52, %53, %cst_20 {dimension_numbers = #tpu.dot_dimension_numbers<[1], [0], [0], [1], [0, 0, 1, 1], [], []>} : vector<8x4xbf16>, vector<4x256xbf16>, vector<8x256xf32> -> vector<8x256xf32>
    %55 = arith.addf %43, %54 : vector<8x256xf32>
    %cst_21 = arith.constant 0.000000e+00 : f32
    %56 = vector.broadcast %cst_21 : f32 to vector<4x1xf32>
    %57 = vector.extract_strided_slice %1 {offsets = [0, 0], sizes = [4, 255], strides = [1, 1]} : vector<4x256xf32> to vector<4x255xf32>
    %58 = tpu.concatenate %56, %57 in 1 : vector<4x1xf32>, vector<4x255xf32> -> vector<4x256xf32>
    %cst_22 = arith.constant 0.000000e+00 : f32
    %59 = vector.shape_cast %20 : vector<1x256xi1> to vector<1x256xi1>
    %60 = vector.broadcast %59 : vector<1x256xi1> to vector<4x256xi1>
    %61 = vector.broadcast %cst_22 : f32 to vector<4x256xf32>
    %62 = arith.select %60, %58, %61 : vector<4x256xi1>, vector<4x256xf32>
    %c3 = arith.constant 3 : index
    %c0_23 = arith.constant 0 : index
    %c0_24 = arith.constant 0 : index
    %63 = vector.load %arg2[%c3, %c0_23, %c0_24] : memref<9x8x4xbf16, #tpu.memory_space<vmem>>, vector<1x8x4xbf16>
    %64 = vector.shape_cast %63 : vector<1x8x4xbf16> to vector<8x4xbf16>
    %65 = arith.truncf %62 : vector<4x256xf32> to vector<4x256xbf16>
    %cst_25 = arith.constant dense<0.000000e+00> : vector<8x256xf32>
    %66 = tpu.matmul %64, %65, %cst_25 {dimension_numbers = #tpu.dot_dimension_numbers<[1], [0], [0], [1], [0, 0, 1, 1], [], []>} : vector<8x4xbf16>, vector<4x256xbf16>, vector<8x256xf32> -> vector<8x256xf32>
    %67 = arith.addf %55, %66 : vector<8x256xf32>
    %c4 = arith.constant 4 : index
    %c0_26 = arith.constant 0 : index
    %c0_27 = arith.constant 0 : index
    %68 = vector.load %arg2[%c4, %c0_26, %c0_27] : memref<9x8x4xbf16, #tpu.memory_space<vmem>>, vector<1x8x4xbf16>
    %69 = vector.shape_cast %68 : vector<1x8x4xbf16> to vector<8x4xbf16>
    %70 = arith.truncf %1 : vector<4x256xf32> to vector<4x256xbf16>
    %cst_28 = arith.constant dense<0.000000e+00> : vector<8x256xf32>
    %71 = tpu.matmul %69, %70, %cst_28 {dimension_numbers = #tpu.dot_dimension_numbers<[1], [0], [0], [1], [0, 0, 1, 1], [], []>} : vector<8x4xbf16>, vector<4x256xbf16>, vector<8x256xf32> -> vector<8x256xf32>
    %72 = arith.addf %67, %71 : vector<8x256xf32>
    %cst_29 = arith.constant 0.000000e+00 : f32
    %73 = vector.broadcast %cst_29 : f32 to vector<4x1xf32>
    %74 = vector.extract_strided_slice %1 {offsets = [0, 1], sizes = [4, 255], strides = [1, 1]} : vector<4x256xf32> to vector<4x255xf32>
    %75 = tpu.concatenate %74, %73 in 1 : vector<4x255xf32>, vector<4x1xf32> -> vector<4x256xf32>
    %cst_30 = arith.constant 0.000000e+00 : f32
    %76 = vector.shape_cast %22 : vector<1x256xi1> to vector<1x256xi1>
    %77 = vector.broadcast %76 : vector<1x256xi1> to vector<4x256xi1>
    %78 = vector.broadcast %cst_30 : f32 to vector<4x256xf32>
    %79 = arith.select %77, %75, %78 : vector<4x256xi1>, vector<4x256xf32>
    %c5 = arith.constant 5 : index
    %c0_31 = arith.constant 0 : index
    %c0_32 = arith.constant 0 : index
    %80 = vector.load %arg2[%c5, %c0_31, %c0_32] : memref<9x8x4xbf16, #tpu.memory_space<vmem>>, vector<1x8x4xbf16>
    %81 = vector.shape_cast %80 : vector<1x8x4xbf16> to vector<8x4xbf16>
    %82 = arith.truncf %79 : vector<4x256xf32> to vector<4x256xbf16>
    %cst_33 = arith.constant dense<0.000000e+00> : vector<8x256xf32>
    %83 = tpu.matmul %81, %82, %cst_33 {dimension_numbers = #tpu.dot_dimension_numbers<[1], [0], [0], [1], [0, 0, 1, 1], [], []>} : vector<8x4xbf16>, vector<4x256xbf16>, vector<8x256xf32> -> vector<8x256xf32>
    %84 = arith.addf %72, %83 : vector<8x256xf32>
    %cst_34 = arith.constant 0.000000e+00 : f32
    %85 = vector.broadcast %cst_34 : f32 to vector<4x15xf32>
    %86 = vector.extract_strided_slice %1 {offsets = [0, 15], sizes = [4, 241], strides = [1, 1]} : vector<4x256xf32> to vector<4x241xf32>
    %87 = tpu.concatenate %86, %85 in 1 : vector<4x241xf32>, vector<4x15xf32> -> vector<4x256xf32>
    %cst_35 = arith.constant 0.000000e+00 : f32
    %88 = vector.shape_cast %20 : vector<1x256xi1> to vector<1x256xi1>
    %89 = vector.broadcast %88 : vector<1x256xi1> to vector<4x256xi1>
    %90 = vector.broadcast %cst_35 : f32 to vector<4x256xf32>
    %91 = arith.select %89, %87, %90 : vector<4x256xi1>, vector<4x256xf32>
    %c6 = arith.constant 6 : index
    %c0_36 = arith.constant 0 : index
    %c0_37 = arith.constant 0 : index
    %92 = vector.load %arg2[%c6, %c0_36, %c0_37] : memref<9x8x4xbf16, #tpu.memory_space<vmem>>, vector<1x8x4xbf16>
    %93 = vector.shape_cast %92 : vector<1x8x4xbf16> to vector<8x4xbf16>
    %94 = arith.truncf %91 : vector<4x256xf32> to vector<4x256xbf16>
    %cst_38 = arith.constant dense<0.000000e+00> : vector<8x256xf32>
    %95 = tpu.matmul %93, %94, %cst_38 {dimension_numbers = #tpu.dot_dimension_numbers<[1], [0], [0], [1], [0, 0, 1, 1], [], []>} : vector<8x4xbf16>, vector<4x256xbf16>, vector<8x256xf32> -> vector<8x256xf32>
    %96 = arith.addf %84, %95 : vector<8x256xf32>
    %cst_39 = arith.constant 0.000000e+00 : f32
    %97 = vector.broadcast %cst_39 : f32 to vector<4x16xf32>
    %98 = vector.extract_strided_slice %1 {offsets = [0, 16], sizes = [4, 240], strides = [1, 1]} : vector<4x256xf32> to vector<4x240xf32>
    %99 = tpu.concatenate %98, %97 in 1 : vector<4x240xf32>, vector<4x16xf32> -> vector<4x256xf32>
    %c7 = arith.constant 7 : index
    %c0_40 = arith.constant 0 : index
    %c0_41 = arith.constant 0 : index
    %100 = vector.load %arg2[%c7, %c0_40, %c0_41] : memref<9x8x4xbf16, #tpu.memory_space<vmem>>, vector<1x8x4xbf16>
    %101 = vector.shape_cast %100 : vector<1x8x4xbf16> to vector<8x4xbf16>
    %102 = arith.truncf %99 : vector<4x256xf32> to vector<4x256xbf16>
    %cst_42 = arith.constant dense<0.000000e+00> : vector<8x256xf32>
    %103 = tpu.matmul %101, %102, %cst_42 {dimension_numbers = #tpu.dot_dimension_numbers<[1], [0], [0], [1], [0, 0, 1, 1], [], []>} : vector<8x4xbf16>, vector<4x256xbf16>, vector<8x256xf32> -> vector<8x256xf32>
    %104 = arith.addf %96, %103 : vector<8x256xf32>
    %cst_43 = arith.constant 0.000000e+00 : f32
    %105 = vector.broadcast %cst_43 : f32 to vector<4x17xf32>
    %106 = vector.extract_strided_slice %1 {offsets = [0, 17], sizes = [4, 239], strides = [1, 1]} : vector<4x256xf32> to vector<4x239xf32>
    %107 = tpu.concatenate %106, %105 in 1 : vector<4x239xf32>, vector<4x17xf32> -> vector<4x256xf32>
    %cst_44 = arith.constant 0.000000e+00 : f32
    %108 = vector.shape_cast %22 : vector<1x256xi1> to vector<1x256xi1>
    %109 = vector.broadcast %108 : vector<1x256xi1> to vector<4x256xi1>
    %110 = vector.broadcast %cst_44 : f32 to vector<4x256xf32>
    %111 = arith.select %109, %107, %110 : vector<4x256xi1>, vector<4x256xf32>
    %c8 = arith.constant 8 : index
    %c0_45 = arith.constant 0 : index
    %c0_46 = arith.constant 0 : index
    %112 = vector.load %arg2[%c8, %c0_45, %c0_46] : memref<9x8x4xbf16, #tpu.memory_space<vmem>>, vector<1x8x4xbf16>
    %113 = vector.shape_cast %112 : vector<1x8x4xbf16> to vector<8x4xbf16>
    %114 = arith.truncf %111 : vector<4x256xf32> to vector<4x256xbf16>
    %cst_47 = arith.constant dense<0.000000e+00> : vector<8x256xf32>
    %115 = tpu.matmul %113, %114, %cst_47 {dimension_numbers = #tpu.dot_dimension_numbers<[1], [0], [0], [1], [0, 0, 1, 1], [], []>} : vector<8x4xbf16>, vector<4x256xbf16>, vector<8x256xf32> -> vector<8x256xf32>
    %116 = arith.addf %104, %115 : vector<8x256xf32>
    %c0_48 = arith.constant 0 : index
    %c0_49 = arith.constant 0 : index
    %c0_50 = arith.constant 0 : index
    %117 = vector.load %arg5[%c0_48, %c0_49, %c0_50] : memref<1x8x256xf32, #tpu.memory_space<vmem>>, vector<1x8x256xf32>
    %118 = vector.shape_cast %117 : vector<1x8x256xf32> to vector<8x256xf32>
    %119 = vector.shape_cast %116 : vector<8x256xf32> to vector<1x8x256xf32>
    tpu.vector_store %arg5[%c0_48, %c0_49, %c0_50], %119 {strides = array<i32>} : memref<1x8x256xf32, #tpu.memory_space<vmem>>, vector<1x8x256xf32>,
    %cst_51 = arith.constant dense<0.000000e+00> : vector<8xf32>
    %120 = vector.multi_reduction <add>, %116, %cst_51 [1] : vector<8x256xf32> to vector<8xf32>
    %121 = vector.shape_cast %120 : vector<8xf32> to vector<8x1xf32>
    %122 = arith.mulf %116, %116 : vector<8x256xf32>
    %cst_52 = arith.constant dense<0.000000e+00> : vector<8xf32>
    %123 = vector.multi_reduction <add>, %122, %cst_52 [1] : vector<8x256xf32> to vector<8xf32>
    %124 = vector.shape_cast %123 : vector<8xf32> to vector<8x1xf32>
    %125 = tpu.concatenate %121, %124 in 1 : vector<8x1xf32>, vector<8x1xf32> -> vector<8x2xf32>
    %c0_53 = arith.constant 0 : index
    %c0_54 = arith.constant 0 : index
    %c0_55 = arith.constant 0 : index
    %126 = vector.load %arg6[%c0_53, %c0_54, %c0_55] : memref<1x8x2xf32, #tpu.memory_space<vmem>>, vector<1x8x2xf32>
    %127 = vector.shape_cast %126 : vector<1x8x2xf32> to vector<8x2xf32>
    %128 = vector.shape_cast %125 : vector<8x2xf32> to vector<1x8x2xf32>
    tpu.vector_store %arg6[%c0_53, %c0_54, %c0_55], %128 {strides = array<i32>} : memref<1x8x2xf32, #tpu.memory_space<vmem>>, vector<1x8x2xf32>,
    return
  }
  func.func @transform_0(%arg0: i32) -> (i32, i32, i32) {
    %c0_i32 = arith.constant 0 : i32
    %c0_i32_0 = arith.constant 0 : i32
    %c0_i32_1 = arith.constant 0 : i32
    return %arg0, %c0_i32, %c0_i32_0 : i32, i32, i32
  }
  func.func @transform_1(%arg0: i32) -> (i32, i32, i32) {
    %c0_i32 = arith.constant 0 : i32
    %c0_i32_0 = arith.constant 0 : i32
    %c0_i32_1 = arith.constant 0 : i32
    %c0_i32_2 = arith.constant 0 : i32
    return %c0_i32, %c0_i32_0, %c0_i32_1 : i32, i32, i32
  }
  func.func @transform_2(%arg0: i32) -> (i32, i32) {
    %c0_i32 = arith.constant 0 : i32
    %c0_i32_0 = arith.constant 0 : i32
    %c0_i32_1 = arith.constant 0 : i32
    return %c0_i32, %c0_i32_0 : i32, i32
  }
  func.func @transform_3(%arg0: i32) -> (i32, i32) {
    %c0_i32 = arith.constant 0 : i32
    %c0_i32_0 = arith.constant 0 : i32
    %c0_i32_1 = arith.constant 0 : i32
    return %c0_i32, %c0_i32_0 : i32, i32
  }
  func.func @transform_4(%arg0: i32) -> (i32, i32, i32) {
    %c0_i32 = arith.constant 0 : i32
    %c0_i32_0 = arith.constant 0 : i32
    %c0_i32_1 = arith.constant 0 : i32
    return %arg0, %c0_i32, %c0_i32_0 : i32, i32, i32
  }
  func.func @transform_5(%arg0: i32) -> (i32, i32, i32) {
    %c0_i32 = arith.constant 0 : i32
    %c0_i32_0 = arith.constant 0 : i32
    %c0_i32_1 = arith.constant 0 : i32
    return %arg0, %c0_i32, %c0_i32_0 : i32, i32, i32
  }
}

module attributes {stable_mosaic.version = 11 : i64} {
  func.func @_bn_relu_pool_kernel(%arg0: i32, %arg1: memref<1x8x256xf32, #tpu.memory_space<vmem>>, %arg2: memref<8x1xf32, #tpu.memory_space<vmem>>, %arg3: memref<8x1xf32, #tpu.memory_space<vmem>>, %arg4: memref<1x8x256xf32, #tpu.memory_space<vmem>>, %arg5: memref<1x8x64xf32, #tpu.memory_space<vmem>>) attributes {dimension_semantics = [#tpu.dimension_semantics<parallel>], iteration_bounds = array<i64: 2>, scalar_prefetch = 0 : i64, scratch_operands = 0 : i64, tpu.core_type = #tpu.core_type<tc>, window_params = [{transform_indices = @transform_0, window_bounds = array<i64: 1, 8, 256>}, {pipeline_mode = #tpu.pipeline_mode<synchronous>, transform_indices = @transform_1, window_bounds = array<i64: 8, 1>}, {pipeline_mode = #tpu.pipeline_mode<synchronous>, transform_indices = @transform_2, window_bounds = array<i64: 8, 1>}, {transform_indices = @transform_3, window_bounds = array<i64: 1, 8, 256>}, {transform_indices = @transform_4, window_bounds = array<i64: 1, 8, 64>}]} {
    %c0 = arith.constant 0 : index
    %c0_0 = arith.constant 0 : index
    %c0_1 = arith.constant 0 : index
    %0 = vector.load %arg1[%c0, %c0_0, %c0_1] : memref<1x8x256xf32, #tpu.memory_space<vmem>>, vector<1x8x256xf32>
    %1 = vector.shape_cast %0 : vector<1x8x256xf32> to vector<8x256xf32>
    %c0_2 = arith.constant 0 : index
    %c0_3 = arith.constant 0 : index
    %2 = vector.load %arg2[%c0_2, %c0_3] : memref<8x1xf32, #tpu.memory_space<vmem>>, vector<8x1xf32>
    %3 = vector.broadcast %2 : vector<8x1xf32> to vector<8x256xf32>
    %4 = arith.mulf %1, %3 : vector<8x256xf32>
    %c0_4 = arith.constant 0 : index
    %c0_5 = arith.constant 0 : index
    %5 = vector.load %arg3[%c0_4, %c0_5] : memref<8x1xf32, #tpu.memory_space<vmem>>, vector<8x1xf32>
    %6 = vector.broadcast %5 : vector<8x1xf32> to vector<8x256xf32>
    %7 = arith.addf %4, %6 : vector<8x256xf32>
    %cst = arith.constant 0.000000e+00 : f32
    %8 = vector.broadcast %cst : f32 to vector<8x256xf32>
    %9 = arith.maximumf %7, %8 : vector<8x256xf32>
    %c0_6 = arith.constant 0 : index
    %c0_7 = arith.constant 0 : index
    %c0_8 = arith.constant 0 : index
    %10 = vector.load %arg4[%c0_6, %c0_7, %c0_8] : memref<1x8x256xf32, #tpu.memory_space<vmem>>, vector<1x8x256xf32>
    %11 = vector.shape_cast %10 : vector<1x8x256xf32> to vector<8x256xf32>
    %12 = vector.shape_cast %9 : vector<8x256xf32> to vector<1x8x256xf32>
    tpu.vector_store %arg4[%c0_6, %c0_7, %c0_8], %12 {strides = array<i32>} : memref<1x8x256xf32, #tpu.memory_space<vmem>>, vector<1x8x256xf32>,
    %cst_9 = arith.constant 0.000000e+00 : f32
    %13 = vector.broadcast %cst_9 : f32 to vector<8x1xf32>
    %14 = vector.extract_strided_slice %9 {offsets = [0, 1], sizes = [8, 255], strides = [1, 1]} : vector<8x256xf32> to vector<8x255xf32>
    %15 = tpu.concatenate %14, %13 in 1 : vector<8x255xf32>, vector<8x1xf32> -> vector<8x256xf32>
    %16 = arith.maximumf %9, %15 : vector<8x256xf32>
    %cst_10 = arith.constant 0.000000e+00 : f32
    %17 = vector.broadcast %cst_10 : f32 to vector<8x16xf32>
    %18 = vector.extract_strided_slice %16 {offsets = [0, 16], sizes = [8, 240], strides = [1, 1]} : vector<8x256xf32> to vector<8x240xf32>
    %19 = tpu.concatenate %18, %17 in 1 : vector<8x240xf32>, vector<8x16xf32> -> vector<8x256xf32>
    %20 = arith.maximumf %16, %19 : vector<8x256xf32>
    %21 = tpu.transpose %20, [1, 0] : vector<8x256xf32> -> vector<256x8xf32>
    %22 = vector.shape_cast %21 : vector<256x8xf32> to vector<8x2x8x2x8xf32>
    %23 = vector.extract_strided_slice %22 {offsets = [0, 0, 0, 0, 0], sizes = [8, 1, 8, 1, 8], strides = [1, 1, 1, 1, 1]} : vector<8x2x8x2x8xf32> to vector<8x1x8x1x8xf32>
    %24 = vector.shape_cast %23 : vector<8x1x8x1x8xf32> to vector<8x8x8xf32>
    %25 = vector.shape_cast %24 : vector<8x8x8xf32> to vector<64x8xf32>
    %26 = tpu.transpose %25, [1, 0] : vector<64x8xf32> -> vector<8x64xf32>
    %c0_11 = arith.constant 0 : index
    %c0_12 = arith.constant 0 : index
    %c0_13 = arith.constant 0 : index
    %27 = vector.load %arg5[%c0_11, %c0_12, %c0_13] : memref<1x8x64xf32, #tpu.memory_space<vmem>>, vector<1x8x64xf32>
    %28 = vector.shape_cast %27 : vector<1x8x64xf32> to vector<8x64xf32>
    %29 = vector.shape_cast %26 : vector<8x64xf32> to vector<1x8x64xf32>
    tpu.vector_store %arg5[%c0_11, %c0_12, %c0_13], %29 {strides = array<i32>} : memref<1x8x64xf32, #tpu.memory_space<vmem>>, vector<1x8x64xf32>,
    return
  }
  func.func @transform_0(%arg0: i32) -> (i32, i32, i32) {
    %c0_i32 = arith.constant 0 : i32
    %c0_i32_0 = arith.constant 0 : i32
    %c0_i32_1 = arith.constant 0 : i32
    return %arg0, %c0_i32, %c0_i32_0 : i32, i32, i32
  }
  func.func @transform_1(%arg0: i32) -> (i32, i32) {
    %c0_i32 = arith.constant 0 : i32
    %c0_i32_0 = arith.constant 0 : i32
    %c0_i32_1 = arith.constant 0 : i32
    return %c0_i32, %c0_i32_0 : i32, i32
  }
  func.func @transform_2(%arg0: i32) -> (i32, i32) {
    %c0_i32 = arith.constant 0 : i32
    %c0_i32_0 = arith.constant 0 : i32
    %c0_i32_1 = arith.constant 0 : i32
    return %c0_i32, %c0_i32_0 : i32, i32
  }
  func.func @transform_3(%arg0: i32) -> (i32, i32, i32) {
    %c0_i32 = arith.constant 0 : i32
    %c0_i32_0 = arith.constant 0 : i32
    %c0_i32_1 = arith.constant 0 : i32
    return %arg0, %c0_i32, %c0_i32_0 : i32, i32, i32
  }
  func.func @transform_4(%arg0: i32) -> (i32, i32, i32) {
    %c0_i32 = arith.constant 0 : i32
    %c0_i32_0 = arith.constant 0 : i32
    %c0_i32_1 = arith.constant 0 : i32
    return %arg0, %c0_i32, %c0_i32_0 : i32, i32, i32
  }
}

module attributes {stable_mosaic.version = 11 : i64} {
  func.func @_conv3x3_stats_kernel(%arg0: i32, %arg1: memref<1x8x256xf32, #tpu.memory_space<vmem>>, %arg2: memref<9x8x8xbf16, #tpu.memory_space<vmem>>, %arg3: memref<8x1xf32, #tpu.memory_space<vmem>>, %arg4: memref<8x1xf32, #tpu.memory_space<vmem>>, %arg5: memref<1x8x256xf32, #tpu.memory_space<vmem>>, %arg6: memref<1x8x2xf32, #tpu.memory_space<vmem>>) attributes {dimension_semantics = [#tpu.dimension_semantics<parallel>], iteration_bounds = array<i64: 2>, scalar_prefetch = 0 : i64, scratch_operands = 0 : i64, tpu.core_type = #tpu.core_type<tc>, window_params = [{transform_indices = @transform_0, window_bounds = array<i64: 1, 8, 256>}, {pipeline_mode = #tpu.pipeline_mode<synchronous>, transform_indices = @transform_1, window_bounds = array<i64: 9, 8, 8>}, {pipeline_mode = #tpu.pipeline_mode<synchronous>, transform_indices = @transform_2, window_bounds = array<i64: 8, 1>}, {pipeline_mode = #tpu.pipeline_mode<synchronous>, transform_indices = @transform_3, window_bounds = array<i64: 8, 1>}, {transform_indices = @transform_4, window_bounds = array<i64: 1, 8, 256>}, {transform_indices = @transform_5, window_bounds = array<i64: 1, 8, 2>}]} {
    %c0 = arith.constant 0 : index
    %c0_0 = arith.constant 0 : index
    %c0_1 = arith.constant 0 : index
    %0 = vector.load %arg1[%c0, %c0_0, %c0_1] : memref<1x8x256xf32, #tpu.memory_space<vmem>>, vector<1x8x256xf32>
    %1 = vector.shape_cast %0 : vector<1x8x256xf32> to vector<8x256xf32>
    %c0_2 = arith.constant 0 : index
    %c0_3 = arith.constant 0 : index
    %2 = vector.load %arg3[%c0_2, %c0_3] : memref<8x1xf32, #tpu.memory_space<vmem>>, vector<8x1xf32>
    %3 = vector.broadcast %2 : vector<8x1xf32> to vector<8x256xf32>
    %4 = arith.mulf %1, %3 : vector<8x256xf32>
    %c0_4 = arith.constant 0 : index
    %c0_5 = arith.constant 0 : index
    %5 = vector.load %arg4[%c0_4, %c0_5] : memref<8x1xf32, #tpu.memory_space<vmem>>, vector<8x1xf32>
    %6 = vector.broadcast %5 : vector<8x1xf32> to vector<8x256xf32>
    %7 = arith.addf %4, %6 : vector<8x256xf32>
    %cst = arith.constant 0.000000e+00 : f32
    %8 = vector.broadcast %cst : f32 to vector<8x256xf32>
    %9 = arith.maximumf %7, %8 : vector<8x256xf32>
    %10 = tpu.iota {dimensions = array<i32: 1>} : vector<1x256xi32>
    %c16_i32 = arith.constant 16 : i32
    %c0_i32 = arith.constant 0 : i32
    %11 = arith.cmpi eq, %c16_i32, %c0_i32 : i32
    %c1_i32 = arith.constant 1 : i32
    %12 = arith.select %11, %c1_i32, %c16_i32 : i32
    %13 = vector.broadcast %12 : i32 to vector<1x256xi32>
    %14 = arith.remsi %10, %13 : vector<1x256xi32>
    %c0_i32_6 = arith.constant 0 : i32
    %15 = vector.broadcast %c0_i32_6 : i32 to vector<1x256xi32>
    %16 = arith.cmpi ne, %14, %15 : vector<1x256xi32>
    %c0_i32_7 = arith.constant 0 : i32
    %17 = vector.broadcast %c0_i32_7 : i32 to vector<1x256xi32>
    %18 = arith.cmpi slt, %14, %17 : vector<1x256xi32>
    %c0_i32_8 = arith.constant 0 : i32
    %19 = arith.cmpi slt, %12, %c0_i32_8 : i32
    %20 = vector.broadcast %19 : i1 to vector<1x256xi1>
    %21 = vector.broadcast %20 : vector<1x256xi1> to vector<1x256xi1>
    %22 = arith.xori %18, %21 : vector<1x256xi1>
    %23 = arith.andi %22, %16 : vector<1x256xi1>
    %24 = vector.broadcast %12 : i32 to vector<1x256xi32>
    %25 = arith.addi %14, %24 : vector<1x256xi32>
    %26 = arith.select %23, %25, %14 : vector<1x256xi1>, vector<1x256xi32>
    %c1_i32_9 = arith.constant 1 : i32
    %27 = vector.broadcast %c1_i32_9 : i32 to vector<1x256xi32>
    %28 = arith.cmpi sge, %26, %27 : vector<1x256xi32>
    %c15_i32 = arith.constant 15 : i32
    %29 = vector.broadcast %c15_i32 : i32 to vector<1x256xi32>
    %30 = arith.cmpi slt, %26, %29 : vector<1x256xi32>
    %cst_10 = arith.constant 0.000000e+00 : f32
    %31 = vector.broadcast %cst_10 : f32 to vector<8x256xf32>
    %cst_11 = arith.constant 0.000000e+00 : f32
    %32 = vector.broadcast %cst_11 : f32 to vector<8x17xf32>
    %33 = vector.extract_strided_slice %9 {offsets = [0, 0], sizes = [8, 239], strides = [1, 1]} : vector<8x256xf32> to vector<8x239xf32>
    %34 = tpu.concatenate %32, %33 in 1 : vector<8x17xf32>, vector<8x239xf32> -> vector<8x256xf32>
    %cst_12 = arith.constant 0.000000e+00 : f32
    %35 = vector.shape_cast %28 : vector<1x256xi1> to vector<1x256xi1>
    %36 = vector.broadcast %35 : vector<1x256xi1> to vector<8x256xi1>
    %37 = vector.broadcast %cst_12 : f32 to vector<8x256xf32>
    %38 = arith.select %36, %34, %37 : vector<8x256xi1>, vector<8x256xf32>
    %c0_13 = arith.constant 0 : index
    %c0_14 = arith.constant 0 : index
    %c0_15 = arith.constant 0 : index
    %39 = vector.load %arg2[%c0_13, %c0_14, %c0_15] : memref<9x8x8xbf16, #tpu.memory_space<vmem>>, vector<1x8x8xbf16>
    %40 = vector.shape_cast %39 : vector<1x8x8xbf16> to vector<8x8xbf16>
    %41 = arith.truncf %38 : vector<8x256xf32> to vector<8x256xbf16>
    %cst_16 = arith.constant dense<0.000000e+00> : vector<8x256xf32>
    %42 = tpu.matmul %40, %41, %cst_16 {dimension_numbers = #tpu.dot_dimension_numbers<[1], [0], [0], [1], [0, 0, 1, 1], [], []>} : vector<8x8xbf16>, vector<8x256xbf16>, vector<8x256xf32> -> vector<8x256xf32>
    %43 = arith.addf %31, %42 : vector<8x256xf32>
    %cst_17 = arith.constant 0.000000e+00 : f32
    %44 = vector.broadcast %cst_17 : f32 to vector<8x16xf32>
    %45 = vector.extract_strided_slice %9 {offsets = [0, 0], sizes = [8, 240], strides = [1, 1]} : vector<8x256xf32> to vector<8x240xf32>
    %46 = tpu.concatenate %44, %45 in 1 : vector<8x16xf32>, vector<8x240xf32> -> vector<8x256xf32>
    %c1 = arith.constant 1 : index
    %c0_18 = arith.constant 0 : index
    %c0_19 = arith.constant 0 : index
    %47 = vector.load %arg2[%c1, %c0_18, %c0_19] : memref<9x8x8xbf16, #tpu.memory_space<vmem>>, vector<1x8x8xbf16>
    %48 = vector.shape_cast %47 : vector<1x8x8xbf16> to vector<8x8xbf16>
    %49 = arith.truncf %46 : vector<8x256xf32> to vector<8x256xbf16>
    %cst_20 = arith.constant dense<0.000000e+00> : vector<8x256xf32>
    %50 = tpu.matmul %48, %49, %cst_20 {dimension_numbers = #tpu.dot_dimension_numbers<[1], [0], [0], [1], [0, 0, 1, 1], [], []>} : vector<8x8xbf16>, vector<8x256xbf16>, vector<8x256xf32> -> vector<8x256xf32>
    %51 = arith.addf %43, %50 : vector<8x256xf32>
    %cst_21 = arith.constant 0.000000e+00 : f32
    %52 = vector.broadcast %cst_21 : f32 to vector<8x15xf32>
    %53 = vector.extract_strided_slice %9 {offsets = [0, 0], sizes = [8, 241], strides = [1, 1]} : vector<8x256xf32> to vector<8x241xf32>
    %54 = tpu.concatenate %52, %53 in 1 : vector<8x15xf32>, vector<8x241xf32> -> vector<8x256xf32>
    %cst_22 = arith.constant 0.000000e+00 : f32
    %55 = vector.shape_cast %30 : vector<1x256xi1> to vector<1x256xi1>
    %56 = vector.broadcast %55 : vector<1x256xi1> to vector<8x256xi1>
    %57 = vector.broadcast %cst_22 : f32 to vector<8x256xf32>
    %58 = arith.select %56, %54, %57 : vector<8x256xi1>, vector<8x256xf32>
    %c2 = arith.constant 2 : index
    %c0_23 = arith.constant 0 : index
    %c0_24 = arith.constant 0 : index
    %59 = vector.load %arg2[%c2, %c0_23, %c0_24] : memref<9x8x8xbf16, #tpu.memory_space<vmem>>, vector<1x8x8xbf16>
    %60 = vector.shape_cast %59 : vector<1x8x8xbf16> to vector<8x8xbf16>
    %61 = arith.truncf %58 : vector<8x256xf32> to vector<8x256xbf16>
    %cst_25 = arith.constant dense<0.000000e+00> : vector<8x256xf32>
    %62 = tpu.matmul %60, %61, %cst_25 {dimension_numbers = #tpu.dot_dimension_numbers<[1], [0], [0], [1], [0, 0, 1, 1], [], []>} : vector<8x8xbf16>, vector<8x256xbf16>, vector<8x256xf32> -> vector<8x256xf32>
    %63 = arith.addf %51, %62 : vector<8x256xf32>
    %cst_26 = arith.constant 0.000000e+00 : f32
    %64 = vector.broadcast %cst_26 : f32 to vector<8x1xf32>
    %65 = vector.extract_strided_slice %9 {offsets = [0, 0], sizes = [8, 255], strides = [1, 1]} : vector<8x256xf32> to vector<8x255xf32>
    %66 = tpu.concatenate %64, %65 in 1 : vector<8x1xf32>, vector<8x255xf32> -> vector<8x256xf32>
    %cst_27 = arith.constant 0.000000e+00 : f32
    %67 = vector.shape_cast %28 : vector<1x256xi1> to vector<1x256xi1>
    %68 = vector.broadcast %67 : vector<1x256xi1> to vector<8x256xi1>
    %69 = vector.broadcast %cst_27 : f32 to vector<8x256xf32>
    %70 = arith.select %68, %66, %69 : vector<8x256xi1>, vector<8x256xf32>
    %c3 = arith.constant 3 : index
    %c0_28 = arith.constant 0 : index
    %c0_29 = arith.constant 0 : index
    %71 = vector.load %arg2[%c3, %c0_28, %c0_29] : memref<9x8x8xbf16, #tpu.memory_space<vmem>>, vector<1x8x8xbf16>
    %72 = vector.shape_cast %71 : vector<1x8x8xbf16> to vector<8x8xbf16>
    %73 = arith.truncf %70 : vector<8x256xf32> to vector<8x256xbf16>
    %cst_30 = arith.constant dense<0.000000e+00> : vector<8x256xf32>
    %74 = tpu.matmul %72, %73, %cst_30 {dimension_numbers = #tpu.dot_dimension_numbers<[1], [0], [0], [1], [0, 0, 1, 1], [], []>} : vector<8x8xbf16>, vector<8x256xbf16>, vector<8x256xf32> -> vector<8x256xf32>
    %75 = arith.addf %63, %74 : vector<8x256xf32>
    %c4 = arith.constant 4 : index
    %c0_31 = arith.constant 0 : index
    %c0_32 = arith.constant 0 : index
    %76 = vector.load %arg2[%c4, %c0_31, %c0_32] : memref<9x8x8xbf16, #tpu.memory_space<vmem>>, vector<1x8x8xbf16>
    %77 = vector.shape_cast %76 : vector<1x8x8xbf16> to vector<8x8xbf16>
    %78 = arith.truncf %9 : vector<8x256xf32> to vector<8x256xbf16>
    %cst_33 = arith.constant dense<0.000000e+00> : vector<8x256xf32>
    %79 = tpu.matmul %77, %78, %cst_33 {dimension_numbers = #tpu.dot_dimension_numbers<[1], [0], [0], [1], [0, 0, 1, 1], [], []>} : vector<8x8xbf16>, vector<8x256xbf16>, vector<8x256xf32> -> vector<8x256xf32>
    %80 = arith.addf %75, %79 : vector<8x256xf32>
    %cst_34 = arith.constant 0.000000e+00 : f32
    %81 = vector.broadcast %cst_34 : f32 to vector<8x1xf32>
    %82 = vector.extract_strided_slice %9 {offsets = [0, 1], sizes = [8, 255], strides = [1, 1]} : vector<8x256xf32> to vector<8x255xf32>
    %83 = tpu.concatenate %82, %81 in 1 : vector<8x255xf32>, vector<8x1xf32> -> vector<8x256xf32>
    %cst_35 = arith.constant 0.000000e+00 : f32
    %84 = vector.shape_cast %30 : vector<1x256xi1> to vector<1x256xi1>
    %85 = vector.broadcast %84 : vector<1x256xi1> to vector<8x256xi1>
    %86 = vector.broadcast %cst_35 : f32 to vector<8x256xf32>
    %87 = arith.select %85, %83, %86 : vector<8x256xi1>, vector<8x256xf32>
    %c5 = arith.constant 5 : index
    %c0_36 = arith.constant 0 : index
    %c0_37 = arith.constant 0 : index
    %88 = vector.load %arg2[%c5, %c0_36, %c0_37] : memref<9x8x8xbf16, #tpu.memory_space<vmem>>, vector<1x8x8xbf16>
    %89 = vector.shape_cast %88 : vector<1x8x8xbf16> to vector<8x8xbf16>
    %90 = arith.truncf %87 : vector<8x256xf32> to vector<8x256xbf16>
    %cst_38 = arith.constant dense<0.000000e+00> : vector<8x256xf32>
    %91 = tpu.matmul %89, %90, %cst_38 {dimension_numbers = #tpu.dot_dimension_numbers<[1], [0], [0], [1], [0, 0, 1, 1], [], []>} : vector<8x8xbf16>, vector<8x256xbf16>, vector<8x256xf32> -> vector<8x256xf32>
    %92 = arith.addf %80, %91 : vector<8x256xf32>
    %cst_39 = arith.constant 0.000000e+00 : f32
    %93 = vector.broadcast %cst_39 : f32 to vector<8x15xf32>
    %94 = vector.extract_strided_slice %9 {offsets = [0, 15], sizes = [8, 241], strides = [1, 1]} : vector<8x256xf32> to vector<8x241xf32>
    %95 = tpu.concatenate %94, %93 in 1 : vector<8x241xf32>, vector<8x15xf32> -> vector<8x256xf32>
    %cst_40 = arith.constant 0.000000e+00 : f32
    %96 = vector.shape_cast %28 : vector<1x256xi1> to vector<1x256xi1>
    %97 = vector.broadcast %96 : vector<1x256xi1> to vector<8x256xi1>
    %98 = vector.broadcast %cst_40 : f32 to vector<8x256xf32>
    %99 = arith.select %97, %95, %98 : vector<8x256xi1>, vector<8x256xf32>
    %c6 = arith.constant 6 : index
    %c0_41 = arith.constant 0 : index
    %c0_42 = arith.constant 0 : index
    %100 = vector.load %arg2[%c6, %c0_41, %c0_42] : memref<9x8x8xbf16, #tpu.memory_space<vmem>>, vector<1x8x8xbf16>
    %101 = vector.shape_cast %100 : vector<1x8x8xbf16> to vector<8x8xbf16>
    %102 = arith.truncf %99 : vector<8x256xf32> to vector<8x256xbf16>
    %cst_43 = arith.constant dense<0.000000e+00> : vector<8x256xf32>
    %103 = tpu.matmul %101, %102, %cst_43 {dimension_numbers = #tpu.dot_dimension_numbers<[1], [0], [0], [1], [0, 0, 1, 1], [], []>} : vector<8x8xbf16>, vector<8x256xbf16>, vector<8x256xf32> -> vector<8x256xf32>
    %104 = arith.addf %92, %103 : vector<8x256xf32>
    %cst_44 = arith.constant 0.000000e+00 : f32
    %105 = vector.broadcast %cst_44 : f32 to vector<8x16xf32>
    %106 = vector.extract_strided_slice %9 {offsets = [0, 16], sizes = [8, 240], strides = [1, 1]} : vector<8x256xf32> to vector<8x240xf32>
    %107 = tpu.concatenate %106, %105 in 1 : vector<8x240xf32>, vector<8x16xf32> -> vector<8x256xf32>
    %c7 = arith.constant 7 : index
    %c0_45 = arith.constant 0 : index
    %c0_46 = arith.constant 0 : index
    %108 = vector.load %arg2[%c7, %c0_45, %c0_46] : memref<9x8x8xbf16, #tpu.memory_space<vmem>>, vector<1x8x8xbf16>
    %109 = vector.shape_cast %108 : vector<1x8x8xbf16> to vector<8x8xbf16>
    %110 = arith.truncf %107 : vector<8x256xf32> to vector<8x256xbf16>
    %cst_47 = arith.constant dense<0.000000e+00> : vector<8x256xf32>
    %111 = tpu.matmul %109, %110, %cst_47 {dimension_numbers = #tpu.dot_dimension_numbers<[1], [0], [0], [1], [0, 0, 1, 1], [], []>} : vector<8x8xbf16>, vector<8x256xbf16>, vector<8x256xf32> -> vector<8x256xf32>
    %112 = arith.addf %104, %111 : vector<8x256xf32>
    %cst_48 = arith.constant 0.000000e+00 : f32
    %113 = vector.broadcast %cst_48 : f32 to vector<8x17xf32>
    %114 = vector.extract_strided_slice %9 {offsets = [0, 17], sizes = [8, 239], strides = [1, 1]} : vector<8x256xf32> to vector<8x239xf32>
    %115 = tpu.concatenate %114, %113 in 1 : vector<8x239xf32>, vector<8x17xf32> -> vector<8x256xf32>
    %cst_49 = arith.constant 0.000000e+00 : f32
    %116 = vector.shape_cast %30 : vector<1x256xi1> to vector<1x256xi1>
    %117 = vector.broadcast %116 : vector<1x256xi1> to vector<8x256xi1>
    %118 = vector.broadcast %cst_49 : f32 to vector<8x256xf32>
    %119 = arith.select %117, %115, %118 : vector<8x256xi1>, vector<8x256xf32>
    %c8 = arith.constant 8 : index
    %c0_50 = arith.constant 0 : index
    %c0_51 = arith.constant 0 : index
    %120 = vector.load %arg2[%c8, %c0_50, %c0_51] : memref<9x8x8xbf16, #tpu.memory_space<vmem>>, vector<1x8x8xbf16>
    %121 = vector.shape_cast %120 : vector<1x8x8xbf16> to vector<8x8xbf16>
    %122 = arith.truncf %119 : vector<8x256xf32> to vector<8x256xbf16>
    %cst_52 = arith.constant dense<0.000000e+00> : vector<8x256xf32>
    %123 = tpu.matmul %121, %122, %cst_52 {dimension_numbers = #tpu.dot_dimension_numbers<[1], [0], [0], [1], [0, 0, 1, 1], [], []>} : vector<8x8xbf16>, vector<8x256xbf16>, vector<8x256xf32> -> vector<8x256xf32>
    %124 = arith.addf %112, %123 : vector<8x256xf32>
    %c0_53 = arith.constant 0 : index
    %c0_54 = arith.constant 0 : index
    %c0_55 = arith.constant 0 : index
    %125 = vector.load %arg5[%c0_53, %c0_54, %c0_55] : memref<1x8x256xf32, #tpu.memory_space<vmem>>, vector<1x8x256xf32>
    %126 = vector.shape_cast %125 : vector<1x8x256xf32> to vector<8x256xf32>
    %127 = vector.shape_cast %124 : vector<8x256xf32> to vector<1x8x256xf32>
    tpu.vector_store %arg5[%c0_53, %c0_54, %c0_55], %127 {strides = array<i32>} : memref<1x8x256xf32, #tpu.memory_space<vmem>>, vector<1x8x256xf32>,
    %cst_56 = arith.constant dense<0.000000e+00> : vector<8xf32>
    %128 = vector.multi_reduction <add>, %124, %cst_56 [1] : vector<8x256xf32> to vector<8xf32>
    %129 = vector.shape_cast %128 : vector<8xf32> to vector<8x1xf32>
    %130 = arith.mulf %124, %124 : vector<8x256xf32>
    %cst_57 = arith.constant dense<0.000000e+00> : vector<8xf32>
    %131 = vector.multi_reduction <add>, %130, %cst_57 [1] : vector<8x256xf32> to vector<8xf32>
    %132 = vector.shape_cast %131 : vector<8xf32> to vector<8x1xf32>
    %133 = tpu.concatenate %129, %132 in 1 : vector<8x1xf32>, vector<8x1xf32> -> vector<8x2xf32>
    %c0_58 = arith.constant 0 : index
    %c0_59 = arith.constant 0 : index
    %c0_60 = arith.constant 0 : index
    %134 = vector.load %arg6[%c0_58, %c0_59, %c0_60] : memref<1x8x2xf32, #tpu.memory_space<vmem>>, vector<1x8x2xf32>
    %135 = vector.shape_cast %134 : vector<1x8x2xf32> to vector<8x2xf32>
    %136 = vector.shape_cast %133 : vector<8x2xf32> to vector<1x8x2xf32>
    tpu.vector_store %arg6[%c0_58, %c0_59, %c0_60], %136 {strides = array<i32>} : memref<1x8x2xf32, #tpu.memory_space<vmem>>, vector<1x8x2xf32>,
    return
  }
  func.func @transform_0(%arg0: i32) -> (i32, i32, i32) {
    %c0_i32 = arith.constant 0 : i32
    %c0_i32_0 = arith.constant 0 : i32
    %c0_i32_1 = arith.constant 0 : i32
    return %arg0, %c0_i32, %c0_i32_0 : i32, i32, i32
  }
  func.func @transform_1(%arg0: i32) -> (i32, i32, i32) {
    %c0_i32 = arith.constant 0 : i32
    %c0_i32_0 = arith.constant 0 : i32
    %c0_i32_1 = arith.constant 0 : i32
    %c0_i32_2 = arith.constant 0 : i32
    return %c0_i32, %c0_i32_0, %c0_i32_1 : i32, i32, i32
  }
  func.func @transform_2(%arg0: i32) -> (i32, i32) {
    %c0_i32 = arith.constant 0 : i32
    %c0_i32_0 = arith.constant 0 : i32
    %c0_i32_1 = arith.constant 0 : i32
    return %c0_i32, %c0_i32_0 : i32, i32
  }
  func.func @transform_3(%arg0: i32) -> (i32, i32) {
    %c0_i32 = arith.constant 0 : i32
    %c0_i32_0 = arith.constant 0 : i32
    %c0_i32_1 = arith.constant 0 : i32
    return %c0_i32, %c0_i32_0 : i32, i32
  }
  func.func @transform_4(%arg0: i32) -> (i32, i32, i32) {
    %c0_i32 = arith.constant 0 : i32
    %c0_i32_0 = arith.constant 0 : i32
    %c0_i32_1 = arith.constant 0 : i32
    return %arg0, %c0_i32, %c0_i32_0 : i32, i32, i32
  }
  func.func @transform_5(%arg0: i32) -> (i32, i32, i32) {
    %c0_i32 = arith.constant 0 : i32
    %c0_i32_0 = arith.constant 0 : i32
    %c0_i32_1 = arith.constant 0 : i32
    return %arg0, %c0_i32, %c0_i32_0 : i32, i32, i32
  }
}

</mosaic_0001>

<llo_original>
// kernel: downblock_forward.5
$region0: #{downblock_forward.5}
  #allocation0 [shape = 'u32[]', space=smem, size = 0x4, offset = 0x4, fixed_abs, tag = 'smem constant byte address 0x4 - core index']
  #allocation1 [shape = 'u32[144,128]{1,0:T(1,128)}', space=vmem, size = 0x12000, scoped, tag = 'internal scratch']
  %s0 = inlined_call_operand.vmem [shape: f32[2,8,256], index: 0, kind: input, shape index: {}]
  %s1 = inlined_call_operand.vmem [shape: f32[8,1], index: 1, kind: input, shape index: {}]
  %s2 = inlined_call_operand.vmem [shape: f32[8,1], index: 2, kind: input, shape index: {}]
  %s3 = inlined_call_operand.vmem [shape: f32[2,8,256], index: 3, kind: output, shape index: {0}]
  %s4 = inlined_call_operand.vmem [shape: f32[2,8,64], index: 4, kind: output, shape index: {1}]
  %5 = xla_tuple %s3, %s4
  %s6 = sld [smem:[#allocation0]]
  $region53: #{downblock_forward.5} parent=0
    _
  %s8 = ssub.s32 1, %s6
  %s9 = scalar_select 0, %s8, %s6
  loop: start=0, step=1, limit=4
  $region2: #{downblock_forward.5} parent=0 // loop_pre_header
    _
  $region3: #{downblock_forward.5} parent=0 // loop_header
    %s11 = sphi 0, %s15
    %p12 = scmp.ge.s32.totalorder %s11, 4
    %s21 = sphi 0, %s23
    %s24 = sphi 0, %s21
    %s25 = sphi 0, %s24
    %s41 = sphi 0, %s25
    %s45 = sphi 0, %s45
    %s47 = sphi 0, %s45
    %s48 = sphi 0, %s47
    %s62 = sphi 0, %s48
    %s66 = sphi 0, %s66
    %s68 = sphi 0, %s66
    %s69 = sphi 0, %s68
    %s83 = sphi 0, %s69
    %s89 = sphi 0, %s91
    %s92 = sphi 0, %s89
    %s93 = sphi 0, %s92
    %s109 = sphi 0, %s93
    %s115 = sphi 0, %s117
    %s118 = sphi 0, %s115
    %s119 = sphi 0, %s118
    %s135 = sphi 0, %s119
  $region4: #{downblock_forward.5} parent=0 // loop_header_branch
    %14 = sbr.rel (%p12) target = $region8
  $region5: #{downblock_forward.5} parent=0 // loop_body
    %s16 = ssub.s32 %s11, 1
    %s17 = ssub.s32 %s11, 2
    %s18 = sadd.s32 %s11, 1
    %s19 = ssub.s32 %s11, %s18
    %p20 = scmp.eq.s32.totalorder %s19, 0
    %s22 = sadd.s32 %s21, 1
    %s23 = scalar_select %p20, %s21, %s22
    %p26 = pneg %p20
    %p27 = scmp.eq.s32.totalorder %s11, 1
    %p28 = por %p26, %p27
    %p29 = scmp.ne.s32.totalorder %s21, %s24
    %p30 = scmp.eq.s32.totalorder %s11, 0
    %p31 = por %p29, %p30
    %p32 = scmp.ne.s32.totalorder %s21, %s24
    %p33 = scmp.eq.s32.totalorder %s16, 1
    %p34 = por %p32, %p33
    %p35 = scmp.ne.s32.totalorder %s24, %s25
    %p36 = scmp.eq.s32.totalorder %s16, 0
    %p37 = por %p35, %p36
    %p38 = scmp.ne.s32.totalorder %s24, %s25
    %p39 = scmp.eq.s32.totalorder %s17, 1
    %p40 = por %p38, %p39
    %p42 = scmp.ne.s32.totalorder %s25, %s41
    %p43 = scmp.eq.s32.totalorder %s17, 0
    %p44 = por %p42, %p43
    %s46 = sadd.s32 %s45, 1
    %p49 = scmp.eq.s32.totalorder %s11, 1
    %p50 = scmp.ne.s32.totalorder %s45, %s47
    %p51 = scmp.eq.s32.totalorder %s11, 0
    %p52 = por %p50, %p51
    %p53 = scmp.ne.s32.totalorder %s45, %s47
    %p54 = scmp.eq.s32.totalorder %s16, 1
    %p55 = por %p53, %p54
    %p56 = scmp.ne.s32.totalorder %s47, %s48
    %p57 = scmp.eq.s32.totalorder %s16, 0
    %p58 = por %p56, %p57
    %p59 = scmp.ne.s32.totalorder %s47, %s48
    %p60 = scmp.eq.s32.totalorder %s17, 1
    %p61 = por %p59, %p60
    %p63 = scmp.ne.s32.totalorder %s48, %s62
    %p64 = scmp.eq.s32.totalorder %s17, 0
    %p65 = por %p63, %p64
    %s67 = sadd.s32 %s66, 1
    %p70 = scmp.eq.s32.totalorder %s11, 1
    %p71 = scmp.ne.s32.totalorder %s66, %s68
    %p72 = scmp.eq.s32.totalorder %s11, 0
    %p73 = por %p71, %p72
    %p74 = scmp.ne.s32.totalorder %s66, %s68
    %p75 = scmp.eq.s32.totalorder %s16, 1
    %p76 = por %p74, %p75
    %p77 = scmp.ne.s32.totalorder %s68, %s69
    %p78 = scmp.eq.s32.totalorder %s16, 0
    %p79 = por %p77, %p78
    %p80 = scmp.ne.s32.totalorder %s68, %s69
    %p81 = scmp.eq.s32.totalorder %s17, 1
    %p82 = por %p80, %p81
    %p84 = scmp.ne.s32.totalorder %s69, %s83
    %p85 = scmp.eq.s32.totalorder %s17, 0
    %p86 = por %p84, %p85
    %s87 = ssub.s32 %s11, %s18
    %p88 = scmp.eq.s32.totalorder %s87, 0
    %s90 = sadd.s32 %s89, 1
    %s91 = scalar_select %p88, %s89, %s90
    %p94 = pneg %p88
    %p95 = scmp.eq.s32.totalorder %s11, 1
    %p96 = por %p94, %p95
    %p97 = scmp.ne.s32.totalorder %s89, %s92
    %p98 = scmp.eq.s32.totalorder %s11, 0
    %p99 = por %p97, %p98
    %p100 = scmp.ne.s32.totalorder %s89, %s92
    %p101 = scmp.eq.s32.totalorder %s16, 1
    %p102 = por %p100, %p101
    %p103 = scmp.ne.s32.totalorder %s92, %s93
    %p104 = scmp.eq.s32.totalorder %s16, 0
    %p105 = por %p103, %p104
    %p106 = scmp.ne.s32.totalorder %s92, %s93
    %p107 = scmp.eq.s32.totalorder %s17, 1
    %p108 = por %p106, %p107
    %p110 = scmp.ne.s32.totalorder %s93, %s109
    %p111 = scmp.eq.s32.totalorder %s17, 0
    %p112 = por %p110, %p111
    %s113 = ssub.s32 %s11, %s18
    %p114 = scmp.eq.s32.totalorder %s113, 0
    %s116 = sadd.s32 %s115, 1
    %s117 = scalar_select %p114, %s115, %s116
    %p120 = pneg %p114
    %p121 = scmp.eq.s32.totalorder %s11, 1
    %p122 = por %p120, %p121
    %p123 = scmp.ne.s32.totalorder %s115, %s118
    %p124 = scmp.eq.s32.totalorder %s11, 0
    %p125 = por %p123, %p124
    %p126 = scmp.ne.s32.totalorder %s115, %s118
    %p127 = scmp.eq.s32.totalorder %s16, 1
    %p128 = por %p126, %p127
    %p129 = scmp.ne.s32.totalorder %s118, %s119
    %p130 = scmp.eq.s32.totalorder %s16, 0
    %p131 = por %p129, %p130
    %p132 = scmp.ne.s32.totalorder %s118, %s119
    %p133 = scmp.eq.s32.totalorder %s17, 1
    %p134 = por %p132, %p133
    %p136 = scmp.ne.s32.totalorder %s119, %s135
    %p137 = scmp.eq.s32.totalorder %s17, 0
    %p138 = por %p136, %p137
    %p139 = scmp.le.s32.totalorder 1, %s11
    %p140 = scmp.lt.s32.totalorder %s11, 3
    %p141 = pnand %p139, %p140
    %p142 = pneg %p141
    // Predicated region
    $region9: #{downblock_forward.5} parent=5 // pred_check
      _
    $region10: #{downblock_forward.5} parent=5 // pred_check_branch
      %144 = sbr.rel (%p141) target = $region12
    $region11: #{downblock_forward.5} parent=5 // pred_region
      %s145 = ssub.s32 %s11, 1
      // Predicated region
      $region13: #{downblock_forward.5} parent=11 // pred_check
        %p146 = pneg %p58
      $region14: #{downblock_forward.5} parent=11 // pred_check_branch
        %148 = sbr.rel (%p146) target = $region16
      $region15: #{downblock_forward.5} parent=11 // pred_region
        _
      $region16: #{downblock_forward.5} parent=11 // pred_fallthru
        _
      // Predicated region
      $region17: #{downblock_forward.5} parent=11 // pred_check
        %p149 = pneg %p79
      $region18: #{downblock_forward.5} parent=11 // pred_check_branch
        %151 = sbr.rel (%p149) target = $region20
      $region19: #{downblock_forward.5} parent=11 // pred_region
        _
      $region20: #{downblock_forward.5} parent=11 // pred_fallthru
        _
    $region12: #{downblock_forward.5} parent=5 // pred_fallthru
      _
    %p152 = scmp.lt.s32.totalorder %s11, 2
    // Predicated region
    $region21: #{downblock_forward.5} parent=5 // pred_check
      %p153 = pneg %p152
    $region22: #{downblock_forward.5} parent=5 // pred_check_branch
      %155 = sbr.rel (%p153) target = $region24
    $region23: #{downblock_forward.5} parent=5 // pred_region
      // Predicated region
      $region25: #{downblock_forward.5} parent=23 // pred_check
        %p156 = pneg %p31
      $region26: #{downblock_forward.5} parent=23 // pred_check_branch
        %158 = sbr.rel (%p156) target = $region28
      $region27: #{downblock_forward.5} parent=23 // pred_region
        %p159 = scmp.lt.s32.totalorder %s11, 1
        %s160 = scalar_select %p159, %s11, 1
        %s161 = smul.addr %s160, 2
        %s162 = smul.addr %s161, 8
        %s163 = scalar_lea.vmem %s0, %s162
      $region28: #{downblock_forward.5} parent=23 // pred_fallthru
        _
    $region24: #{downblock_forward.5} parent=5 // pred_fallthru
      _
    %p164 = scmp.le.s32.totalorder 1, %s11
    %p165 = scmp.lt.s32.totalorder %s11, 3
    %p166 = pnand %p164, %p165
    %p167 = pneg %p166
    // Predicated region
    $region29: #{downblock_forward.5} parent=5 // pred_check
      _
    $region30: #{downblock_forward.5} parent=5 // pred_check_branch
      %169 = sbr.rel (%p166) target = $region32
    $region31: #{downblock_forward.5} parent=5 // pred_region
      %s170 = ssub.s32 %s11, 1
      %p171 = scmp.lt.s32.totalorder %s16, 1
      %s172 = scalar_select %p171, %s16, 1
      %s173 = smul.addr %s172, 2
      %s174 = smul.addr %s173, 8
      %s175 = scalar_lea.vmem %s0, %s174
      %p176 = pneg %p37
      %p177 = pneg %p34
      %p178 = pneg %p58
      %p179 = pneg %p55
      %p180 = pneg %p79
      %p181 = pneg %p76
      %p182 = pneg %p105
      %p183 = pneg %p102
      %p184 = scmp.lt.s32.totalorder %s16, 1
      %s185 = scalar_select %p184, %s16, 1
      %s186 = smul.addr %s185, 2
      %s187 = smul.addr %s186, 8
      %s188 = scalar_lea.vmem %s3, %s187
      %p189 = pneg %p131
      %p190 = pneg %p128
      %p191 = scmp.lt.s32.totalorder %s16, 1
      %s192 = scalar_select %p191, %s16, 1
      %s193 = smul.addr %s192, 8
      %s194 = scalar_lea.vmem %s4, %s193
      %p195 = scmp.lt.s32.totalorder %s16, 1
      %s196 = scalar_select %p195, %s16, 1
      %s197 = smul.addr %s196, 2
      %s198 = smul.addr %s197, 8
      %s199 = scalar_lea.vmem %s0, %s198
      %p200 = scmp.lt.s32.totalorder %s16, 1
      %s201 = scalar_select %p200, %s16, 1
      %s202 = smul.addr %s201, 2
      %s203 = smul.addr %s202, 8
      %s204 = scalar_lea.vmem %s3, %s203
      %p205 = scmp.lt.s32.totalorder %s16, 1
      %s206 = scalar_select %p205, %s16, 1
      %s207 = smul.addr %s206, 8
      %s208 = scalar_lea.vmem %s4, %s207
      %v209 = vld [vmem:[%s199] sm:$0xff]
      %v210 = vld [vmem:[%s199 + $0x8] sm:$0xff]
      %v211 = vld [vmem:[%s1] sm:$0xff]
      %213 = vset.pattern.permute.xlu0 0
      %214 = vperm.xlu0 %213, %v211
      %v215 = vpop.permute.xlu0 %214
      %v217 = vmul.f32 %v209, %v215
      %v218 = vmul.f32 %v210, %v215
      %v219 = vld [vmem:[%s2] sm:$0xff]
      %221 = vset.pattern.permute.xlu0 0
      %222 = vperm.xlu0 %221, %v219
      %v223 = vpop.permute.xlu0 %222
      %v225 = vadd.f32 %v217, %v223
      %v226 = vadd.f32 %v218, %v223
      %v227 = vmax.f32 %v225, 0.0
      %v228 = vmax.f32 %v226, 0.0
      %229 = vst [vmem:[%s204] sm:$0xff] %v227
      %230 = vst [vmem:[%s204 + $0x8] sm:$0xff] %v228
      %233 = vrot.lane.b32.xlu0 %v227, 127
      %v234 = vpop.permute.xlu0 %233
      %235 = vrot.lane.b32.xlu0 %v228, 127
      %v236 = vpop.permute.xlu0 %235
      %vm237 = vcmask 1039360
      %v238 = vsel %vm237, %v234, %v236
      %v241 = vsel %vm237, %v236, 0.0
      %v242 = vmax.f32 %v227, %v238
      %v243 = vmax.f32 %v228, %v241
      %246 = vrot.lane.b32.xlu0 %v242, 112
      %v247 = vpop.permute.xlu0 %246
      %248 = vrot.lane.b32.xlu0 %v243, 112
      %v249 = vpop.permute.xlu0 %248
      %vm250 = vcmask 916480
      %v251 = vsel %vm250, %v247, %v249
      %v254 = vsel %vm250, %v249, 0.0
      %v255 = vmax.f32 %v242, %v251
      %v256 = vmax.f32 %v243, %v254
      %257 = vxpose.xlu0.b32.start [1/16] %v255, 128
      %258 = vxpose.xlu0.b32.cont [2/16] 0.0, 128
      %259 = vxpose.xlu0.b32.cont [3/16] 0.0, 128
      %260 = vxpose.xlu0.b32.cont [4/16] 0.0, 128
      %261 = vxpose.xlu0.b32.cont [5/16] 0.0, 128
      %262 = vxpose.xlu0.b32.cont [6/16] 0.0, 128
      %263 = vxpose.xlu0.b32.cont [7/16] 0.0, 128
      %264 = vxpose.xlu0.b32.cont [8/16] 0.0, 128
      %265 = vxpose.xlu0.b32.cont [9/16] 0.0, 128
      %266 = vxpose.xlu0.b32.cont [10/16] 0.0, 128
      %267 = vxpose.xlu0.b32.cont [11/16] 0.0, 128
      %268 = vxpose.xlu0.b32.cont [12/16] 0.0, 128
      %269 = vxpose.xlu0.b32.cont [13/16] 0.0, 128
      %270 = vxpose.xlu0.b32.cont [14/16] 0.0, 128
      %271 = vxpose.xlu0.b32.cont [15/16] 0.0, 128
      %272 = vxpose.xlu0.b32.end [16/16] 0.0, 128
      %v273 = vpop.trf.xlu0
      %v274 = vpop.trf.xlu0
      %v275 = vpop.trf.xlu0
      %v276 = vpop.trf.xlu0
      %v277 = vpop.trf.xlu0
      %v278 = vpop.trf.xlu0
      %v279 = vpop.trf.xlu0
      %v280 = vpop.trf.xlu0
      %v281 = vpop.trf.xlu0
      %v282 = vpop.trf.xlu0
      %v283 = vpop.trf.xlu0
      %v284 = vpop.trf.xlu0
      %v285 = vpop.trf.xlu0
      %v286 = vpop.trf.xlu0
      %v287 = vpop.trf.xlu0
      %v288 = vpop.trf.xlu0
      %289 = vxpose.xlu0.b32.start [1/16] %v256, 128
      %290 = vxpose.xlu0.b32.cont [2/16] 0.0, 128
      %291 = vxpose.xlu0.b32.cont [3/16] 0.0, 128
      %292 = vxpose.xlu0.b32.cont [4/16] 0.0, 128
      %293 = vxpose.xlu0.b32.cont [5/16] 0.0, 128
      %294 = vxpose.xlu0.b32.cont [6/16] 0.0, 128
      %295 = vxpose.xlu0.b32.cont [7/16] 0.0, 128
      %296 = vxpose.xlu0.b32.cont [8/16] 0.0, 128
      %297 = vxpose.xlu0.b32.cont [9/16] 0.0, 128
      %298 = vxpose.xlu0.b32.cont [10/16] 0.0, 128
      %299 = vxpose.xlu0.b32.cont [11/16] 0.0, 128
      %300 = vxpose.xlu0.b32.cont [12/16] 0.0, 128
      %301 = vxpose.xlu0.b32.cont [13/16] 0.0, 128
      %302 = vxpose.xlu0.b32.cont [14/16] 0.0, 128
      %303 = vxpose.xlu0.b32.cont [15/16] 0.0, 128
      %304 = vxpose.xlu0.b32.end [16/16] 0.0, 128
      %v305 = vpop.trf.xlu0
      %v306 = vpop.trf.xlu0
      %v307 = vpop.trf.xlu0
      %v308 = vpop.trf.xlu0
      %v309 = vpop.trf.xlu0
      %v310 = vpop.trf.xlu0
      %v311 = vpop.trf.xlu0
      %v312 = vpop.trf.xlu0
      %v313 = vpop.trf.xlu0
      %v314 = vpop.trf.xlu0
      %v315 = vpop.trf.xlu0
      %v316 = vpop.trf.xlu0
      %v317 = vpop.trf.xlu0
      %v318 = vpop.trf.xlu0
      %v319 = vpop.trf.xlu0
      %v320 = vpop.trf.xlu0
      %v337 = vcombine.high %v273, %v273
      %v339 = vunpack.c.l.s4 1983009808
      %v340 = vunpack.c.0.s8 %v339
      %v341 = vlaneseq
      %v342 = vshrl.u32 %v341, 7
      %v343 = vsub.s32 %v340, %v342
      %v344 = vrot.slane %v273, %v343
      %v346 = vunpack.c.l.s4 1983009808
      %v347 = vunpack.c.0.s8 %v346
      %v348 = vlaneseq
      %v349 = vshrl.u32 %v348, 7
      %v350 = vsub.s32 %v347, %v349
      %v351 = vrot.slane %v337, %v350
      %v352 = vcombine.high %v344, %v344
      %v353 = vcombine.high %v351, %v351
      %v354 = vcombine.high %v274, %v274
      %v356 = vunpack.c.l.s4 1983009808
      %v357 = vunpack.c.0.s8 %v356
      %v358 = vlaneseq
      %v359 = vshrl.u32 %v358, 7
      %v360 = vsub.s32 %v357, %v359
      %v361 = vrot.slane %v274, %v360
      %v363 = vunpack.c.l.s4 1983009808
      %v364 = vunpack.c.0.s8 %v363
      %v365 = vlaneseq
      %v366 = vshrl.u32 %v365, 7
      %v367 = vsub.s32 %v364, %v366
      %v368 = vrot.slane %v354, %v367
      %v369 = vcombine.high %v361, %v361
      %v370 = vcombine.high %v368, %v368
      %v371 = vcombine.high %v277, %v277
      %v373 = vunpack.c.l.s4 1983009808
      %v374 = vunpack.c.0.s8 %v373
      %v375 = vlaneseq
      %v376 = vshrl.u32 %v375, 7
      %v377 = vsub.s32 %v374, %v376
      %v378 = vrot.slane %v277, %v377
      %v380 = vunpack.c.l.s4 1983009808
      %v381 = vunpack.c.0.s8 %v380
      %v382 = vlaneseq
      %v383 = vshrl.u32 %v382, 7
      %v384 = vsub.s32 %v381, %v383
      %v385 = vrot.slane %v371, %v384
      %v386 = vcombine.high %v378, %v378
      %v387 = vcombine.high %v385, %v385
      %v388 = vcombine.high %v278, %v278
      %v390 = vunpack.c.l.s4 1983009808
      %v391 = vunpack.c.0.s8 %v390
      %v392 = vlaneseq
      %v393 = vshrl.u32 %v392, 7
      %v394 = vsub.s32 %v391, %v393
      %v395 = vrot.slane %v278, %v394
      %v397 = vunpack.c.l.s4 1983009808
      %v398 = vunpack.c.0.s8 %v397
      %v399 = vlaneseq
      %v400 = vshrl.u32 %v399, 7
      %v401 = vsub.s32 %v398, %v400
      %v402 = vrot.slane %v388, %v401
      %v403 = vcombine.high %v395, %v395
      %v404 = vcombine.high %v402, %v402
      %v405 = vcombine.high %v281, %v281
      %v407 = vunpack.c.l.s4 1983009808
      %v408 = vunpack.c.0.s8 %v407
      %v409 = vlaneseq
      %v410 = vshrl.u32 %v409, 7
      %v411 = vsub.s32 %v408, %v410
      %v412 = vrot.slane %v281, %v411
      %v414 = vunpack.c.l.s4 1983009808
      %v415 = vunpack.c.0.s8 %v414
      %v416 = vlaneseq
      %v417 = vshrl.u32 %v416, 7
      %v418 = vsub.s32 %v415, %v417
      %v419 = vrot.slane %v405, %v418
      %v420 = vcombine.high %v412, %v412
      %v421 = vcombine.high %v419, %v419
      %v422 = vcombine.high %v282, %v282
      %v424 = vunpack.c.l.s4 1983009808
      %v425 = vunpack.c.0.s8 %v424
      %v426 = vlaneseq
      %v427 = vshrl.u32 %v426, 7
      %v428 = vsub.s32 %v425, %v427
      %v429 = vrot.slane %v282, %v428
      %v431 = vunpack.c.l.s4 1983009808
      %v432 = vunpack.c.0.s8 %v431
      %v433 = vlaneseq
      %v434 = vshrl.u32 %v433, 7
      %v435 = vsub.s32 %v432, %v434
      %v436 = vrot.slane %v422, %v435
      %v437 = vcombine.high %v429, %v429
      %v438 = vcombine.high %v436, %v436
      %v439 = vcombine.high %v285, %v285
      %v441 = vunpack.c.l.s4 1983009808
      %v442 = vunpack.c.0.s8 %v441
      %v443 = vlaneseq
      %v444 = vshrl.u32 %v443, 7
      %v445 = vsub.s32 %v442, %v444
      %v446 = vrot.slane %v285, %v445
      %v448 = vunpack.c.l.s4 1983009808
      %v449 = vunpack.c.0.s8 %v448
      %v450 = vlaneseq
      %v451 = vshrl.u32 %v450, 7
      %v452 = vsub.s32 %v449, %v451
      %v453 = vrot.slane %v439, %v452
      %v454 = vcombine.high %v446, %v446
      %v455 = vcombine.high %v453, %v453
      %v456 = vcombine.high %v286, %v286
      %v458 = vunpack.c.l.s4 1983009808
      %v459 = vunpack.c.0.s8 %v458
      %v460 = vlaneseq
      %v461 = vshrl.u32 %v460, 7
      %v462 = vsub.s32 %v459, %v461
      %v463 = vrot.slane %v286, %v462
      %v465 = vunpack.c.l.s4 1983009808
      %v466 = vunpack.c.0.s8 %v465
      %v467 = vlaneseq
      %v468 = vshrl.u32 %v467, 7
      %v469 = vsub.s32 %v466, %v468
      %v470 = vrot.slane %v456, %v469
      %v471 = vcombine.high %v463, %v463
      %v472 = vcombine.high %v470, %v470
      %v473 = vcombine.high %v305, %v305
      %v475 = vunpack.c.l.s4 1983009808
      %v476 = vunpack.c.0.s8 %v475
      %v477 = vlaneseq
      %v478 = vshrl.u32 %v477, 7
      %v479 = vsub.s32 %v476, %v478
      %v480 = vrot.slane %v305, %v479
      %v482 = vunpack.c.l.s4 1983009808
      %v483 = vunpack.c.0.s8 %v482
      %v484 = vlaneseq
      %v485 = vshrl.u32 %v484, 7
      %v486 = vsub.s32 %v483, %v485
      %v487 = vrot.slane %v473, %v486
      %v488 = vcombine.high %v480, %v480
      %v489 = vcombine.high %v487, %v487
      %v490 = vcombine.high %v306, %v306
      %v492 = vunpack.c.l.s4 1983009808
      %v493 = vunpack.c.0.s8 %v492
      %v494 = vlaneseq
      %v495 = vshrl.u32 %v494, 7
      %v496 = vsub.s32 %v493, %v495
      %v497 = vrot.slane %v306, %v496
      %v499 = vunpack.c.l.s4 1983009808
      %v500 = vunpack.c.0.s8 %v499
      %v501 = vlaneseq
      %v502 = vshrl.u32 %v501, 7
      %v503 = vsub.s32 %v500, %v502
      %v504 = vrot.slane %v490, %v503
      %v505 = vcombine.high %v497, %v497
      %v506 = vcombine.high %v504, %v504
      %v507 = vcombine.high %v309, %v309
      %v509 = vunpack.c.l.s4 1983009808
      %v510 = vunpack.c.0.s8 %v509
      %v511 = vlaneseq
      %v512 = vshrl.u32 %v511, 7
      %v513 = vsub.s32 %v510, %v512
      %v514 = vrot.slane %v309, %v513
      %v516 = vunpack.c.l.s4 1983009808
      %v517 = vunpack.c.0.s8 %v516
      %v518 = vlaneseq
      %v519 = vshrl.u32 %v518, 7
      %v520 = vsub.s32 %v517, %v519
      %v521 = vrot.slane %v507, %v520
      %v522 = vcombine.high %v514, %v514
      %v523 = vcombine.high %v521, %v521
      %v524 = vcombine.high %v310, %v310
      %v526 = vunpack.c.l.s4 1983009808
      %v527 = vunpack.c.0.s8 %v526
      %v528 = vlaneseq
      %v529 = vshrl.u32 %v528, 7
      %v530 = vsub.s32 %v527, %v529
      %v531 = vrot.slane %v310, %v530
      %v533 = vunpack.c.l.s4 1983009808
      %v534 = vunpack.c.0.s8 %v533
      %v535 = vlaneseq
      %v536 = vshrl.u32 %v535, 7
      %v537 = vsub.s32 %v534, %v536
      %v538 = vrot.slane %v524, %v537
      %v539 = vcombine.high %v531, %v531
      %v540 = vcombine.high %v538, %v538
      %v541 = vcombine.high %v313, %v313
      %v543 = vunpack.c.l.s4 1983009808
      %v544 = vunpack.c.0.s8 %v543
      %v545 = vlaneseq
      %v546 = vshrl.u32 %v545, 7
      %v547 = vsub.s32 %v544, %v546
      %v548 = vrot.slane %v313, %v547
      %v550 = vunpack.c.l.s4 1983009808
      %v551 = vunpack.c.0.s8 %v550
      %v552 = vlaneseq
      %v553 = vshrl.u32 %v552, 7
      %v554 = vsub.s32 %v551, %v553
      %v555 = vrot.slane %v541, %v554
      %v556 = vcombine.high %v548, %v548
      %v557 = vcombine.high %v555, %v555
      %v558 = vcombine.high %v314, %v314
      %v560 = vunpack.c.l.s4 1983009808
      %v561 = vunpack.c.0.s8 %v560
      %v562 = vlaneseq
      %v563 = vshrl.u32 %v562, 7
      %v564 = vsub.s32 %v561, %v563
      %v565 = vrot.slane %v314, %v564
      %v567 = vunpack.c.l.s4 1983009808
      %v568 = vunpack.c.0.s8 %v567
      %v569 = vlaneseq
      %v570 = vshrl.u32 %v569, 7
      %v571 = vsub.s32 %v568, %v570
      %v572 = vrot.slane %v558, %v571
      %v573 = vcombine.high %v565, %v565
      %v574 = vcombine.high %v572, %v572
      %v575 = vcombine.high %v317, %v317
      %v577 = vunpack.c.l.s4 1983009808
      %v578 = vunpack.c.0.s8 %v577
      %v579 = vlaneseq
      %v580 = vshrl.u32 %v579, 7
      %v581 = vsub.s32 %v578, %v580
      %v582 = vrot.slane %v317, %v581
      %v584 = vunpack.c.l.s4 1983009808
      %v585 = vunpack.c.0.s8 %v584
      %v586 = vlaneseq
      %v587 = vshrl.u32 %v586, 7
      %v588 = vsub.s32 %v585, %v587
      %v589 = vrot.slane %v575, %v588
      %v590 = vcombine.high %v582, %v582
      %v591 = vcombine.high %v589, %v589
      %v592 = vcombine.high %v318, %v318
      %v594 = vunpack.c.l.s4 1983009808
      %v595 = vunpack.c.0.s8 %v594
      %v596 = vlaneseq
      %v597 = vshrl.u32 %v596, 7
      %v598 = vsub.s32 %v595, %v597
      %v599 = vrot.slane %v318, %v598
      %v601 = vunpack.c.l.s4 1983009808
      %v602 = vunpack.c.0.s8 %v601
      %v603 = vlaneseq
      %v604 = vshrl.u32 %v603, 7
      %v605 = vsub.s32 %v602, %v604
      %v606 = vrot.slane %v592, %v605
      %v607 = vcombine.high %v599, %v599
      %v608 = vcombine.high %v606, %v606
      %v609 = vlaneseq
      %v610 = vshrl.u32 %v609, 7
      %v611 = vsub.s32 0, %v610
      %v612 = vrot.slane %v344, %v611
      %v613 = vlaneseq
      %v614 = vshrl.u32 %v613, 7
      %v615 = vsub.s32 0, %v614
      %v616 = vrot.slane %v352, %v615
      %v617 = vlaneseq
      %v618 = vshrl.u32 %v617, 7
      %v619 = vsub.s32 0, %v618
      %v620 = vrot.slane %v351, %v619
      %v621 = vlaneseq
      %v622 = vshrl.u32 %v621, 7
      %v623 = vsub.s32 0, %v622
      %v624 = vrot.slane %v353, %v623
      %v625 = vlaneseq
      %v626 = vshrl.u32 %v625, 7
      %v627 = vsub.s32 0, %v626
      %v628 = vrot.slane %v361, %v627
      %v629 = vlaneseq
      %v630 = vshrl.u32 %v629, 7
      %v631 = vsub.s32 0, %v630
      %v632 = vrot.slane %v369, %v631
      %v633 = vlaneseq
      %v634 = vshrl.u32 %v633, 7
      %v635 = vsub.s32 0, %v634
      %v636 = vrot.slane %v368, %v635
      %v637 = vlaneseq
      %v638 = vshrl.u32 %v637, 7
      %v639 = vsub.s32 0, %v638
      %v640 = vrot.slane %v370, %v639
      %v641 = vlaneseq
      %v642 = vshrl.u32 %v641, 7
      %v643 = vsub.s32 0, %v642
      %v644 = vrot.slane %v378, %v643
      %v645 = vlaneseq
      %v646 = vshrl.u32 %v645, 7
      %v647 = vsub.s32 0, %v646
      %v648 = vrot.slane %v386, %v647
      %v649 = vlaneseq
      %v650 = vshrl.u32 %v649, 7
      %v651 = vsub.s32 0, %v650
      %v652 = vrot.slane %v385, %v651
      %v653 = vlaneseq
      %v654 = vshrl.u32 %v653, 7
      %v655 = vsub.s32 0, %v654
      %v656 = vrot.slane %v387, %v655
      %v657 = vlaneseq
      %v658 = vshrl.u32 %v657, 7
      %v659 = vsub.s32 0, %v658
      %v660 = vrot.slane %v395, %v659
      %v661 = vlaneseq
      %v662 = vshrl.u32 %v661, 7
      %v663 = vsub.s32 0, %v662
      %v664 = vrot.slane %v403, %v663
      %v665 = vlaneseq
      %v666 = vshrl.u32 %v665, 7
      %v667 = vsub.s32 0, %v666
      %v668 = vrot.slane %v402, %v667
      %v669 = vlaneseq
      %v670 = vshrl.u32 %v669, 7
      %v671 = vsub.s32 0, %v670
      %v672 = vrot.slane %v404, %v671
      %v673 = vlaneseq
      %v674 = vshrl.u32 %v673, 7
      %v675 = vsub.s32 0, %v674
      %v676 = vrot.slane %v412, %v675
      %v677 = vlaneseq
      %v678 = vshrl.u32 %v677, 7
      %v679 = vsub.s32 0, %v678
      %v680 = vrot.slane %v420, %v679
      %v681 = vlaneseq
      %v682 = vshrl.u32 %v681, 7
      %v683 = vsub.s32 0, %v682
      %v684 = vrot.slane %v419, %v683
      %v685 = vlaneseq
      %v686 = vshrl.u32 %v685, 7
      %v687 = vsub.s32 0, %v686
      %v688 = vrot.slane %v421, %v687
      %v689 = vlaneseq
      %v690 = vshrl.u32 %v689, 7
      %v691 = vsub.s32 0, %v690
      %v692 = vrot.slane %v429, %v691
      %v693 = vlaneseq
      %v694 = vshrl.u32 %v693, 7
      %v695 = vsub.s32 0, %v694
      %v696 = vrot.slane %v437, %v695
      %v697 = vlaneseq
      %v698 = vshrl.u32 %v697, 7
      %v699 = vsub.s32 0, %v698
      %v700 = vrot.slane %v436, %v699
      %v701 = vlaneseq
      %v702 = vshrl.u32 %v701, 7
      %v703 = vsub.s32 0, %v702
      %v704 = vrot.slane %v438, %v703
      %v705 = vlaneseq
      %v706 = vshrl.u32 %v705, 7
      %v707 = vsub.s32 0, %v706
      %v708 = vrot.slane %v446, %v707
      %v709 = vlaneseq
      %v710 = vshrl.u32 %v709, 7
      %v711 = vsub.s32 0, %v710
      %v712 = vrot.slane %v454, %v711
      %v713 = vlaneseq
      %v714 = vshrl.u32 %v713, 7
      %v715 = vsub.s32 0, %v714
      %v716 = vrot.slane %v453, %v715
      %v717 = vlaneseq
      %v718 = vshrl.u32 %v717, 7
      %v719 = vsub.s32 0, %v718
      %v720 = vrot.slane %v455, %v719
      %v721 = vlaneseq
      %v722 = vshrl.u32 %v721, 7
      %v723 = vsub.s32 0, %v722
      %v724 = vrot.slane %v463, %v723
      %v725 = vlaneseq
      %v726 = vshrl.u32 %v725, 7
      %v727 = vsub.s32 0, %v726
      %v728 = vrot.slane %v471, %v727
      %v729 = vlaneseq
      %v730 = vshrl.u32 %v729, 7
      %v731 = vsub.s32 0, %v730
      %v732 = vrot.slane %v470, %v731
      %v733 = vlaneseq
      %v734 = vshrl.u32 %v733, 7
      %v735 = vsub.s32 0, %v734
      %v736 = vrot.slane %v472, %v735
      %v737 = vlaneseq
      %v738 = vshrl.u32 %v737, 7
      %v739 = vsub.s32 0, %v738
      %v740 = vrot.slane %v480, %v739
      %v741 = vlaneseq
      %v742 = vshrl.u32 %v741, 7
      %v743 = vsub.s32 0, %v742
      %v744 = vrot.slane %v488, %v743
      %v745 = vlaneseq
      %v746 = vshrl.u32 %v745, 7
      %v747 = vsub.s32 0, %v746
      %v748 = vrot.slane %v487, %v747
      %v749 = vlaneseq
      %v750 = vshrl.u32 %v749, 7
      %v751 = vsub.s32 0, %v750
      %v752 = vrot.slane %v489, %v751
      %v753 = vlaneseq
      %v754 = vshrl.u32 %v753, 7
      %v755 = vsub.s32 0, %v754
      %v756 = vrot.slane %v497, %v755
      %v757 = vlaneseq
      %v758 = vshrl.u32 %v757, 7
      %v759 = vsub.s32 0, %v758
      %v760 = vrot.slane %v505, %v759
      %v761 = vlaneseq
      %v762 = vshrl.u32 %v761, 7
      %v763 = vsub.s32 0, %v762
      %v764 = vrot.slane %v504, %v763
      %v765 = vlaneseq
      %v766 = vshrl.u32 %v765, 7
      %v767 = vsub.s32 0, %v766
      %v768 = vrot.slane %v506, %v767
      %v769 = vlaneseq
      %v770 = vshrl.u32 %v769, 7
      %v771 = vsub.s32 0, %v770
      %v772 = vrot.slane %v514, %v771
      %v773 = vlaneseq
      %v774 = vshrl.u32 %v773, 7
      %v775 = vsub.s32 0, %v774
      %v776 = vrot.slane %v522, %v775
      %v777 = vlaneseq
      %v778 = vshrl.u32 %v777, 7
      %v779 = vsub.s32 0, %v778
      %v780 = vrot.slane %v521, %v779
      %v781 = vlaneseq
      %v782 = vshrl.u32 %v781, 7
      %v783 = vsub.s32 0, %v782
      %v784 = vrot.slane %v523, %v783
      %v785 = vlaneseq
      %v786 = vshrl.u32 %v785, 7
      %v787 = vsub.s32 0, %v786
      %v788 = vrot.slane %v531, %v787
      %v789 = vlaneseq
      %v790 = vshrl.u32 %v789, 7
      %v791 = vsub.s32 0, %v790
      %v792 = vrot.slane %v539, %v791
      %v793 = vlaneseq
      %v794 = vshrl.u32 %v793, 7
      %v795 = vsub.s32 0, %v794
      %v796 = vrot.slane %v538, %v795
      %v797 = vlaneseq
      %v798 = vshrl.u32 %v797, 7
      %v799 = vsub.s32 0, %v798
      %v800 = vrot.slane %v540, %v799
      %v801 = vlaneseq
      %v802 = vshrl.u32 %v801, 7
      %v803 = vsub.s32 0, %v802
      %v804 = vrot.slane %v548, %v803
      %v805 = vlaneseq
      %v806 = vshrl.u32 %v805, 7
      %v807 = vsub.s32 0, %v806
      %v808 = vrot.slane %v556, %v807
      %v809 = vlaneseq
      %v810 = vshrl.u32 %v809, 7
      %v811 = vsub.s32 0, %v810
      %v812 = vrot.slane %v555, %v811
      %v813 = vlaneseq
      %v814 = vshrl.u32 %v813, 7
      %v815 = vsub.s32 0, %v814
      %v816 = vrot.slane %v557, %v815
      %v817 = vlaneseq
      %v818 = vshrl.u32 %v817, 7
      %v819 = vsub.s32 0, %v818
      %v820 = vrot.slane %v565, %v819
      %v821 = vlaneseq
      %v822 = vshrl.u32 %v821, 7
      %v823 = vsub.s32 0, %v822
      %v824 = vrot.slane %v573, %v823
      %v825 = vlaneseq
      %v826 = vshrl.u32 %v825, 7
      %v827 = vsub.s32 0, %v826
      %v828 = vrot.slane %v572, %v827
      %v829 = vlaneseq
      %v830 = vshrl.u32 %v829, 7
      %v831 = vsub.s32 0, %v830
      %v832 = vrot.slane %v574, %v831
      %v833 = vlaneseq
      %v834 = vshrl.u32 %v833, 7
      %v835 = vsub.s32 0, %v834
      %v836 = vrot.slane %v582, %v835
      %v837 = vlaneseq
      %v838 = vshrl.u32 %v837, 7
      %v839 = vsub.s32 0, %v838
      %v840 = vrot.slane %v590, %v839
      %v841 = vlaneseq
      %v842 = vshrl.u32 %v841, 7
      %v843 = vsub.s32 0, %v842
      %v844 = vrot.slane %v589, %v843
      %v845 = vlaneseq
      %v846 = vshrl.u32 %v845, 7
      %v847 = vsub.s32 0, %v846
      %v848 = vrot.slane %v591, %v847
      %v849 = vlaneseq
      %v850 = vshrl.u32 %v849, 7
      %v851 = vsub.s32 0, %v850
      %v852 = vrot.slane %v599, %v851
      %v853 = vlaneseq
      %v854 = vshrl.u32 %v853, 7
      %v855 = vsub.s32 0, %v854
      %v856 = vrot.slane %v607, %v855
      %v857 = vlaneseq
      %v858 = vshrl.u32 %v857, 7
      %v859 = vsub.s32 0, %v858
      %v860 = vrot.slane %v606, %v859
      %v861 = vlaneseq
      %v862 = vshrl.u32 %v861, 7
      %v863 = vsub.s32 0, %v862
      %v864 = vrot.slane %v608, %v863
      %vm865 = vcmask 1041409
      %v866 = vsel %vm865, %v616, %v612
      %vm867 = vcmask 1042434
      %v868 = vsel %vm867, %v620, %v866
      %vm869 = vcmask 1043459
      %v870 = vsel %vm869, %v624, %v868
      %vm871 = vcmask 1044484
      %v872 = vsel %vm871, %v628, %v870
      %vm873 = vcmask 1045509
      %v874 = vsel %vm873, %v632, %v872
      %vm875 = vcmask 1046534
      %v876 = vsel %vm875, %v636, %v874
      %vm877 = vcmask 1047559
      %v878 = vsel %vm877, %v640, %v876
      %v879 = vsel %vm865, %v648, %v644
      %v880 = vsel %vm867, %v652, %v879
      %v881 = vsel %vm869, %v656, %v880
      %v882 = vsel %vm871, %v660, %v881
      %v883 = vsel %vm873, %v664, %v882
      %v884 = vsel %vm875, %v668, %v883
      %v885 = vsel %vm877, %v672, %v884
      %v886 = vsel %vm865, %v680, %v676
      %v887 = vsel %vm867, %v684, %v886
      %v888 = vsel %vm869, %v688, %v887
      %v889 = vsel %vm871, %v692, %v888
      %v890 = vsel %vm873, %v696, %v889
      %v891 = vsel %vm875, %v700, %v890
      %v892 = vsel %vm877, %v704, %v891
      %v893 = vsel %vm865, %v712, %v708
      %v894 = vsel %vm867, %v716, %v893
      %v895 = vsel %vm869, %v720, %v894
      %v896 = vsel %vm871, %v724, %v895
      %v897 = vsel %vm873, %v728, %v896
      %v898 = vsel %vm875, %v732, %v897
      %v899 = vsel %vm877, %v736, %v898
      %v900 = vsel %vm865, %v744, %v740
      %v901 = vsel %vm867, %v748, %v900
      %v902 = vsel %vm869, %v752, %v901
      %v903 = vsel %vm871, %v756, %v902
      %v904 = vsel %vm873, %v760, %v903
      %v905 = vsel %vm875, %v764, %v904
      %v906 = vsel %vm877, %v768, %v905
      %v907 = vsel %vm865, %v776, %v772
      %v908 = vsel %vm867, %v780, %v907
      %v909 = vsel %vm869, %v784, %v908
      %v910 = vsel %vm871, %v788, %v909
      %v911 = vsel %vm873, %v792, %v910
      %v912 = vsel %vm875, %v796, %v911
      %v913 = vsel %vm877, %v800, %v912
      %v914 = vsel %vm865, %v808, %v804
      %v915 = vsel %vm867, %v812, %v914
      %v916 = vsel %vm869, %v816, %v915
      %v917 = vsel %vm871, %v820, %v916
      %v918 = vsel %vm873, %v824, %v917
      %v919 = vsel %vm875, %v828, %v918
      %v920 = vsel %vm877, %v832, %v919
      %v921 = vsel %vm865, %v840, %v836
      %v922 = vsel %vm867, %v844, %v921
      %v923 = vsel %vm869, %v848, %v922
      %v924 = vsel %vm871, %v852, %v923
      %v925 = vsel %vm873, %v856, %v924
      %v926 = vsel %vm875, %v860, %v925
      %v927 = vsel %vm877, %v864, %v926
      %936 = vxpose.xlu0.b32.start [1/16] %v878, 128
      %937 = vxpose.xlu0.b32.cont [2/16] %v885, 128
      %938 = vxpose.xlu0.b32.cont [3/16] %v892, 128
      %939 = vxpose.xlu0.b32.cont [4/16] %v899, 128
      %940 = vxpose.xlu0.b32.cont [5/16] %v906, 128
      %941 = vxpose.xlu0.b32.cont [6/16] %v913, 128
      %942 = vxpose.xlu0.b32.cont [7/16] %v920, 128
      %943 = vxpose.xlu0.b32.cont [8/16] %v927, 128
      %944 = vxpose.xlu0.b32.cont [9/16] 0.0, 128
      %945 = vxpose.xlu0.b32.cont [10/16] 0.0, 128
      %946 = vxpose.xlu0.b32.cont [11/16] 0.0, 128
      %947 = vxpose.xlu0.b32.cont [12/16] 0.0, 128
      %948 = vxpose.xlu0.b32.cont [13/16] 0.0, 128
      %949 = vxpose.xlu0.b32.cont [14/16] 0.0, 128
      %950 = vxpose.xlu0.b32.cont [15/16] 0.0, 128
      %951 = vxpose.xlu0.b32.end [16/16] 0.0, 128
      %v952 = vpop.trf.xlu0
      %v953 = vpop.trf.xlu0
      %v954 = vpop.trf.xlu0
      %v955 = vpop.trf.xlu0
      %v956 = vpop.trf.xlu0
      %v957 = vpop.trf.xlu0
      %v958 = vpop.trf.xlu0
      %v959 = vpop.trf.xlu0
      %v960 = vpop.trf.xlu0
      %v961 = vpop.trf.xlu0
      %v962 = vpop.trf.xlu0
      %v963 = vpop.trf.xlu0
      %v964 = vpop.trf.xlu0
      %v965 = vpop.trf.xlu0
      %v966 = vpop.trf.xlu0
      %v967 = vpop.trf.xlu0
      %vm968 = vcmask 523264
      %969 = vst.msk [vmem:[%s208] sm:$0xff] %vm968, %v952
      %p970 = scmp.lt.s32.totalorder %s16, 1
      %s971 = scalar_select %p970, %s16, 1
      %s972 = smul.addr %s971, 2
      %s973 = smul.addr %s972, 8
      %s974 = scalar_lea.vmem %s3, %s973
      %p975 = scmp.lt.s32.totalorder %s16, 1
      %s976 = scalar_select %p975, %s16, 1
      %s977 = smul.addr %s976, 8
      %s978 = scalar_lea.vmem %s4, %s977
      // Predicated region
      $region33: #{downblock_forward.5} parent=31 // pred_check
        %p979 = pneg %p102
      $region34: #{downblock_forward.5} parent=31 // pred_check_branch
        %981 = sbr.rel (%p979) target = $region36
      $region35: #{downblock_forward.5} parent=31 // pred_region
        _
      $region36: #{downblock_forward.5} parent=31 // pred_fallthru
        _
      // Predicated region
      $region37: #{downblock_forward.5} parent=31 // pred_check
        %p982 = pneg %p128
      $region38: #{downblock_forward.5} parent=31 // pred_check_branch
        %984 = sbr.rel (%p982) target = $region40
      $region39: #{downblock_forward.5} parent=31 // pred_region
        _
      $region40: #{downblock_forward.5} parent=31 // pred_fallthru
        _
    $region32: #{downblock_forward.5} parent=5 // pred_fallthru
      _
    %p985 = scmp.le.s32.totalorder 2, %s11
    // Predicated region
    $region41: #{downblock_forward.5} parent=5 // pred_check
      %p986 = pneg %p985
    $region42: #{downblock_forward.5} parent=5 // pred_check_branch
      %988 = sbr.rel (%p986) target = $region44
    $region43: #{downblock_forward.5} parent=5 // pred_region
      %s989 = ssub.s32 %s11, 2
      // Predicated region
      $region45: #{downblock_forward.5} parent=43 // pred_check
        %p990 = pneg %p108
      $region46: #{downblock_forward.5} parent=43 // pred_check_branch
        %992 = sbr.rel (%p990) target = $region48
      $region47: #{downblock_forward.5} parent=43 // pred_region
        %p993 = scmp.lt.s32.totalorder %s17, 1
        %s994 = scalar_select %p993, %s17, 1
        %s995 = smul.addr %s994, 2
        %s996 = smul.addr %s995, 8
        %s997 = scalar_lea.vmem %s3, %s996
      $region48: #{downblock_forward.5} parent=43 // pred_fallthru
        _
      // Predicated region
      $region49: #{downblock_forward.5} parent=43 // pred_check
        %p998 = pneg %p134
      $region50: #{downblock_forward.5} parent=43 // pred_check_branch
        %1000 = sbr.rel (%p998) target = $region52
      $region51: #{downblock_forward.5} parent=43 // pred_region
        %p1001 = scmp.lt.s32.totalorder %s17, 1
        %s1002 = scalar_select %p1001, %s17, 1
        %s1003 = smul.addr %s1002, 8
        %s1004 = scalar_lea.vmem %s4, %s1003
      $region52: #{downblock_forward.5} parent=43 // pred_fallthru
        _
    $region44: #{downblock_forward.5} parent=5 // pred_fallthru
      _
  $region6: #{downblock_forward.5} parent=0 // loop_footer
    %s15 = sadd.s32 1, %s11
  $region7: #{downblock_forward.5} parent=0 // loop_footer_branch
    %10 = sbr.rel target = $region3
  $region8: #{downblock_forward.5} parent=0 // loop_exit
    _

// kernel: downblock_forward.4
$region0: #{downblock_forward.4}
  #allocation0 [shape = 'u32[]', space=smem, size = 0x4, offset = 0x4, fixed_abs, tag = 'smem constant byte address 0x4 - core index']
  #allocation1 [shape = 'u32[144,128]{1,0:T(1,128)}', space=vmem, size = 0x12000, scoped, tag = 'internal scratch']
  %s0 = inlined_call_operand.vmem [shape: f32[2,8,256], index: 0, kind: input, shape index: {}]
  %s1 = inlined_call_operand.vmem [shape: bf16[9,8,8], index: 1, kind: input, shape index: {}]
  %s2 = inlined_call_operand.vmem [shape: f32[8,1], index: 2, kind: input, shape index: {}]
  %s3 = inlined_call_operand.vmem [shape: f32[8,1], index: 3, kind: input, shape index: {}]
  %s4 = inlined_call_operand.vmem [shape: f32[2,8,256], index: 4, kind: output, shape index: {0}]
  %s5 = inlined_call_operand.vmem [shape: f32[2,8,2], index: 5, kind: output, shape index: {1}]
  %6 = xla_tuple %s4, %s5
  %s7 = sld [smem:[#allocation0]]
  $region57: #{downblock_forward.4} parent=0
    _
  %s9 = ssub.s32 1, %s7
  %s10 = scalar_select 0, %s9, %s7
  loop: start=0, step=1, limit=4
  $region2: #{downblock_forward.4} parent=0 // loop_pre_header
    _
  $region3: #{downblock_forward.4} parent=0 // loop_header
    %s12 = sphi 0, %s16
    %p13 = scmp.ge.s32.totalorder %s12, 4
    %s22 = sphi 0, %s24
    %s25 = sphi 0, %s22
    %s26 = sphi 0, %s25
    %s42 = sphi 0, %s26
    %s46 = sphi 0, %s46
    %s48 = sphi 0, %s46
    %s49 = sphi 0, %s48
    %s63 = sphi 0, %s49
    %s67 = sphi 0, %s67
    %s69 = sphi 0, %s67
    %s70 = sphi 0, %s69
    %s84 = sphi 0, %s70
    %s88 = sphi 0, %s88
    %s90 = sphi 0, %s88
    %s91 = sphi 0, %s90
    %s105 = sphi 0, %s91
    %s111 = sphi 0, %s113
    %s114 = sphi 0, %s111
    %s115 = sphi 0, %s114
    %s131 = sphi 0, %s115
    %s137 = sphi 0, %s139
    %s140 = sphi 0, %s137
    %s141 = sphi 0, %s140
    %s157 = sphi 0, %s141
  $region4: #{downblock_forward.4} parent=0 // loop_header_branch
    %15 = sbr.rel (%p13) target = $region8
  $region5: #{downblock_forward.4} parent=0 // loop_body
    %s17 = ssub.s32 %s12, 1
    %s18 = ssub.s32 %s12, 2
    %s19 = sadd.s32 %s12, 1
    %s20 = ssub.s32 %s12, %s19
    %p21 = scmp.eq.s32.totalorder %s20, 0
    %s23 = sadd.s32 %s22, 1
    %s24 = scalar_select %p21, %s22, %s23
    %p27 = pneg %p21
    %p28 = scmp.eq.s32.totalorder %s12, 1
    %p29 = por %p27, %p28
    %p30 = scmp.ne.s32.totalorder %s22, %s25
    %p31 = scmp.eq.s32.totalorder %s12, 0
    %p32 = por %p30, %p31
    %p33 = scmp.ne.s32.totalorder %s22, %s25
    %p34 = scmp.eq.s32.totalorder %s17, 1
    %p35 = por %p33, %p34
    %p36 = scmp.ne.s32.totalorder %s25, %s26
    %p37 = scmp.eq.s32.totalorder %s17, 0
    %p38 = por %p36, %p37
    %p39 = scmp.ne.s32.totalorder %s25, %s26
    %p40 = scmp.eq.s32.totalorder %s18, 1
    %p41 = por %p39, %p40
    %p43 = scmp.ne.s32.totalorder %s26, %s42
    %p44 = scmp.eq.s32.totalorder %s18, 0
    %p45 = por %p43, %p44
    %s47 = sadd.s32 %s46, 1
    %p50 = scmp.eq.s32.totalorder %s12, 1
    %p51 = scmp.ne.s32.totalorder %s46, %s48
    %p52 = scmp.eq.s32.totalorder %s12, 0
    %p53 = por %p51, %p52
    %p54 = scmp.ne.s32.totalorder %s46, %s48
    %p55 = scmp.eq.s32.totalorder %s17, 1
    %p56 = por %p54, %p55
    %p57 = scmp.ne.s32.totalorder %s48, %s49
    %p58 = scmp.eq.s32.totalorder %s17, 0
    %p59 = por %p57, %p58
    %p60 = scmp.ne.s32.totalorder %s48, %s49
    %p61 = scmp.eq.s32.totalorder %s18, 1
    %p62 = por %p60, %p61
    %p64 = scmp.ne.s32.totalorder %s49, %s63
    %p65 = scmp.eq.s32.totalorder %s18, 0
    %p66 = por %p64, %p65
    %s68 = sadd.s32 %s67, 1
    %p71 = scmp.eq.s32.totalorder %s12, 1
    %p72 = scmp.ne.s32.totalorder %s67, %s69
    %p73 = scmp.eq.s32.totalorder %s12, 0
    %p74 = por %p72, %p73
    %p75 = scmp.ne.s32.totalorder %s67, %s69
    %p76 = scmp.eq.s32.totalorder %s17, 1
    %p77 = por %p75, %p76
    %p78 = scmp.ne.s32.totalorder %s69, %s70
    %p79 = scmp.eq.s32.totalorder %s17, 0
    %p80 = por %p78, %p79
    %p81 = scmp.ne.s32.totalorder %s69, %s70
    %p82 = scmp.eq.s32.totalorder %s18, 1
    %p83 = por %p81, %p82
    %p85 = scmp.ne.s32.totalorder %s70, %s84
    %p86 = scmp.eq.s32.totalorder %s18, 0
    %p87 = por %p85, %p86
    %s89 = sadd.s32 %s88, 1
    %p92 = scmp.eq.s32.totalorder %s12, 1
    %p93 = scmp.ne.s32.totalorder %s88, %s90
    %p94 = scmp.eq.s32.totalorder %s12, 0
    %p95 = por %p93, %p94
    %p96 = scmp.ne.s32.totalorder %s88, %s90
    %p97 = scmp.eq.s32.totalorder %s17, 1
    %p98 = por %p96, %p97
    %p99 = scmp.ne.s32.totalorder %s90, %s91
    %p100 = scmp.eq.s32.totalorder %s17, 0
    %p101 = por %p99, %p100
    %p102 = scmp.ne.s32.totalorder %s90, %s91
    %p103 = scmp.eq.s32.totalorder %s18, 1
    %p104 = por %p102, %p103
    %p106 = scmp.ne.s32.totalorder %s91, %s105
    %p107 = scmp.eq.s32.totalorder %s18, 0
    %p108 = por %p106, %p107
    %s109 = ssub.s32 %s12, %s19
    %p110 = scmp.eq.s32.totalorder %s109, 0
    %s112 = sadd.s32 %s111, 1
    %s113 = scalar_select %p110, %s111, %s112
    %p116 = pneg %p110
    %p117 = scmp.eq.s32.totalorder %s12, 1
    %p118 = por %p116, %p117
    %p119 = scmp.ne.s32.totalorder %s111, %s114
    %p120 = scmp.eq.s32.totalorder %s12, 0
    %p121 = por %p119, %p120
    %p122 = scmp.ne.s32.totalorder %s111, %s114
    %p123 = scmp.eq.s32.totalorder %s17, 1
    %p124 = por %p122, %p123
    %p125 = scmp.ne.s32.totalorder %s114, %s115
    %p126 = scmp.eq.s32.totalorder %s17, 0
    %p127 = por %p125, %p126
    %p128 = scmp.ne.s32.totalorder %s114, %s115
    %p129 = scmp.eq.s32.totalorder %s18, 1
    %p130 = por %p128, %p129
    %p132 = scmp.ne.s32.totalorder %s115, %s131
    %p133 = scmp.eq.s32.totalorder %s18, 0
    %p134 = por %p132, %p133
    %s135 = ssub.s32 %s12, %s19
    %p136 = scmp.eq.s32.totalorder %s135, 0
    %s138 = sadd.s32 %s137, 1
    %s139 = scalar_select %p136, %s137, %s138
    %p142 = pneg %p136
    %p143 = scmp.eq.s32.totalorder %s12, 1
    %p144 = por %p142, %p143
    %p145 = scmp.ne.s32.totalorder %s137, %s140
    %p146 = scmp.eq.s32.totalorder %s12, 0
    %p147 = por %p145, %p146
    %p148 = scmp.ne.s32.totalorder %s137, %s140
    %p149 = scmp.eq.s32.totalorder %s17, 1
    %p150 = por %p148, %p149
    %p151 = scmp.ne.s32.totalorder %s140, %s141
    %p152 = scmp.eq.s32.totalorder %s17, 0
    %p153 = por %p151, %p152
    %p154 = scmp.ne.s32.totalorder %s140, %s141
    %p155 = scmp.eq.s32.totalorder %s18, 1
    %p156 = por %p154, %p155
    %p158 = scmp.ne.s32.totalorder %s141, %s157
    %p159 = scmp.eq.s32.totalorder %s18, 0
    %p160 = por %p158, %p159
    %p161 = scmp.le.s32.totalorder 1, %s12
    %p162 = scmp.lt.s32.totalorder %s12, 3
    %p163 = pnand %p161, %p162
    %p164 = pneg %p163
    // Predicated region
    $region9: #{downblock_forward.4} parent=5 // pred_check
      _
    $region10: #{downblock_forward.4} parent=5 // pred_check_branch
      %166 = sbr.rel (%p163) target = $region12
    $region11: #{downblock_forward.4} parent=5 // pred_region
      %s167 = ssub.s32 %s12, 1
      // Predicated region
      $region13: #{downblock_forward.4} parent=11 // pred_check
        %p168 = pneg %p59
      $region14: #{downblock_forward.4} parent=11 // pred_check_branch
        %170 = sbr.rel (%p168) target = $region16
      $region15: #{downblock_forward.4} parent=11 // pred_region
        _
      $region16: #{downblock_forward.4} parent=11 // pred_fallthru
        _
      // Predicated region
      $region17: #{downblock_forward.4} parent=11 // pred_check
        %p171 = pneg %p80
      $region18: #{downblock_forward.4} parent=11 // pred_check_branch
        %173 = sbr.rel (%p171) target = $region20
      $region19: #{downblock_forward.4} parent=11 // pred_region
        _
      $region20: #{downblock_forward.4} parent=11 // pred_fallthru
        _
      // Predicated region
      $region21: #{downblock_forward.4} parent=11 // pred_check
        %p174 = pneg %p101
      $region22: #{downblock_forward.4} parent=11 // pred_check_branch
        %176 = sbr.rel (%p174) target = $region24
      $region23: #{downblock_forward.4} parent=11 // pred_region
        _
      $region24: #{downblock_forward.4} parent=11 // pred_fallthru
        _
    $region12: #{downblock_forward.4} parent=5 // pred_fallthru
      _
    %p177 = scmp.lt.s32.totalorder %s12, 2
    // Predicated region
    $region25: #{downblock_forward.4} parent=5 // pred_check
      %p178 = pneg %p177
    $region26: #{downblock_forward.4} parent=5 // pred_check_branch
      %180 = sbr.rel (%p178) target = $region28
    $region27: #{downblock_forward.4} parent=5 // pred_region
      // Predicated region
      $region29: #{downblock_forward.4} parent=27 // pred_check
        %p181 = pneg %p32
      $region30: #{downblock_forward.4} parent=27 // pred_check_branch
        %183 = sbr.rel (%p181) target = $region32
      $region31: #{downblock_forward.4} parent=27 // pred_region
        %p184 = scmp.lt.s32.totalorder %s12, 1
        %s185 = scalar_select %p184, %s12, 1
        %s186 = smul.addr %s185, 2
        %s187 = smul.addr %s186, 8
        %s188 = scalar_lea.vmem %s0, %s187
      $region32: #{downblock_forward.4} parent=27 // pred_fallthru
        _
    $region28: #{downblock_forward.4} parent=5 // pred_fallthru
      _
    %p189 = scmp.le.s32.totalorder 1, %s12
    %p190 = scmp.lt.s32.totalorder %s12, 3
    %p191 = pnand %p189, %p190
    %p192 = pneg %p191
    // Predicated region
    $region33: #{downblock_forward.4} parent=5 // pred_check
      _
    $region34: #{downblock_forward.4} parent=5 // pred_check_branch
      %194 = sbr.rel (%p191) target = $region36
    $region35: #{downblock_forward.4} parent=5 // pred_region
      %s195 = ssub.s32 %s12, 1
      %p196 = scmp.lt.s32.totalorder %s17, 1
      %s197 = scalar_select %p196, %s17, 1
      %s198 = smul.addr %s197, 2
      %s199 = smul.addr %s198, 8
      %s200 = scalar_lea.vmem %s0, %s199
      %p201 = pneg %p38
      %p202 = pneg %p35
      %p203 = pneg %p59
      %p204 = pneg %p56
      %p205 = pneg %p80
      %p206 = pneg %p77
      %p207 = pneg %p101
      %p208 = pneg %p98
      %p209 = pneg %p127
      %p210 = pneg %p124
      %p211 = scmp.lt.s32.totalorder %s17, 1
      %s212 = scalar_select %p211, %s17, 1
      %s213 = smul.addr %s212, 2
      %s214 = smul.addr %s213, 8
      %s215 = scalar_lea.vmem %s4, %s214
      %p216 = pneg %p153
      %p217 = pneg %p150
      %p218 = scmp.lt.s32.totalorder %s17, 1
      %s219 = scalar_select %p218, %s17, 1
      %s220 = smul.addr %s219, 8
      %s221 = scalar_lea.vmem %s5, %s220
      %p222 = scmp.lt.s32.totalorder %s17, 1
      %s223 = scalar_select %p222, %s17, 1
      %s224 = smul.addr %s223, 2
      %s225 = smul.addr %s224, 8
      %s226 = scalar_lea.vmem %s0, %s225
      %p227 = scmp.lt.s32.totalorder %s17, 1
      %s228 = scalar_select %p227, %s17, 1
      %s229 = smul.addr %s228, 2
      %s230 = smul.addr %s229, 8
      %s231 = scalar_lea.vmem %s4, %s230
      %p232 = scmp.lt.s32.totalorder %s17, 1
      %s233 = scalar_select %p232, %s17, 1
      %s234 = smul.addr %s233, 8
      %s235 = scalar_lea.vmem %s5, %s234
      %v237 = vld [vmem:[%s226] sm:$0xff]
      %v238 = vld [vmem:[%s226 + $0x8] sm:$0xff]
      %v239 = vld [vmem:[%s2] sm:$0xff]
      %241 = vset.pattern.permute.xlu0 0
      %242 = vperm.xlu0 %241, %v239
      %v243 = vpop.permute.xlu0 %242
      %v245 = vmul.f32 %v237, %v243
      %v246 = vmul.f32 %v238, %v243
      %v247 = vld [vmem:[%s3] sm:$0xff]
      %249 = vset.pattern.permute.xlu0 0
      %250 = vperm.xlu0 %249, %v247
      %v251 = vpop.permute.xlu0 %250
      %v253 = vadd.f32 %v245, %v251
      %v254 = vadd.f32 %v246, %v251
      %v255 = vmax.f32 %v253, 0.0
      %v256 = vmax.f32 %v254, 0.0
      %v257 = vlaneseq
      %v258 = vand.u32 %v257, 127
      %v259 = vadd.s32 %v258, 128
      %vm260 = vcmp.lt.s32.totalorder %v258, 0
      %v261 = vsub.s32 0, %v258
      %v262 = vsel %vm260, %v261, %v258
      %v263 = vshrl.u32 %v262, 4
      %v264 = vand.u32 %v262, 15
      %v265 = vsub.s32 0, %v264
      %v266 = vsel %vm260, %v265, %v264
      %vm267 = vcmp.lt.s32.totalorder %v259, 0
      %v268 = vsub.s32 0, %v259
      %v269 = vsel %vm267, %v268, %v259
      %v270 = vshrl.u32 %v269, 4
      %v271 = vand.u32 %v269, 15
      %v272 = vsub.s32 0, %v271
      %v273 = vsel %vm267, %v272, %v271
      %vm274 = vcmp.ne.s32.totalorder %v266, 0
      %vm275 = vcmp.ne.s32.totalorder %v273, 0
      %vm276 = vcmp.lt.s32.totalorder %v266, 0
      %vm277 = vcmp.lt.s32.totalorder %v273, 0
      %vm278 = vmand %vm276, %vm274
      %vm279 = vmand %vm277, %vm275
      %v280 = vadd.s32 %v266, 16
      %v281 = vadd.s32 %v273, 16
      %v282 = vsel %vm278, %v280, %v266
      %v283 = vsel %vm279, %v281, %v273
      %vm284 = vcmp.ge.s32.totalorder %v282, 1
      %vm285 = vcmp.ge.s32.totalorder %v283, 1
      %vm286 = vcmp.lt.s32.totalorder %v282, 15
      %vm287 = vcmp.lt.s32.totalorder %v283, 15
      %290 = vrot.lane.b32.xlu0 %v255, 17
      %v291 = vpop.permute.xlu0 %290
      %292 = vrot.lane.b32.xlu0 %v256, 17
      %v293 = vpop.permute.xlu0 %292
      %vm294 = vcmask 138240
      %v295 = vsel %vm294, %v291, %v293
      %v298 = vsel %vm294, 0.0, %v291
      %v299 = vsel %vm284, 1, 0
      %v300 = vsel %vm285, 1, 0
      %vm301 = vcmp.eq.s32.totalorder %v299, 1
      %vm302 = vcmp.eq.s32.totalorder %v300, 1
      %v303 = vsel %vm301, %v298, 0.0
      %v304 = vsel %vm302, %v295, 0.0
      %v305 = vld [vmem:[%s1] sm:$0xf]
      %v306 = vpack.c.bf16 %v303, %v303
      %v307 = vpack.c.bf16 %v304, %v304
      %308 = vrot.lane.b32.xlu0 %v255, 16
      %v309 = vpop.permute.xlu0 %308
      %310 = vrot.lane.b32.xlu0 %v256, 16
      %v311 = vpop.permute.xlu0 %310
      %vm312 = vcmask 130048
      %v313 = vsel %vm312, %v309, %v311
      %v316 = vsel %vm312, 0.0, %v309
      %s317 = scalar_lea.vmem %s1, 4
      %v318 = vld [vmem:[%s317] sm:$0xf]
      %v319 = vpack.c.bf16 %v316, %v316
      %v320 = vpack.c.bf16 %v313, %v313
      %vm321 = vcmask 64512
      %v323 = vsel %vm321, %v318, 0
      %vm325 = vcmask 1043456
      %v327 = vsel %vm325, %v319, 0
      %v330 = vsel %vm325, %v320, 0
      %332 = vmatprep.subr.bf16.mxu0 %v330
      %333 = vmatpush1.bf16.msra.mxu0 %v327
      %334 = vmatprep.subr.bf16.mxu0 0
      %335 = vmatpush1.bf16.msra.mxu0 0
      %336 = vmatprep.subr.bf16.mxu0 0
      %337 = vmatpush1.bf16.msra.mxu0 0
      %338 = vmatprep.subr.bf16.mxu0 0
      %339 = vmatpush1.bf16.msra.mxu0 0
      %340 = vmatprep.subr.bf16.mxu0 0
      %341 = vmatpush1.bf16.msra.mxu0 0
      %342 = vmatprep.subr.bf16.mxu0 0
      %343 = vmatpush1.bf16.msra.mxu0 0
      %344 = vmatprep.subr.bf16.mxu0 0
      %345 = vmatpush1.bf16.msra.mxu0 0
      %346 = vmatprep.subr.bf16.mxu0 0
      %347 = vmatpush1.bf16.msra.mxu0 0
      %348 = vmatprep.subr.bf16.mxu0 0
      %349 = vmatpush1.bf16.msra.mxu0 0
      %350 = vmatprep.subr.bf16.mxu0 0
      %351 = vmatpush1.bf16.msra.mxu0 0
      %352 = vmatprep.subr.bf16.mxu0 0
      %353 = vmatpush1.bf16.msra.mxu0 0
      %354 = vmatprep.subr.bf16.mxu0 0
      %355 = vmatpush1.bf16.msra.mxu0 0
      %356 = vmatprep.subr.bf16.mxu0 0
      %357 = vmatpush1.bf16.msra.mxu0 0
      %358 = vmatprep.subr.bf16.mxu0 0
      %359 = vmatpush1.bf16.msra.mxu0 0
      %360 = vmatprep.subr.bf16.mxu0 0
      %361 = vmatpush1.bf16.msra.mxu0 0
      %362 = vmatprep.subr.bf16.mxu0 0
      %363 = vmatpush1.bf16.msra.mxu0 0
      %364 = vmatprep.mubr.bf16.mxu0 0
      %365 = vmatmul.mubr.bf16.gmra.mrb[0].mxu0 %v323
      %v366 = vpop.f32.mrb[0].mxu0
      %v367 = vadd.f32 0.0, %v366
      %v368 = vpop.f32.mrb[0].mxu0
      %v369 = vadd.f32 0.0, %v368
      %v370 = vpop.f32.mrb[0].mxu0
      %v371 = vpop.f32.mrb[0].mxu0
      %372 = vdwg.mxu0
      %v374 = vsel %vm321, %v305, 0
      %v377 = vsel %vm325, %v306, 0
      %v380 = vsel %vm325, %v307, 0
      %382 = vmatprep.subr.bf16.mxu0 %v380
      %383 = vmatpush1.bf16.msra.mxu0 %v377
      %384 = vmatprep.subr.bf16.mxu0 0
      %385 = vmatpush1.bf16.msra.mxu0 0
      %386 = vmatprep.subr.bf16.mxu0 0
      %387 = vmatpush1.bf16.msra.mxu0 0
      %388 = vmatprep.subr.bf16.mxu0 0
      %389 = vmatpush1.bf16.msra.mxu0 0
      %390 = vmatprep.subr.bf16.mxu0 0
      %391 = vmatpush1.bf16.msra.mxu0 0
      %392 = vmatprep.subr.bf16.mxu0 0
      %393 = vmatpush1.bf16.msra.mxu0 0
      %394 = vmatprep.subr.bf16.mxu0 0
      %395 = vmatpush1.bf16.msra.mxu0 0
      %396 = vmatprep.subr.bf16.mxu0 0
      %397 = vmatpush1.bf16.msra.mxu0 0
      %398 = vmatprep.subr.bf16.mxu0 0
      %399 = vmatpush1.bf16.msra.mxu0 0
      %400 = vmatprep.subr.bf16.mxu0 0
      %401 = vmatpush1.bf16.msra.mxu0 0
      %402 = vmatprep.subr.bf16.mxu0 0
      %403 = vmatpush1.bf16.msra.mxu0 0
      %404 = vmatprep.subr.bf16.mxu0 0
      %405 = vmatpush1.bf16.msra.mxu0 0
      %406 = vmatprep.subr.bf16.mxu0 0
      %407 = vmatpush1.bf16.msra.mxu0 0
      %408 = vmatprep.subr.bf16.mxu0 0
      %409 = vmatpush1.bf16.msra.mxu0 0
      %410 = vmatprep.subr.bf16.mxu0 0
      %411 = vmatpush1.bf16.msra.mxu0 0
      %412 = vmatprep.subr.bf16.mxu0 0
      %413 = vmatpush1.bf16.msra.mxu0 0
      %414 = vmatprep.mubr.bf16.mxu0 0
      %415 = vmatmul.mubr.bf16.gmra.mrb[0].mxu0 %v374
      %v416 = vpop.f32.mrb[0].mxu0
      %v417 = vadd.f32 %v367, %v416
      %v418 = vpop.f32.mrb[0].mxu0
      %v419 = vadd.f32 %v369, %v418
      %v420 = vpop.f32.mrb[0].mxu0
      %v421 = vpop.f32.mrb[0].mxu0
      %422 = vdwg.mxu0
      %423 = vrot.lane.b32.xlu0 %v255, 15
      %v424 = vpop.permute.xlu0 %423
      %425 = vrot.lane.b32.xlu0 %v256, 15
      %v426 = vpop.permute.xlu0 %425
      %vm427 = vcmask 121856
      %v428 = vsel %vm427, %v424, %v426
      %v431 = vsel %vm427, 0.0, %v424
      %v432 = vsel %vm286, 1, 0
      %v433 = vsel %vm287, 1, 0
      %vm434 = vcmp.eq.s32.totalorder %v432, 1
      %vm435 = vcmp.eq.s32.totalorder %v433, 1
      %v436 = vsel %vm434, %v431, 0.0
      %v437 = vsel %vm435, %v428, 0.0
      %s438 = scalar_lea.vmem %s1, 8
      %v439 = vld [vmem:[%s438] sm:$0xf]
      %v440 = vpack.c.bf16 %v436, %v436
      %v441 = vpack.c.bf16 %v437, %v437
      %v443 = vsel %vm321, %v439, 0
      %v446 = vsel %vm325, %v440, 0
      %v449 = vsel %vm325, %v441, 0
      %451 = vmatprep.subr.bf16.mxu0 %v449
      %452 = vmatpush1.bf16.msra.mxu0 %v446
      %453 = vmatprep.subr.bf16.mxu0 0
      %454 = vmatpush1.bf16.msra.mxu0 0
      %455 = vmatprep.subr.bf16.mxu0 0
      %456 = vmatpush1.bf16.msra.mxu0 0
      %457 = vmatprep.subr.bf16.mxu0 0
      %458 = vmatpush1.bf16.msra.mxu0 0
      %459 = vmatprep.subr.bf16.mxu0 0
      %460 = vmatpush1.bf16.msra.mxu0 0
      %461 = vmatprep.subr.bf16.mxu0 0
      %462 = vmatpush1.bf16.msra.mxu0 0
      %463 = vmatprep.subr.bf16.mxu0 0
      %464 = vmatpush1.bf16.msra.mxu0 0
      %465 = vmatprep.subr.bf16.mxu0 0
      %466 = vmatpush1.bf16.msra.mxu0 0
      %467 = vmatprep.subr.bf16.mxu0 0
      %468 = vmatpush1.bf16.msra.mxu0 0
      %469 = vmatprep.subr.bf16.mxu0 0
      %470 = vmatpush1.bf16.msra.mxu0 0
      %471 = vmatprep.subr.bf16.mxu0 0
      %472 = vmatpush1.bf16.msra.mxu0 0
      %473 = vmatprep.subr.bf16.mxu0 0
      %474 = vmatpush1.bf16.msra.mxu0 0
      %475 = vmatprep.subr.bf16.mxu0 0
      %476 = vmatpush1.bf16.msra.mxu0 0
      %477 = vmatprep.subr.bf16.mxu0 0
      %478 = vmatpush1.bf16.msra.mxu0 0
      %479 = vmatprep.subr.bf16.mxu0 0
      %480 = vmatpush1.bf16.msra.mxu0 0
      %481 = vmatprep.subr.bf16.mxu0 0
      %482 = vmatpush1.bf16.msra.mxu0 0
      %483 = vmatprep.mubr.bf16.mxu0 0
      %484 = vmatmul.mubr.bf16.gmra.mrb[0].mxu0 %v443
      %v485 = vpop.f32.mrb[0].mxu0
      %v486 = vadd.f32 0.0, %v485
      %v487 = vpop.f32.mrb[0].mxu0
      %v488 = vadd.f32 0.0, %v487
      %v489 = vpop.f32.mrb[0].mxu0
      %v490 = vpop.f32.mrb[0].mxu0
      %491 = vdwg.mxu0
      %v492 = vadd.f32 %v417, %v486
      %v493 = vadd.f32 %v419, %v488
      %494 = vrot.lane.b32.xlu0 %v255, 1
      %v495 = vpop.permute.xlu0 %494
      %496 = vrot.lane.b32.xlu0 %v256, 1
      %v497 = vpop.permute.xlu0 %496
      %vm498 = vcmask 7168
      %v499 = vsel %vm498, %v495, %v497
      %v502 = vsel %vm498, 0.0, %v495
      %v503 = vsel %vm301, %v502, 0.0
      %v504 = vsel %vm302, %v499, 0.0
      %s505 = scalar_lea.vmem %s1, 12
      %v506 = vld [vmem:[%s505] sm:$0xf]
      %v507 = vpack.c.bf16 %v503, %v503
      %v508 = vpack.c.bf16 %v504, %v504
      %v510 = vsel %vm321, %v506, 0
      %v513 = vsel %vm325, %v507, 0
      %v516 = vsel %vm325, %v508, 0
      %518 = vmatprep.subr.bf16.mxu0 %v516
      %519 = vmatpush1.bf16.msra.mxu0 %v513
      %520 = vmatprep.subr.bf16.mxu0 0
      %521 = vmatpush1.bf16.msra.mxu0 0
      %522 = vmatprep.subr.bf16.mxu0 0
      %523 = vmatpush1.bf16.msra.mxu0 0
      %524 = vmatprep.subr.bf16.mxu0 0
      %525 = vmatpush1.bf16.msra.mxu0 0
      %526 = vmatprep.subr.bf16.mxu0 0
      %527 = vmatpush1.bf16.msra.mxu0 0
      %528 = vmatprep.subr.bf16.mxu0 0
      %529 = vmatpush1.bf16.msra.mxu0 0
      %530 = vmatprep.subr.bf16.mxu0 0
      %531 = vmatpush1.bf16.msra.mxu0 0
      %532 = vmatprep.subr.bf16.mxu0 0
      %533 = vmatpush1.bf16.msra.mxu0 0
      %534 = vmatprep.subr.bf16.mxu0 0
      %535 = vmatpush1.bf16.msra.mxu0 0
      %536 = vmatprep.subr.bf16.mxu0 0
      %537 = vmatpush1.bf16.msra.mxu0 0
      %538 = vmatprep.subr.bf16.mxu0 0
      %539 = vmatpush1.bf16.msra.mxu0 0
      %540 = vmatprep.subr.bf16.mxu0 0
      %541 = vmatpush1.bf16.msra.mxu0 0
      %542 = vmatprep.subr.bf16.mxu0 0
      %543 = vmatpush1.bf16.msra.mxu0 0
      %544 = vmatprep.subr.bf16.mxu0 0
      %545 = vmatpush1.bf16.msra.mxu0 0
      %546 = vmatprep.subr.bf16.mxu0 0
      %547 = vmatpush1.bf16.msra.mxu0 0
      %548 = vmatprep.subr.bf16.mxu0 0
      %549 = vmatpush1.bf16.msra.mxu0 0
      %550 = vmatprep.mubr.bf16.mxu0 0
      %551 = vmatmul.mubr.bf16.gmra.mrb[0].mxu0 %v510
      %v552 = vpop.f32.mrb[0].mxu0
      %v553 = vadd.f32 0.0, %v552
      %v554 = vpop.f32.mrb[0].mxu0
      %v555 = vadd.f32 0.0, %v554
      %v556 = vpop.f32.mrb[0].mxu0
      %v557 = vpop.f32.mrb[0].mxu0
      %558 = vdwg.mxu0
      %v559 = vadd.f32 %v492, %v553
      %v560 = vadd.f32 %v493, %v555
      %s561 = scalar_lea.vmem %s1, 16
      %v562 = vld [vmem:[%s561] sm:$0xf]
      %v563 = vpack.c.bf16 %v255, %v255
      %v564 = vpack.c.bf16 %v256, %v256
      %v566 = vsel %vm321, %v562, 0
      %v569 = vsel %vm325, %v563, 0
      %v572 = vsel %vm325, %v564, 0
      %574 = vmatprep.subr.bf16.mxu0 %v572
      %575 = vmatpush1.bf16.msra.mxu0 %v569
      %576 = vmatprep.subr.bf16.mxu0 0
      %577 = vmatpush1.bf16.msra.mxu0 0
      %578 = vmatprep.subr.bf16.mxu0 0
      %579 = vmatpush1.bf16.msra.mxu0 0
      %580 = vmatprep.subr.bf16.mxu0 0
      %581 = vmatpush1.bf16.msra.mxu0 0
      %582 = vmatprep.subr.bf16.mxu0 0
      %583 = vmatpush1.bf16.msra.mxu0 0
      %584 = vmatprep.subr.bf16.mxu0 0
      %585 = vmatpush1.bf16.msra.mxu0 0
      %586 = vmatprep.subr.bf16.mxu0 0
      %587 = vmatpush1.bf16.msra.mxu0 0
      %588 = vmatprep.subr.bf16.mxu0 0
      %589 = vmatpush1.bf16.msra.mxu0 0
      %590 = vmatprep.subr.bf16.mxu0 0
      %591 = vmatpush1.bf16.msra.mxu0 0
      %592 = vmatprep.subr.bf16.mxu0 0
      %593 = vmatpush1.bf16.msra.mxu0 0
      %594 = vmatprep.subr.bf16.mxu0 0
      %595 = vmatpush1.bf16.msra.mxu0 0
      %596 = vmatprep.subr.bf16.mxu0 0
      %597 = vmatpush1.bf16.msra.mxu0 0
      %598 = vmatprep.subr.bf16.mxu0 0
      %599 = vmatpush1.bf16.msra.mxu0 0
      %600 = vmatprep.subr.bf16.mxu0 0
      %601 = vmatpush1.bf16.msra.mxu0 0
      %602 = vmatprep.subr.bf16.mxu0 0
      %603 = vmatpush1.bf16.msra.mxu0 0
      %604 = vmatprep.subr.bf16.mxu0 0
      %605 = vmatpush1.bf16.msra.mxu0 0
      %606 = vmatprep.mubr.bf16.mxu0 0
      %607 = vmatmul.mubr.bf16.gmra.mrb[0].mxu0 %v566
      %v608 = vpop.f32.mrb[0].mxu0
      %v609 = vadd.f32 0.0, %v608
      %v610 = vpop.f32.mrb[0].mxu0
      %v611 = vadd.f32 0.0, %v610
      %v612 = vpop.f32.mrb[0].mxu0
      %v613 = vpop.f32.mrb[0].mxu0
      %614 = vdwg.mxu0
      %v615 = vadd.f32 %v559, %v609
      %v616 = vadd.f32 %v560, %v611
      %617 = vrot.lane.b32.xlu0 %v255, 127
      %v618 = vpop.permute.xlu0 %617
      %619 = vrot.lane.b32.xlu0 %v256, 127
      %v620 = vpop.permute.xlu0 %619
      %vm621 = vcmask 1039360
      %v622 = vsel %vm621, %v618, %v620
      %v625 = vsel %vm621, %v620, 0.0
      %v626 = vsel %vm434, %v622, 0.0
      %v627 = vsel %vm435, %v625, 0.0
      %s628 = scalar_lea.vmem %s1, 20
      %v629 = vld [vmem:[%s628] sm:$0xf]
      %v630 = vpack.c.bf16 %v626, %v626
      %v631 = vpack.c.bf16 %v627, %v627
      %v633 = vsel %vm321, %v629, 0
      %v636 = vsel %vm325, %v630, 0
      %v639 = vsel %vm325, %v631, 0
      %641 = vmatprep.subr.bf16.mxu0 %v639
      %642 = vmatpush1.bf16.msra.mxu0 %v636
      %643 = vmatprep.subr.bf16.mxu0 0
      %644 = vmatpush1.bf16.msra.mxu0 0
      %645 = vmatprep.subr.bf16.mxu0 0
      %646 = vmatpush1.bf16.msra.mxu0 0
      %647 = vmatprep.subr.bf16.mxu0 0
      %648 = vmatpush1.bf16.msra.mxu0 0
      %649 = vmatprep.subr.bf16.mxu0 0
      %650 = vmatpush1.bf16.msra.mxu0 0
      %651 = vmatprep.subr.bf16.mxu0 0
      %652 = vmatpush1.bf16.msra.mxu0 0
      %653 = vmatprep.subr.bf16.mxu0 0
      %654 = vmatpush1.bf16.msra.mxu0 0
      %655 = vmatprep.subr.bf16.mxu0 0
      %656 = vmatpush1.bf16.msra.mxu0 0
      %657 = vmatprep.subr.bf16.mxu0 0
      %658 = vmatpush1.bf16.msra.mxu0 0
      %659 = vmatprep.subr.bf16.mxu0 0
      %660 = vmatpush1.bf16.msra.mxu0 0
      %661 = vmatprep.subr.bf16.mxu0 0
      %662 = vmatpush1.bf16.msra.mxu0 0
      %663 = vmatprep.subr.bf16.mxu0 0
      %664 = vmatpush1.bf16.msra.mxu0 0
      %665 = vmatprep.subr.bf16.mxu0 0
      %666 = vmatpush1.bf16.msra.mxu0 0
      %667 = vmatprep.subr.bf16.mxu0 0
      %668 = vmatpush1.bf16.msra.mxu0 0
      %669 = vmatprep.subr.bf16.mxu0 0
      %670 = vmatpush1.bf16.msra.mxu0 0
      %671 = vmatprep.subr.bf16.mxu0 0
      %672 = vmatpush1.bf16.msra.mxu0 0
      %673 = vmatprep.mubr.bf16.mxu0 0
      %674 = vmatmul.mubr.bf16.gmra.mrb[0].mxu0 %v633
      %v675 = vpop.f32.mrb[0].mxu0
      %v676 = vadd.f32 0.0, %v675
      %v677 = vpop.f32.mrb[0].mxu0
      %v678 = vadd.f32 0.0, %v677
      %v679 = vpop.f32.mrb[0].mxu0
      %v680 = vpop.f32.mrb[0].mxu0
      %681 = vdwg.mxu0
      %v682 = vadd.f32 %v615, %v676
      %v683 = vadd.f32 %v616, %v678
      %684 = vrot.lane.b32.xlu0 %v255, 113
      %v685 = vpop.permute.xlu0 %684
      %686 = vrot.lane.b32.xlu0 %v256, 113
      %v687 = vpop.permute.xlu0 %686
      %vm688 = vcmask 924672
      %v689 = vsel %vm688, %v685, %v687
      %v692 = vsel %vm688, %v687, 0.0
      %v693 = vsel %vm301, %v689, 0.0
      %v694 = vsel %vm302, %v692, 0.0
      %s695 = scalar_lea.vmem %s1, 24
      %v696 = vld [vmem:[%s695] sm:$0xf]
      %v697 = vpack.c.bf16 %v693, %v693
      %v698 = vpack.c.bf16 %v694, %v694
      %v700 = vsel %vm321, %v696, 0
      %v703 = vsel %vm325, %v697, 0
      %v706 = vsel %vm325, %v698, 0
      %708 = vmatprep.subr.bf16.mxu0 %v706
      %709 = vmatpush1.bf16.msra.mxu0 %v703
      %710 = vmatprep.subr.bf16.mxu0 0
      %711 = vmatpush1.bf16.msra.mxu0 0
      %712 = vmatprep.subr.bf16.mxu0 0
      %713 = vmatpush1.bf16.msra.mxu0 0
      %714 = vmatprep.subr.bf16.mxu0 0
      %715 = vmatpush1.bf16.msra.mxu0 0
      %716 = vmatprep.subr.bf16.mxu0 0
      %717 = vmatpush1.bf16.msra.mxu0 0
      %718 = vmatprep.subr.bf16.mxu0 0
      %719 = vmatpush1.bf16.msra.mxu0 0
      %720 = vmatprep.subr.bf16.mxu0 0
      %721 = vmatpush1.bf16.msra.mxu0 0
      %722 = vmatprep.subr.bf16.mxu0 0
      %723 = vmatpush1.bf16.msra.mxu0 0
      %724 = vmatprep.subr.bf16.mxu0 0
      %725 = vmatpush1.bf16.msra.mxu0 0
      %726 = vmatprep.subr.bf16.mxu0 0
      %727 = vmatpush1.bf16.msra.mxu0 0
      %728 = vmatprep.subr.bf16.mxu0 0
      %729 = vmatpush1.bf16.msra.mxu0 0
      %730 = vmatprep.subr.bf16.mxu0 0
      %731 = vmatpush1.bf16.msra.mxu0 0
      %732 = vmatprep.subr.bf16.mxu0 0
      %733 = vmatpush1.bf16.msra.mxu0 0
      %734 = vmatprep.subr.bf16.mxu0 0
      %735 = vmatpush1.bf16.msra.mxu0 0
      %736 = vmatprep.subr.bf16.mxu0 0
      %737 = vmatpush1.bf16.msra.mxu0 0
      %738 = vmatprep.subr.bf16.mxu0 0
      %739 = vmatpush1.bf16.msra.mxu0 0
      %740 = vmatprep.mubr.bf16.mxu0 0
      %741 = vmatmul.mubr.bf16.gmra.mrb[0].mxu0 %v700
      %v742 = vpop.f32.mrb[0].mxu0
      %v743 = vadd.f32 0.0, %v742
      %v744 = vpop.f32.mrb[0].mxu0
      %v745 = vadd.f32 0.0, %v744
      %v746 = vpop.f32.mrb[0].mxu0
      %v747 = vpop.f32.mrb[0].mxu0
      %748 = vdwg.mxu0
      %v749 = vadd.f32 %v682, %v743
      %v750 = vadd.f32 %v683, %v745
      %751 = vrot.lane.b32.xlu0 %v255, 112
      %v752 = vpop.permute.xlu0 %751
      %753 = vrot.lane.b32.xlu0 %v256, 112
      %v754 = vpop.permute.xlu0 %753
      %vm755 = vcmask 916480
      %v756 = vsel %vm755, %v752, %v754
      %v759 = vsel %vm755, %v754, 0.0
      %s760 = scalar_lea.vmem %s1, 28
      %v761 = vld [vmem:[%s760] sm:$0xf]
      %v762 = vpack.c.bf16 %v756, %v756
      %v763 = vpack.c.bf16 %v759, %v759
      %v765 = vsel %vm321, %v761, 0
      %v768 = vsel %vm325, %v762, 0
      %v771 = vsel %vm325, %v763, 0
      %773 = vmatprep.subr.bf16.mxu0 %v771
      %774 = vmatpush1.bf16.msra.mxu0 %v768
      %775 = vmatprep.subr.bf16.mxu0 0
      %776 = vmatpush1.bf16.msra.mxu0 0
      %777 = vmatprep.subr.bf16.mxu0 0
      %778 = vmatpush1.bf16.msra.mxu0 0
      %779 = vmatprep.subr.bf16.mxu0 0
      %780 = vmatpush1.bf16.msra.mxu0 0
      %781 = vmatprep.subr.bf16.mxu0 0
      %782 = vmatpush1.bf16.msra.mxu0 0
      %783 = vmatprep.subr.bf16.mxu0 0
      %784 = vmatpush1.bf16.msra.mxu0 0
      %785 = vmatprep.subr.bf16.mxu0 0
      %786 = vmatpush1.bf16.msra.mxu0 0
      %787 = vmatprep.subr.bf16.mxu0 0
      %788 = vmatpush1.bf16.msra.mxu0 0
      %789 = vmatprep.subr.bf16.mxu0 0
      %790 = vmatpush1.bf16.msra.mxu0 0
      %791 = vmatprep.subr.bf16.mxu0 0
      %792 = vmatpush1.bf16.msra.mxu0 0
      %793 = vmatprep.subr.bf16.mxu0 0
      %794 = vmatpush1.bf16.msra.mxu0 0
      %795 = vmatprep.subr.bf16.mxu0 0
      %796 = vmatpush1.bf16.msra.mxu0 0
      %797 = vmatprep.subr.bf16.mxu0 0
      %798 = vmatpush1.bf16.msra.mxu0 0
      %799 = vmatprep.subr.bf16.mxu0 0
      %800 = vmatpush1.bf16.msra.mxu0 0
      %801 = vmatprep.subr.bf16.mxu0 0
      %802 = vmatpush1.bf16.msra.mxu0 0
      %803 = vmatprep.subr.bf16.mxu0 0
      %804 = vmatpush1.bf16.msra.mxu0 0
      %805 = vmatprep.mubr.bf16.mxu0 0
      %806 = vmatmul.mubr.bf16.gmra.mrb[0].mxu0 %v765
      %v807 = vpop.f32.mrb[0].mxu0
      %v808 = vadd.f32 0.0, %v807
      %v809 = vpop.f32.mrb[0].mxu0
      %v810 = vadd.f32 0.0, %v809
      %v811 = vpop.f32.mrb[0].mxu0
      %v812 = vpop.f32.mrb[0].mxu0
      %813 = vdwg.mxu0
      %v814 = vadd.f32 %v749, %v808
      %v815 = vadd.f32 %v750, %v810
      %816 = vrot.lane.b32.xlu0 %v255, 111
      %v817 = vpop.permute.xlu0 %816
      %818 = vrot.lane.b32.xlu0 %v256, 111
      %v819 = vpop.permute.xlu0 %818
      %vm820 = vcmask 908288
      %v821 = vsel %vm820, %v817, %v819
      %v824 = vsel %vm820, %v819, 0.0
      %v825 = vsel %vm434, %v821, 0.0
      %v826 = vsel %vm435, %v824, 0.0
      %s827 = scalar_lea.vmem %s1, 32
      %v828 = vld [vmem:[%s827] sm:$0xf]
      %v829 = vpack.c.bf16 %v825, %v825
      %v830 = vpack.c.bf16 %v826, %v826
      %v832 = vsel %vm321, %v828, 0
      %v835 = vsel %vm325, %v829, 0
      %v838 = vsel %vm325, %v830, 0
      %840 = vmatprep.subr.bf16.mxu0 %v838
      %841 = vmatpush1.bf16.msra.mxu0 %v835
      %842 = vmatprep.subr.bf16.mxu0 0
      %843 = vmatpush1.bf16.msra.mxu0 0
      %844 = vmatprep.subr.bf16.mxu0 0
      %845 = vmatpush1.bf16.msra.mxu0 0
      %846 = vmatprep.subr.bf16.mxu0 0
      %847 = vmatpush1.bf16.msra.mxu0 0
      %848 = vmatprep.subr.bf16.mxu0 0
      %849 = vmatpush1.bf16.msra.mxu0 0
      %850 = vmatprep.subr.bf16.mxu0 0
      %851 = vmatpush1.bf16.msra.mxu0 0
      %852 = vmatprep.subr.bf16.mxu0 0
      %853 = vmatpush1.bf16.msra.mxu0 0
      %854 = vmatprep.subr.bf16.mxu0 0
      %855 = vmatpush1.bf16.msra.mxu0 0
      %856 = vmatprep.subr.bf16.mxu0 0
      %857 = vmatpush1.bf16.msra.mxu0 0
      %858 = vmatprep.subr.bf16.mxu0 0
      %859 = vmatpush1.bf16.msra.mxu0 0
      %860 = vmatprep.subr.bf16.mxu0 0
      %861 = vmatpush1.bf16.msra.mxu0 0
      %862 = vmatprep.subr.bf16.mxu0 0
      %863 = vmatpush1.bf16.msra.mxu0 0
      %864 = vmatprep.subr.bf16.mxu0 0
      %865 = vmatpush1.bf16.msra.mxu0 0
      %866 = vmatprep.subr.bf16.mxu0 0
      %867 = vmatpush1.bf16.msra.mxu0 0
      %868 = vmatprep.subr.bf16.mxu0 0
      %869 = vmatpush1.bf16.msra.mxu0 0
      %870 = vmatprep.subr.bf16.mxu0 0
      %871 = vmatpush1.bf16.msra.mxu0 0
      %872 = vmatprep.mubr.bf16.mxu0 0
      %873 = vmatmul.mubr.bf16.gmra.mrb[0].mxu0 %v832
      %v874 = vpop.f32.mrb[0].mxu0
      %v875 = vadd.f32 0.0, %v874
      %v876 = vpop.f32.mrb[0].mxu0
      %v877 = vadd.f32 0.0, %v876
      %v878 = vpop.f32.mrb[0].mxu0
      %v879 = vpop.f32.mrb[0].mxu0
      %880 = vdwg.mxu0
      %v881 = vadd.f32 %v814, %v875
      %v882 = vadd.f32 %v815, %v877
      %883 = vst [vmem:[%s231] sm:$0xff] %v881
      %884 = vst [vmem:[%s231 + $0x8] sm:$0xff] %v882
      %v885 = vadd.f32 %v881, %v882
      %886 = vadd.xlane.f32.xlu0 %v885
      %v887 = vpop.xlane.xlu0 %886
      %v888 = vmul.f32 %v881, %v881
      %v889 = vmul.f32 %v882, %v882
      %v890 = vadd.f32 %v888, %v889
      %891 = vadd.xlane.f32.xlu0 %v890
      %v892 = vpop.xlane.xlu0 %891
      %v893 = vsel %vm498, %v887, %v892
      %vm894 = vcmask 15360
      %895 = vst.msk [vmem:[%s235] sm:$0xff] %vm894, %v893
      %p896 = scmp.lt.s32.totalorder %s17, 1
      %s897 = scalar_select %p896, %s17, 1
      %s898 = smul.addr %s897, 2
      %s899 = smul.addr %s898, 8
      %s900 = scalar_lea.vmem %s4, %s899
      %p901 = scmp.lt.s32.totalorder %s17, 1
      %s902 = scalar_select %p901, %s17, 1
      %s903 = smul.addr %s902, 8
      %s904 = scalar_lea.vmem %s5, %s903
      // Predicated region
      $region37: #{downblock_forward.4} parent=35 // pred_check
        %p905 = pneg %p124
      $region38: #{downblock_forward.4} parent=35 // pred_check_branch
        %907 = sbr.rel (%p905) target = $region40
      $region39: #{downblock_forward.4} parent=35 // pred_region
        _
      $region40: #{downblock_forward.4} parent=35 // pred_fallthru
        _
      // Predicated region
      $region41: #{downblock_forward.4} parent=35 // pred_check
        %p908 = pneg %p150
      $region42: #{downblock_forward.4} parent=35 // pred_check_branch
        %910 = sbr.rel (%p908) target = $region44
      $region43: #{downblock_forward.4} parent=35 // pred_region
        _
      $region44: #{downblock_forward.4} parent=35 // pred_fallthru
        _
    $region36: #{downblock_forward.4} parent=5 // pred_fallthru
      _
    %p911 = scmp.le.s32.totalorder 2, %s12
    // Predicated region
    $region45: #{downblock_forward.4} parent=5 // pred_check
      %p912 = pneg %p911
    $region46: #{downblock_forward.4} parent=5 // pred_check_branch
      %914 = sbr.rel (%p912) target = $region48
    $region47: #{downblock_forward.4} parent=5 // pred_region
      %s915 = ssub.s32 %s12, 2
      // Predicated region
      $region49: #{downblock_forward.4} parent=47 // pred_check
        %p916 = pneg %p130
      $region50: #{downblock_forward.4} parent=47 // pred_check_branch
        %918 = sbr.rel (%p916) target = $region52
      $region51: #{downblock_forward.4} parent=47 // pred_region
        %p919 = scmp.lt.s32.totalorder %s18, 1
        %s920 = scalar_select %p919, %s18, 1
        %s921 = smul.addr %s920, 2
        %s922 = smul.addr %s921, 8
        %s923 = scalar_lea.vmem %s4, %s922
      $region52: #{downblock_forward.4} parent=47 // pred_fallthru
        _
      // Predicated region
      $region53: #{downblock_forward.4} parent=47 // pred_check
        %p924 = pneg %p156
      $region54: #{downblock_forward.4} parent=47 // pred_check_branch
        %926 = sbr.rel (%p924) target = $region56
      $region55: #{downblock_forward.4} parent=47 // pred_region
        %p927 = scmp.lt.s32.totalorder %s18, 1
        %s928 = scalar_select %p927, %s18, 1
        %s929 = smul.addr %s928, 8
        %s930 = scalar_lea.vmem %s5, %s929
      $region56: #{downblock_forward.4} parent=47 // pred_fallthru
        _
    $region48: #{downblock_forward.4} parent=5 // pred_fallthru
      _
  $region6: #{downblock_forward.4} parent=0 // loop_footer
    %s16 = sadd.s32 1, %s12
  $region7: #{downblock_forward.4} parent=0 // loop_footer_branch
    %11 = sbr.rel target = $region3
  $region8: #{downblock_forward.4} parent=0 // loop_exit
    _

// kernel: downblock_forward.3
$region0: #{downblock_forward.3}
  #allocation0 [shape = 'u32[]', space=smem, size = 0x4, offset = 0x4, fixed_abs, tag = 'smem constant byte address 0x4 - core index']
  #allocation1 [shape = 'u32[144,128]{1,0:T(1,128)}', space=vmem, size = 0x12000, scoped, tag = 'internal scratch']
  %s0 = inlined_call_operand.vmem [shape: f32[2,4,256], index: 0, kind: input, shape index: {}]
  %s1 = inlined_call_operand.vmem [shape: bf16[9,8,4], index: 1, kind: input, shape index: {}]
  %s2 = inlined_call_operand.vmem [shape: f32[4,1], index: 2, kind: input, shape index: {}]
  %s3 = inlined_call_operand.vmem [shape: f32[4,1], index: 3, kind: input, shape index: {}]
  %s4 = inlined_call_operand.vmem [shape: f32[2,8,256], index: 4, kind: output, shape index: {0}]
  %s5 = inlined_call_operand.vmem [shape: f32[2,8,2], index: 5, kind: output, shape index: {1}]
  %6 = xla_tuple %s4, %s5
  %s7 = sld [smem:[#allocation0]]
  $region57: #{downblock_forward.3} parent=0
    _
  %s9 = ssub.s32 1, %s7
  %s10 = scalar_select 0, %s9, %s7
  loop: start=0, step=1, limit=4
  $region2: #{downblock_forward.3} parent=0 // loop_pre_header
    _
  $region3: #{downblock_forward.3} parent=0 // loop_header
    %s12 = sphi 0, %s16
    %p13 = scmp.ge.s32.totalorder %s12, 4
    %s22 = sphi 0, %s24
    %s25 = sphi 0, %s22
    %s26 = sphi 0, %s25
    %s42 = sphi 0, %s26
    %s46 = sphi 0, %s46
    %s48 = sphi 0, %s46
    %s49 = sphi 0, %s48
    %s63 = sphi 0, %s49
    %s67 = sphi 0, %s67
    %s69 = sphi 0, %s67
    %s70 = sphi 0, %s69
    %s84 = sphi 0, %s70
    %s88 = sphi 0, %s88
    %s90 = sphi 0, %s88
    %s91 = sphi 0, %s90
    %s105 = sphi 0, %s91
    %s111 = sphi 0, %s113
    %s114 = sphi 0, %s111
    %s115 = sphi 0, %s114
    %s131 = sphi 0, %s115
    %s137 = sphi 0, %s139
    %s140 = sphi 0, %s137
    %s141 = sphi 0, %s140
    %s157 = sphi 0, %s141
  $region4: #{downblock_forward.3} parent=0 // loop_header_branch
    %15 = sbr.rel (%p13) target = $region8
  $region5: #{downblock_forward.3} parent=0 // loop_body
    %s17 = ssub.s32 %s12, 1
    %s18 = ssub.s32 %s12, 2
    %s19 = sadd.s32 %s12, 1
    %s20 = ssub.s32 %s12, %s19
    %p21 = scmp.eq.s32.totalorder %s20, 0
    %s23 = sadd.s32 %s22, 1
    %s24 = scalar_select %p21, %s22, %s23
    %p27 = pneg %p21
    %p28 = scmp.eq.s32.totalorder %s12, 1
    %p29 = por %p27, %p28
    %p30 = scmp.ne.s32.totalorder %s22, %s25
    %p31 = scmp.eq.s32.totalorder %s12, 0
    %p32 = por %p30, %p31
    %p33 = scmp.ne.s32.totalorder %s22, %s25
    %p34 = scmp.eq.s32.totalorder %s17, 1
    %p35 = por %p33, %p34
    %p36 = scmp.ne.s32.totalorder %s25, %s26
    %p37 = scmp.eq.s32.totalorder %s17, 0
    %p38 = por %p36, %p37
    %p39 = scmp.ne.s32.totalorder %s25, %s26
    %p40 = scmp.eq.s32.totalorder %s18, 1
    %p41 = por %p39, %p40
    %p43 = scmp.ne.s32.totalorder %s26, %s42
    %p44 = scmp.eq.s32.totalorder %s18, 0
    %p45 = por %p43, %p44
    %s47 = sadd.s32 %s46, 1
    %p50 = scmp.eq.s32.totalorder %s12, 1
    %p51 = scmp.ne.s32.totalorder %s46, %s48
    %p52 = scmp.eq.s32.totalorder %s12, 0
    %p53 = por %p51, %p52
    %p54 = scmp.ne.s32.totalorder %s46, %s48
    %p55 = scmp.eq.s32.totalorder %s17, 1
    %p56 = por %p54, %p55
    %p57 = scmp.ne.s32.totalorder %s48, %s49
    %p58 = scmp.eq.s32.totalorder %s17, 0
    %p59 = por %p57, %p58
    %p60 = scmp.ne.s32.totalorder %s48, %s49
    %p61 = scmp.eq.s32.totalorder %s18, 1
    %p62 = por %p60, %p61
    %p64 = scmp.ne.s32.totalorder %s49, %s63
    %p65 = scmp.eq.s32.totalorder %s18, 0
    %p66 = por %p64, %p65
    %s68 = sadd.s32 %s67, 1
    %p71 = scmp.eq.s32.totalorder %s12, 1
    %p72 = scmp.ne.s32.totalorder %s67, %s69
    %p73 = scmp.eq.s32.totalorder %s12, 0
    %p74 = por %p72, %p73
    %p75 = scmp.ne.s32.totalorder %s67, %s69
    %p76 = scmp.eq.s32.totalorder %s17, 1
    %p77 = por %p75, %p76
    %p78 = scmp.ne.s32.totalorder %s69, %s70
    %p79 = scmp.eq.s32.totalorder %s17, 0
    %p80 = por %p78, %p79
    %p81 = scmp.ne.s32.totalorder %s69, %s70
    %p82 = scmp.eq.s32.totalorder %s18, 1
    %p83 = por %p81, %p82
    %p85 = scmp.ne.s32.totalorder %s70, %s84
    %p86 = scmp.eq.s32.totalorder %s18, 0
    %p87 = por %p85, %p86
    %s89 = sadd.s32 %s88, 1
    %p92 = scmp.eq.s32.totalorder %s12, 1
    %p93 = scmp.ne.s32.totalorder %s88, %s90
    %p94 = scmp.eq.s32.totalorder %s12, 0
    %p95 = por %p93, %p94
    %p96 = scmp.ne.s32.totalorder %s88, %s90
    %p97 = scmp.eq.s32.totalorder %s17, 1
    %p98 = por %p96, %p97
    %p99 = scmp.ne.s32.totalorder %s90, %s91
    %p100 = scmp.eq.s32.totalorder %s17, 0
    %p101 = por %p99, %p100
    %p102 = scmp.ne.s32.totalorder %s90, %s91
    %p103 = scmp.eq.s32.totalorder %s18, 1
    %p104 = por %p102, %p103
    %p106 = scmp.ne.s32.totalorder %s91, %s105
    %p107 = scmp.eq.s32.totalorder %s18, 0
    %p108 = por %p106, %p107
    %s109 = ssub.s32 %s12, %s19
    %p110 = scmp.eq.s32.totalorder %s109, 0
    %s112 = sadd.s32 %s111, 1
    %s113 = scalar_select %p110, %s111, %s112
    %p116 = pneg %p110
    %p117 = scmp.eq.s32.totalorder %s12, 1
    %p118 = por %p116, %p117
    %p119 = scmp.ne.s32.totalorder %s111, %s114
    %p120 = scmp.eq.s32.totalorder %s12, 0
    %p121 = por %p119, %p120
    %p122 = scmp.ne.s32.totalorder %s111, %s114
    %p123 = scmp.eq.s32.totalorder %s17, 1
    %p124 = por %p122, %p123
    %p125 = scmp.ne.s32.totalorder %s114, %s115
    %p126 = scmp.eq.s32.totalorder %s17, 0
    %p127 = por %p125, %p126
    %p128 = scmp.ne.s32.totalorder %s114, %s115
    %p129 = scmp.eq.s32.totalorder %s18, 1
    %p130 = por %p128, %p129
    %p132 = scmp.ne.s32.totalorder %s115, %s131
    %p133 = scmp.eq.s32.totalorder %s18, 0
    %p134 = por %p132, %p133
    %s135 = ssub.s32 %s12, %s19
    %p136 = scmp.eq.s32.totalorder %s135, 0
    %s138 = sadd.s32 %s137, 1
    %s139 = scalar_select %p136, %s137, %s138
    %p142 = pneg %p136
    %p143 = scmp.eq.s32.totalorder %s12, 1
    %p144 = por %p142, %p143
    %p145 = scmp.ne.s32.totalorder %s137, %s140
    %p146 = scmp.eq.s32.totalorder %s12, 0
    %p147 = por %p145, %p146
    %p148 = scmp.ne.s32.totalorder %s137, %s140
    %p149 = scmp.eq.s32.totalorder %s17, 1
    %p150 = por %p148, %p149
    %p151 = scmp.ne.s32.totalorder %s140, %s141
    %p152 = scmp.eq.s32.totalorder %s17, 0
    %p153 = por %p151, %p152
    %p154 = scmp.ne.s32.totalorder %s140, %s141
    %p155 = scmp.eq.s32.totalorder %s18, 1
    %p156 = por %p154, %p155
    %p158 = scmp.ne.s32.totalorder %s141, %s157
    %p159 = scmp.eq.s32.totalorder %s18, 0
    %p160 = por %p158, %p159
    %p161 = scmp.le.s32.totalorder 1, %s12
    %p162 = scmp.lt.s32.totalorder %s12, 3
    %p163 = pnand %p161, %p162
    %p164 = pneg %p163
    // Predicated region
    $region9: #{downblock_forward.3} parent=5 // pred_check
      _
    $region10: #{downblock_forward.3} parent=5 // pred_check_branch
      %166 = sbr.rel (%p163) target = $region12
    $region11: #{downblock_forward.3} parent=5 // pred_region
      %s167 = ssub.s32 %s12, 1
      // Predicated region
      $region13: #{downblock_forward.3} parent=11 // pred_check
        %p168 = pneg %p59
      $region14: #{downblock_forward.3} parent=11 // pred_check_branch
        %170 = sbr.rel (%p168) target = $region16
      $region15: #{downblock_forward.3} parent=11 // pred_region
        _
      $region16: #{downblock_forward.3} parent=11 // pred_fallthru
        _
      // Predicated region
      $region17: #{downblock_forward.3} parent=11 // pred_check
        %p171 = pneg %p80
      $region18: #{downblock_forward.3} parent=11 // pred_check_branch
        %173 = sbr.rel (%p171) target = $region20
      $region19: #{downblock_forward.3} parent=11 // pred_region
        _
      $region20: #{downblock_forward.3} parent=11 // pred_fallthru
        _
      // Predicated region
      $region21: #{downblock_forward.3} parent=11 // pred_check
        %p174 = pneg %p101
      $region22: #{downblock_forward.3} parent=11 // pred_check_branch
        %176 = sbr.rel (%p174) target = $region24
      $region23: #{downblock_forward.3} parent=11 // pred_region
        _
      $region24: #{downblock_forward.3} parent=11 // pred_fallthru
        _
    $region12: #{downblock_forward.3} parent=5 // pred_fallthru
      _
    %p177 = scmp.lt.s32.totalorder %s12, 2
    // Predicated region
    $region25: #{downblock_forward.3} parent=5 // pred_check
      %p178 = pneg %p177
    $region26: #{downblock_forward.3} parent=5 // pred_check_branch
      %180 = sbr.rel (%p178) target = $region28
    $region27: #{downblock_forward.3} parent=5 // pred_region
      // Predicated region
      $region29: #{downblock_forward.3} parent=27 // pred_check
        %p181 = pneg %p32
      $region30: #{downblock_forward.3} parent=27 // pred_check_branch
        %183 = sbr.rel (%p181) target = $region32
      $region31: #{downblock_forward.3} parent=27 // pred_region
        %p184 = scmp.lt.s32.totalorder %s12, 1
        %s185 = scalar_select %p184, %s12, 1
        %s186 = smul.addr %s185, 2
        %s187 = smul.addr %s186, 4
        %s188 = scalar_lea.vmem %s0, %s187
      $region32: #{downblock_forward.3} parent=27 // pred_fallthru
        _
    $region28: #{downblock_forward.3} parent=5 // pred_fallthru
      _
    %p189 = scmp.le.s32.totalorder 1, %s12
    %p190 = scmp.lt.s32.totalorder %s12, 3
    %p191 = pnand %p189, %p190
    %p192 = pneg %p191
    // Predicated region
    $region33: #{downblock_forward.3} parent=5 // pred_check
      _
    $region34: #{downblock_forward.3} parent=5 // pred_check_branch
      %194 = sbr.rel (%p191) target = $region36
    $region35: #{downblock_forward.3} parent=5 // pred_region
      %s195 = ssub.s32 %s12, 1
      %p196 = scmp.lt.s32.totalorder %s17, 1
      %s197 = scalar_select %p196, %s17, 1
      %s198 = smul.addr %s197, 2
      %s199 = smul.addr %s198, 4
      %s200 = scalar_lea.vmem %s0, %s199
      %p201 = pneg %p38
      %p202 = pneg %p35
      %p203 = pneg %p59
      %p204 = pneg %p56
      %p205 = pneg %p80
      %p206 = pneg %p77
      %p207 = pneg %p101
      %p208 = pneg %p98
      %p209 = pneg %p127
      %p210 = pneg %p124
      %p211 = scmp.lt.s32.totalorder %s17, 1
      %s212 = scalar_select %p211, %s17, 1
      %s213 = smul.addr %s212, 2
      %s214 = smul.addr %s213, 8
      %s215 = scalar_lea.vmem %s4, %s214
      %p216 = pneg %p153
      %p217 = pneg %p150
      %p218 = scmp.lt.s32.totalorder %s17, 1
      %s219 = scalar_select %p218, %s17, 1
      %s220 = smul.addr %s219, 8
      %s221 = scalar_lea.vmem %s5, %s220
      %p222 = scmp.lt.s32.totalorder %s17, 1
      %s223 = scalar_select %p222, %s17, 1
      %s224 = smul.addr %s223, 2
      %s225 = smul.addr %s224, 4
      %s226 = scalar_lea.vmem %s0, %s225
      %p227 = scmp.lt.s32.totalorder %s17, 1
      %s228 = scalar_select %p227, %s17, 1
      %s229 = smul.addr %s228, 2
      %s230 = smul.addr %s229, 8
      %s231 = scalar_lea.vmem %s4, %s230
      %p232 = scmp.lt.s32.totalorder %s17, 1
      %s233 = scalar_select %p232, %s17, 1
      %s234 = smul.addr %s233, 8
      %s235 = scalar_lea.vmem %s5, %s234
      %v237 = vld [vmem:[%s226] sm:$0xff]
      %v238 = vlaneseq
      %v239 = vand.u32 %v238, 127
      %v240 = vadd.s32 %v239, 128
      %vm241 = vcmp.lt.s32.totalorder %v239, 0
      %v242 = vsub.s32 0, %v239
      %v243 = vsel %vm241, %v242, %v239
      %v244 = vshrl.u32 %v243, 4
      %v245 = vand.u32 %v243, 15
      %v246 = vsub.s32 0, %v245
      %v247 = vsel %vm241, %v246, %v245
      %vm248 = vcmp.lt.s32.totalorder %v240, 0
      %v249 = vsub.s32 0, %v240
      %v250 = vsel %vm248, %v249, %v240
      %v251 = vshrl.u32 %v250, 4
      %v252 = vand.u32 %v250, 15
      %v253 = vsub.s32 0, %v252
      %v254 = vsel %vm248, %v253, %v252
      %vm255 = vcmp.ne.s32.totalorder %v247, 0
      %vm256 = vcmp.ne.s32.totalorder %v254, 0
      %vm257 = vcmp.lt.s32.totalorder %v247, 0
      %vm258 = vcmp.lt.s32.totalorder %v254, 0
      %vm259 = vmand %vm257, %vm255
      %vm260 = vmand %vm258, %vm256
      %v261 = vadd.s32 %v247, 16
      %v262 = vadd.s32 %v254, 16
      %v263 = vsel %vm259, %v261, %v247
      %v264 = vsel %vm260, %v262, %v254
      %vm265 = vcmp.ge.s32.totalorder %v263, 1
      %vm266 = vcmp.ge.s32.totalorder %v264, 1
      %vm267 = vcmp.lt.s32.totalorder %v263, 15
      %vm268 = vcmp.lt.s32.totalorder %v264, 15
      %v270 = vcombine.high %v237, %v237
      %271 = vrot.lane.b32.xlu0 %v237, 17
      %v272 = vpop.permute.xlu0 %271
      %273 = vrot.lane.b32.xlu0 %v270, 17
      %v274 = vpop.permute.xlu0 %273
      %vm275 = vcmask 138240
      %v276 = vsel %vm275, %v272, %v274
      %v279 = vsel %vm275, 0.0, %v272
      %v280 = vsel %vm265, 1, 0
      %v281 = vsel %vm266, 1, 0
      %vm282 = vcmp.eq.s32.totalorder %v280, 1
      %vm283 = vcmp.eq.s32.totalorder %v281, 1
      %v284 = vsel %vm282, %v279, 0.0
      %v285 = vsel %vm283, %v276, 0.0
      %v286 = vld [vmem:[%s1] sm:$0xf]
      %v287 = vpack.c.bf16 %v284, %v284
      %v288 = vpack.c.bf16 %v285, %v285
      %289 = vrot.lane.b32.xlu0 %v237, 16
      %v290 = vpop.permute.xlu0 %289
      %291 = vrot.lane.b32.xlu0 %v270, 16
      %v292 = vpop.permute.xlu0 %291
      %vm293 = vcmask 130048
      %v294 = vsel %vm293, %v290, %v292
      %v297 = vsel %vm293, 0.0, %v290
      %s298 = scalar_lea.vmem %s1, 4
      %v299 = vld [vmem:[%s298] sm:$0xf]
      %v300 = vpack.c.bf16 %v297, %v297
      %v301 = vpack.c.bf16 %v294, %v294
      %vm302 = vcmask 31744
      %v304 = vsel %vm302, %v299, 0
      %vm306 = vcmask 1041408
      %v308 = vsel %vm306, %v300, 0
      %v311 = vsel %vm306, %v301, 0
      %313 = vmatprep.subr.bf16.mxu0 %v311
      %314 = vmatpush1.bf16.msra.mxu0 %v308
      %315 = vmatprep.subr.bf16.mxu0 0
      %316 = vmatpush1.bf16.msra.mxu0 0
      %317 = vmatprep.subr.bf16.mxu0 0
      %318 = vmatpush1.bf16.msra.mxu0 0
      %319 = vmatprep.subr.bf16.mxu0 0
      %320 = vmatpush1.bf16.msra.mxu0 0
      %321 = vmatprep.subr.bf16.mxu0 0
      %322 = vmatpush1.bf16.msra.mxu0 0
      %323 = vmatprep.subr.bf16.mxu0 0
      %324 = vmatpush1.bf16.msra.mxu0 0
      %325 = vmatprep.subr.bf16.mxu0 0
      %326 = vmatpush1.bf16.msra.mxu0 0
      %327 = vmatprep.subr.bf16.mxu0 0
      %328 = vmatpush1.bf16.msra.mxu0 0
      %329 = vmatprep.subr.bf16.mxu0 0
      %330 = vmatpush1.bf16.msra.mxu0 0
      %331 = vmatprep.subr.bf16.mxu0 0
      %332 = vmatpush1.bf16.msra.mxu0 0
      %333 = vmatprep.subr.bf16.mxu0 0
      %334 = vmatpush1.bf16.msra.mxu0 0
      %335 = vmatprep.subr.bf16.mxu0 0
      %336 = vmatpush1.bf16.msra.mxu0 0
      %337 = vmatprep.subr.bf16.mxu0 0
      %338 = vmatpush1.bf16.msra.mxu0 0
      %339 = vmatprep.subr.bf16.mxu0 0
      %340 = vmatpush1.bf16.msra.mxu0 0
      %341 = vmatprep.subr.bf16.mxu0 0
      %342 = vmatpush1.bf16.msra.mxu0 0
      %343 = vmatprep.subr.bf16.mxu0 0
      %344 = vmatpush1.bf16.msra.mxu0 0
      %345 = vmatprep.mubr.bf16.mxu0 0
      %346 = vmatmul.mubr.bf16.gmra.mrb[0].mxu0 %v304
      %v347 = vpop.f32.mrb[0].mxu0
      %v348 = vadd.f32 0.0, %v347
      %v349 = vpop.f32.mrb[0].mxu0
      %v350 = vadd.f32 0.0, %v349
      %v351 = vpop.f32.mrb[0].mxu0
      %v352 = vpop.f32.mrb[0].mxu0
      %353 = vdwg.mxu0
      %v355 = vsel %vm302, %v286, 0
      %v358 = vsel %vm306, %v287, 0
      %v361 = vsel %vm306, %v288, 0
      %363 = vmatprep.subr.bf16.mxu0 %v361
      %364 = vmatpush1.bf16.msra.mxu0 %v358
      %365 = vmatprep.subr.bf16.mxu0 0
      %366 = vmatpush1.bf16.msra.mxu0 0
      %367 = vmatprep.subr.bf16.mxu0 0
      %368 = vmatpush1.bf16.msra.mxu0 0
      %369 = vmatprep.subr.bf16.mxu0 0
      %370 = vmatpush1.bf16.msra.mxu0 0
      %371 = vmatprep.subr.bf16.mxu0 0
      %372 = vmatpush1.bf16.msra.mxu0 0
      %373 = vmatprep.subr.bf16.mxu0 0
      %374 = vmatpush1.bf16.msra.mxu0 0
      %375 = vmatprep.subr.bf16.mxu0 0
      %376 = vmatpush1.bf16.msra.mxu0 0
      %377 = vmatprep.subr.bf16.mxu0 0
      %378 = vmatpush1.bf16.msra.mxu0 0
      %379 = vmatprep.subr.bf16.mxu0 0
      %380 = vmatpush1.bf16.msra.mxu0 0
      %381 = vmatprep.subr.bf16.mxu0 0
      %382 = vmatpush1.bf16.msra.mxu0 0
      %383 = vmatprep.subr.bf16.mxu0 0
      %384 = vmatpush1.bf16.msra.mxu0 0
      %385 = vmatprep.subr.bf16.mxu0 0
      %386 = vmatpush1.bf16.msra.mxu0 0
      %387 = vmatprep.subr.bf16.mxu0 0
      %388 = vmatpush1.bf16.msra.mxu0 0
      %389 = vmatprep.subr.bf16.mxu0 0
      %390 = vmatpush1.bf16.msra.mxu0 0
      %391 = vmatprep.subr.bf16.mxu0 0
      %392 = vmatpush1.bf16.msra.mxu0 0
      %393 = vmatprep.subr.bf16.mxu0 0
      %394 = vmatpush1.bf16.msra.mxu0 0
      %395 = vmatprep.mubr.bf16.mxu0 0
      %396 = vmatmul.mubr.bf16.gmra.mrb[0].mxu0 %v355
      %v397 = vpop.f32.mrb[0].mxu0
      %v398 = vadd.f32 %v348, %v397
      %v399 = vpop.f32.mrb[0].mxu0
      %v400 = vadd.f32 %v350, %v399
      %v401 = vpop.f32.mrb[0].mxu0
      %v402 = vpop.f32.mrb[0].mxu0
      %403 = vdwg.mxu0
      %404 = vrot.lane.b32.xlu0 %v237, 15
      %v405 = vpop.permute.xlu0 %404
      %406 = vrot.lane.b32.xlu0 %v270, 15
      %v407 = vpop.permute.xlu0 %406
      %vm408 = vcmask 121856
      %v409 = vsel %vm408, %v405, %v407
      %v412 = vsel %vm408, 0.0, %v405
      %v413 = vsel %vm267, 1, 0
      %v414 = vsel %vm268, 1, 0
      %vm415 = vcmp.eq.s32.totalorder %v413, 1
      %vm416 = vcmp.eq.s32.totalorder %v414, 1
      %v417 = vsel %vm415, %v412, 0.0
      %v418 = vsel %vm416, %v409, 0.0
      %s419 = scalar_lea.vmem %s1, 8
      %v420 = vld [vmem:[%s419] sm:$0xf]
      %v421 = vpack.c.bf16 %v417, %v417
      %v422 = vpack.c.bf16 %v418, %v418
      %v424 = vsel %vm302, %v420, 0
      %v427 = vsel %vm306, %v421, 0
      %v430 = vsel %vm306, %v422, 0
      %432 = vmatprep.subr.bf16.mxu0 %v430
      %433 = vmatpush1.bf16.msra.mxu0 %v427
      %434 = vmatprep.subr.bf16.mxu0 0
      %435 = vmatpush1.bf16.msra.mxu0 0
      %436 = vmatprep.subr.bf16.mxu0 0
      %437 = vmatpush1.bf16.msra.mxu0 0
      %438 = vmatprep.subr.bf16.mxu0 0
      %439 = vmatpush1.bf16.msra.mxu0 0
      %440 = vmatprep.subr.bf16.mxu0 0
      %441 = vmatpush1.bf16.msra.mxu0 0
      %442 = vmatprep.subr.bf16.mxu0 0
      %443 = vmatpush1.bf16.msra.mxu0 0
      %444 = vmatprep.subr.bf16.mxu0 0
      %445 = vmatpush1.bf16.msra.mxu0 0
      %446 = vmatprep.subr.bf16.mxu0 0
      %447 = vmatpush1.bf16.msra.mxu0 0
      %448 = vmatprep.subr.bf16.mxu0 0
      %449 = vmatpush1.bf16.msra.mxu0 0
      %450 = vmatprep.subr.bf16.mxu0 0
      %451 = vmatpush1.bf16.msra.mxu0 0
      %452 = vmatprep.subr.bf16.mxu0 0
      %453 = vmatpush1.bf16.msra.mxu0 0
      %454 = vmatprep.subr.bf16.mxu0 0
      %455 = vmatpush1.bf16.msra.mxu0 0
      %456 = vmatprep.subr.bf16.mxu0 0
      %457 = vmatpush1.bf16.msra.mxu0 0
      %458 = vmatprep.subr.bf16.mxu0 0
      %459 = vmatpush1.bf16.msra.mxu0 0
      %460 = vmatprep.subr.bf16.mxu0 0
      %461 = vmatpush1.bf16.msra.mxu0 0
      %462 = vmatprep.subr.bf16.mxu0 0
      %463 = vmatpush1.bf16.msra.mxu0 0
      %464 = vmatprep.mubr.bf16.mxu0 0
      %465 = vmatmul.mubr.bf16.gmra.mrb[0].mxu0 %v424
      %v466 = vpop.f32.mrb[0].mxu0
      %v467 = vadd.f32 0.0, %v466
      %v468 = vpop.f32.mrb[0].mxu0
      %v469 = vadd.f32 0.0, %v468
      %v470 = vpop.f32.mrb[0].mxu0
      %v471 = vpop.f32.mrb[0].mxu0
      %472 = vdwg.mxu0
      %v473 = vadd.f32 %v398, %v467
      %v474 = vadd.f32 %v400, %v469
      %475 = vrot.lane.b32.xlu0 %v237, 1
      %v476 = vpop.permute.xlu0 %475
      %477 = vrot.lane.b32.xlu0 %v270, 1
      %v478 = vpop.permute.xlu0 %477
      %vm479 = vcmask 7168
      %v480 = vsel %vm479, %v476, %v478
      %v483 = vsel %vm479, 0.0, %v476
      %v484 = vsel %vm282, %v483, 0.0
      %v485 = vsel %vm283, %v480, 0.0
      %s486 = scalar_lea.vmem %s1, 12
      %v487 = vld [vmem:[%s486] sm:$0xf]
      %v488 = vpack.c.bf16 %v484, %v484
      %v489 = vpack.c.bf16 %v485, %v485
      %v491 = vsel %vm302, %v487, 0
      %v494 = vsel %vm306, %v488, 0
      %v497 = vsel %vm306, %v489, 0
      %499 = vmatprep.subr.bf16.mxu0 %v497
      %500 = vmatpush1.bf16.msra.mxu0 %v494
      %501 = vmatprep.subr.bf16.mxu0 0
      %502 = vmatpush1.bf16.msra.mxu0 0
      %503 = vmatprep.subr.bf16.mxu0 0
      %504 = vmatpush1.bf16.msra.mxu0 0
      %505 = vmatprep.subr.bf16.mxu0 0
      %506 = vmatpush1.bf16.msra.mxu0 0
      %507 = vmatprep.subr.bf16.mxu0 0
      %508 = vmatpush1.bf16.msra.mxu0 0
      %509 = vmatprep.subr.bf16.mxu0 0
      %510 = vmatpush1.bf16.msra.mxu0 0
      %511 = vmatprep.subr.bf16.mxu0 0
      %512 = vmatpush1.bf16.msra.mxu0 0
      %513 = vmatprep.subr.bf16.mxu0 0
      %514 = vmatpush1.bf16.msra.mxu0 0
      %515 = vmatprep.subr.bf16.mxu0 0
      %516 = vmatpush1.bf16.msra.mxu0 0
      %517 = vmatprep.subr.bf16.mxu0 0
      %518 = vmatpush1.bf16.msra.mxu0 0
      %519 = vmatprep.subr.bf16.mxu0 0
      %520 = vmatpush1.bf16.msra.mxu0 0
      %521 = vmatprep.subr.bf16.mxu0 0
      %522 = vmatpush1.bf16.msra.mxu0 0
      %523 = vmatprep.subr.bf16.mxu0 0
      %524 = vmatpush1.bf16.msra.mxu0 0
      %525 = vmatprep.subr.bf16.mxu0 0
      %526 = vmatpush1.bf16.msra.mxu0 0
      %527 = vmatprep.subr.bf16.mxu0 0
      %528 = vmatpush1.bf16.msra.mxu0 0
      %529 = vmatprep.subr.bf16.mxu0 0
      %530 = vmatpush1.bf16.msra.mxu0 0
      %531 = vmatprep.mubr.bf16.mxu0 0
      %532 = vmatmul.mubr.bf16.gmra.mrb[0].mxu0 %v491
      %v533 = vpop.f32.mrb[0].mxu0
      %v534 = vadd.f32 0.0, %v533
      %v535 = vpop.f32.mrb[0].mxu0
      %v536 = vadd.f32 0.0, %v535
      %v537 = vpop.f32.mrb[0].mxu0
      %v538 = vpop.f32.mrb[0].mxu0
      %539 = vdwg.mxu0
      %v540 = vadd.f32 %v473, %v534
      %v541 = vadd.f32 %v474, %v536
      %s542 = scalar_lea.vmem %s1, 16
      %v543 = vld [vmem:[%s542] sm:$0xf]
      %v545 = vpack.c.bf16 %v237, %v237
      %v546 = vpack.c.bf16 %v270, %v270
      %v548 = vsel %vm302, %v543, 0
      %v551 = vsel %vm306, %v545, 0
      %v554 = vsel %vm306, %v546, 0
      %556 = vmatprep.subr.bf16.mxu0 %v554
      %557 = vmatpush1.bf16.msra.mxu0 %v551
      %558 = vmatprep.subr.bf16.mxu0 0
      %559 = vmatpush1.bf16.msra.mxu0 0
      %560 = vmatprep.subr.bf16.mxu0 0
      %561 = vmatpush1.bf16.msra.mxu0 0
      %562 = vmatprep.subr.bf16.mxu0 0
      %563 = vmatpush1.bf16.msra.mxu0 0
      %564 = vmatprep.subr.bf16.mxu0 0
      %565 = vmatpush1.bf16.msra.mxu0 0
      %566 = vmatprep.subr.bf16.mxu0 0
      %567 = vmatpush1.bf16.msra.mxu0 0
      %568 = vmatprep.subr.bf16.mxu0 0
      %569 = vmatpush1.bf16.msra.mxu0 0
      %570 = vmatprep.subr.bf16.mxu0 0
      %571 = vmatpush1.bf16.msra.mxu0 0
      %572 = vmatprep.subr.bf16.mxu0 0
      %573 = vmatpush1.bf16.msra.mxu0 0
      %574 = vmatprep.subr.bf16.mxu0 0
      %575 = vmatpush1.bf16.msra.mxu0 0
      %576 = vmatprep.subr.bf16.mxu0 0
      %577 = vmatpush1.bf16.msra.mxu0 0
      %578 = vmatprep.subr.bf16.mxu0 0
      %579 = vmatpush1.bf16.msra.mxu0 0
      %580 = vmatprep.subr.bf16.mxu0 0
      %581 = vmatpush1.bf16.msra.mxu0 0
      %582 = vmatprep.subr.bf16.mxu0 0
      %583 = vmatpush1.bf16.msra.mxu0 0
      %584 = vmatprep.subr.bf16.mxu0 0
      %585 = vmatpush1.bf16.msra.mxu0 0
      %586 = vmatprep.subr.bf16.mxu0 0
      %587 = vmatpush1.bf16.msra.mxu0 0
      %588 = vmatprep.mubr.bf16.mxu0 0
      %589 = vmatmul.mubr.bf16.gmra.mrb[0].mxu0 %v548
      %v590 = vpop.f32.mrb[0].mxu0
      %v591 = vadd.f32 0.0, %v590
      %v592 = vpop.f32.mrb[0].mxu0
      %v593 = vadd.f32 0.0, %v592
      %v594 = vpop.f32.mrb[0].mxu0
      %v595 = vpop.f32.mrb[0].mxu0
      %596 = vdwg.mxu0
      %v597 = vadd.f32 %v540, %v591
      %v598 = vadd.f32 %v541, %v593
      %599 = vrot.lane.b32.xlu0 %v237, 127
      %v600 = vpop.permute.xlu0 %599
      %601 = vrot.lane.b32.xlu0 %v270, 127
      %v602 = vpop.permute.xlu0 %601
      %vm603 = vcmask 1039360
      %v604 = vsel %vm603, %v600, %v602
      %v607 = vsel %vm603, %v602, 0.0
      %v608 = vsel %vm415, %v604, 0.0
      %v609 = vsel %vm416, %v607, 0.0
      %s610 = scalar_lea.vmem %s1, 20
      %v611 = vld [vmem:[%s610] sm:$0xf]
      %v612 = vpack.c.bf16 %v608, %v608
      %v613 = vpack.c.bf16 %v609, %v609
      %v615 = vsel %vm302, %v611, 0
      %v618 = vsel %vm306, %v612, 0
      %v621 = vsel %vm306, %v613, 0
      %623 = vmatprep.subr.bf16.mxu0 %v621
      %624 = vmatpush1.bf16.msra.mxu0 %v618
      %625 = vmatprep.subr.bf16.mxu0 0
      %626 = vmatpush1.bf16.msra.mxu0 0
      %627 = vmatprep.subr.bf16.mxu0 0
      %628 = vmatpush1.bf16.msra.mxu0 0
      %629 = vmatprep.subr.bf16.mxu0 0
      %630 = vmatpush1.bf16.msra.mxu0 0
      %631 = vmatprep.subr.bf16.mxu0 0
      %632 = vmatpush1.bf16.msra.mxu0 0
      %633 = vmatprep.subr.bf16.mxu0 0
      %634 = vmatpush1.bf16.msra.mxu0 0
      %635 = vmatprep.subr.bf16.mxu0 0
      %636 = vmatpush1.bf16.msra.mxu0 0
      %637 = vmatprep.subr.bf16.mxu0 0
      %638 = vmatpush1.bf16.msra.mxu0 0
      %639 = vmatprep.subr.bf16.mxu0 0
      %640 = vmatpush1.bf16.msra.mxu0 0
      %641 = vmatprep.subr.bf16.mxu0 0
      %642 = vmatpush1.bf16.msra.mxu0 0
      %643 = vmatprep.subr.bf16.mxu0 0
      %644 = vmatpush1.bf16.msra.mxu0 0
      %645 = vmatprep.subr.bf16.mxu0 0
      %646 = vmatpush1.bf16.msra.mxu0 0
      %647 = vmatprep.subr.bf16.mxu0 0
      %648 = vmatpush1.bf16.msra.mxu0 0
      %649 = vmatprep.subr.bf16.mxu0 0
      %650 = vmatpush1.bf16.msra.mxu0 0
      %651 = vmatprep.subr.bf16.mxu0 0
      %652 = vmatpush1.bf16.msra.mxu0 0
      %653 = vmatprep.subr.bf16.mxu0 0
      %654 = vmatpush1.bf16.msra.mxu0 0
      %655 = vmatprep.mubr.bf16.mxu0 0
      %656 = vmatmul.mubr.bf16.gmra.mrb[0].mxu0 %v615
      %v657 = vpop.f32.mrb[0].mxu0
      %v658 = vadd.f32 0.0, %v657
      %v659 = vpop.f32.mrb[0].mxu0
      %v660 = vadd.f32 0.0, %v659
      %v661 = vpop.f32.mrb[0].mxu0
      %v662 = vpop.f32.mrb[0].mxu0
      %663 = vdwg.mxu0
      %v664 = vadd.f32 %v597, %v658
      %v665 = vadd.f32 %v598, %v660
      %666 = vrot.lane.b32.xlu0 %v237, 113
      %v667 = vpop.permute.xlu0 %666
      %668 = vrot.lane.b32.xlu0 %v270, 113
      %v669 = vpop.permute.xlu0 %668
      %vm670 = vcmask 924672
      %v671 = vsel %vm670, %v667, %v669
      %v674 = vsel %vm670, %v669, 0.0
      %v675 = vsel %vm282, %v671, 0.0
      %v676 = vsel %vm283, %v674, 0.0
      %s677 = scalar_lea.vmem %s1, 24
      %v678 = vld [vmem:[%s677] sm:$0xf]
      %v679 = vpack.c.bf16 %v675, %v675
      %v680 = vpack.c.bf16 %v676, %v676
      %v682 = vsel %vm302, %v678, 0
      %v685 = vsel %vm306, %v679, 0
      %v688 = vsel %vm306, %v680, 0
      %690 = vmatprep.subr.bf16.mxu0 %v688
      %691 = vmatpush1.bf16.msra.mxu0 %v685
      %692 = vmatprep.subr.bf16.mxu0 0
      %693 = vmatpush1.bf16.msra.mxu0 0
      %694 = vmatprep.subr.bf16.mxu0 0
      %695 = vmatpush1.bf16.msra.mxu0 0
      %696 = vmatprep.subr.bf16.mxu0 0
      %697 = vmatpush1.bf16.msra.mxu0 0
      %698 = vmatprep.subr.bf16.mxu0 0
      %699 = vmatpush1.bf16.msra.mxu0 0
      %700 = vmatprep.subr.bf16.mxu0 0
      %701 = vmatpush1.bf16.msra.mxu0 0
      %702 = vmatprep.subr.bf16.mxu0 0
      %703 = vmatpush1.bf16.msra.mxu0 0
      %704 = vmatprep.subr.bf16.mxu0 0
      %705 = vmatpush1.bf16.msra.mxu0 0
      %706 = vmatprep.subr.bf16.mxu0 0
      %707 = vmatpush1.bf16.msra.mxu0 0
      %708 = vmatprep.subr.bf16.mxu0 0
      %709 = vmatpush1.bf16.msra.mxu0 0
      %710 = vmatprep.subr.bf16.mxu0 0
      %711 = vmatpush1.bf16.msra.mxu0 0
      %712 = vmatprep.subr.bf16.mxu0 0
      %713 = vmatpush1.bf16.msra.mxu0 0
      %714 = vmatprep.subr.bf16.mxu0 0
      %715 = vmatpush1.bf16.msra.mxu0 0
      %716 = vmatprep.subr.bf16.mxu0 0
      %717 = vmatpush1.bf16.msra.mxu0 0
      %718 = vmatprep.subr.bf16.mxu0 0
      %719 = vmatpush1.bf16.msra.mxu0 0
      %720 = vmatprep.subr.bf16.mxu0 0
      %721 = vmatpush1.bf16.msra.mxu0 0
      %722 = vmatprep.mubr.bf16.mxu0 0
      %723 = vmatmul.mubr.bf16.gmra.mrb[0].mxu0 %v682
      %v724 = vpop.f32.mrb[0].mxu0
      %v725 = vadd.f32 0.0, %v724
      %v726 = vpop.f32.mrb[0].mxu0
      %v727 = vadd.f32 0.0, %v726
      %v728 = vpop.f32.mrb[0].mxu0
      %v729 = vpop.f32.mrb[0].mxu0
      %730 = vdwg.mxu0
      %v731 = vadd.f32 %v664, %v725
      %v732 = vadd.f32 %v665, %v727
      %733 = vrot.lane.b32.xlu0 %v237, 112
      %v734 = vpop.permute.xlu0 %733
      %735 = vrot.lane.b32.xlu0 %v270, 112
      %v736 = vpop.permute.xlu0 %735
      %vm737 = vcmask 916480
      %v738 = vsel %vm737, %v734, %v736
      %v741 = vsel %vm737, %v736, 0.0
      %s742 = scalar_lea.vmem %s1, 28
      %v743 = vld [vmem:[%s742] sm:$0xf]
      %v744 = vpack.c.bf16 %v738, %v738
      %v745 = vpack.c.bf16 %v741, %v741
      %v747 = vsel %vm302, %v743, 0
      %v750 = vsel %vm306, %v744, 0
      %v753 = vsel %vm306, %v745, 0
      %755 = vmatprep.subr.bf16.mxu0 %v753
      %756 = vmatpush1.bf16.msra.mxu0 %v750
      %757 = vmatprep.subr.bf16.mxu0 0
      %758 = vmatpush1.bf16.msra.mxu0 0
      %759 = vmatprep.subr.bf16.mxu0 0
      %760 = vmatpush1.bf16.msra.mxu0 0
      %761 = vmatprep.subr.bf16.mxu0 0
      %762 = vmatpush1.bf16.msra.mxu0 0
      %763 = vmatprep.subr.bf16.mxu0 0
      %764 = vmatpush1.bf16.msra.mxu0 0
      %765 = vmatprep.subr.bf16.mxu0 0
      %766 = vmatpush1.bf16.msra.mxu0 0
      %767 = vmatprep.subr.bf16.mxu0 0
      %768 = vmatpush1.bf16.msra.mxu0 0
      %769 = vmatprep.subr.bf16.mxu0 0
      %770 = vmatpush1.bf16.msra.mxu0 0
      %771 = vmatprep.subr.bf16.mxu0 0
      %772 = vmatpush1.bf16.msra.mxu0 0
      %773 = vmatprep.subr.bf16.mxu0 0
      %774 = vmatpush1.bf16.msra.mxu0 0
      %775 = vmatprep.subr.bf16.mxu0 0
      %776 = vmatpush1.bf16.msra.mxu0 0
      %777 = vmatprep.subr.bf16.mxu0 0
      %778 = vmatpush1.bf16.msra.mxu0 0
      %779 = vmatprep.subr.bf16.mxu0 0
      %780 = vmatpush1.bf16.msra.mxu0 0
      %781 = vmatprep.subr.bf16.mxu0 0
      %782 = vmatpush1.bf16.msra.mxu0 0
      %783 = vmatprep.subr.bf16.mxu0 0
      %784 = vmatpush1.bf16.msra.mxu0 0
      %785 = vmatprep.subr.bf16.mxu0 0
      %786 = vmatpush1.bf16.msra.mxu0 0
      %787 = vmatprep.mubr.bf16.mxu0 0
      %788 = vmatmul.mubr.bf16.gmra.mrb[0].mxu0 %v747
      %v789 = vpop.f32.mrb[0].mxu0
      %v790 = vadd.f32 0.0, %v789
      %v791 = vpop.f32.mrb[0].mxu0
      %v792 = vadd.f32 0.0, %v791
      %v793 = vpop.f32.mrb[0].mxu0
      %v794 = vpop.f32.mrb[0].mxu0
      %795 = vdwg.mxu0
      %v796 = vadd.f32 %v731, %v790
      %v797 = vadd.f32 %v732, %v792
      %798 = vrot.lane.b32.xlu0 %v237, 111
      %v799 = vpop.permute.xlu0 %798
      %800 = vrot.lane.b32.xlu0 %v270, 111
      %v801 = vpop.permute.xlu0 %800
      %vm802 = vcmask 908288
      %v803 = vsel %vm802, %v799, %v801
      %v806 = vsel %vm802, %v801, 0.0
      %v807 = vsel %vm415, %v803, 0.0
      %v808 = vsel %vm416, %v806, 0.0
      %s809 = scalar_lea.vmem %s1, 32
      %v810 = vld [vmem:[%s809] sm:$0xf]
      %v811 = vpack.c.bf16 %v807, %v807
      %v812 = vpack.c.bf16 %v808, %v808
      %v814 = vsel %vm302, %v810, 0
      %v817 = vsel %vm306, %v811, 0
      %v820 = vsel %vm306, %v812, 0
      %822 = vmatprep.subr.bf16.mxu0 %v820
      %823 = vmatpush1.bf16.msra.mxu0 %v817
      %824 = vmatprep.subr.bf16.mxu0 0
      %825 = vmatpush1.bf16.msra.mxu0 0
      %826 = vmatprep.subr.bf16.mxu0 0
      %827 = vmatpush1.bf16.msra.mxu0 0
      %828 = vmatprep.subr.bf16.mxu0 0
      %829 = vmatpush1.bf16.msra.mxu0 0
      %830 = vmatprep.subr.bf16.mxu0 0
      %831 = vmatpush1.bf16.msra.mxu0 0
      %832 = vmatprep.subr.bf16.mxu0 0
      %833 = vmatpush1.bf16.msra.mxu0 0
      %834 = vmatprep.subr.bf16.mxu0 0
      %835 = vmatpush1.bf16.msra.mxu0 0
      %836 = vmatprep.subr.bf16.mxu0 0
      %837 = vmatpush1.bf16.msra.mxu0 0
      %838 = vmatprep.subr.bf16.mxu0 0
      %839 = vmatpush1.bf16.msra.mxu0 0
      %840 = vmatprep.subr.bf16.mxu0 0
      %841 = vmatpush1.bf16.msra.mxu0 0
      %842 = vmatprep.subr.bf16.mxu0 0
      %843 = vmatpush1.bf16.msra.mxu0 0
      %844 = vmatprep.subr.bf16.mxu0 0
      %845 = vmatpush1.bf16.msra.mxu0 0
      %846 = vmatprep.subr.bf16.mxu0 0
      %847 = vmatpush1.bf16.msra.mxu0 0
      %848 = vmatprep.subr.bf16.mxu0 0
      %849 = vmatpush1.bf16.msra.mxu0 0
      %850 = vmatprep.subr.bf16.mxu0 0
      %851 = vmatpush1.bf16.msra.mxu0 0
      %852 = vmatprep.subr.bf16.mxu0 0
      %853 = vmatpush1.bf16.msra.mxu0 0
      %854 = vmatprep.mubr.bf16.mxu0 0
      %855 = vmatmul.mubr.bf16.gmra.mrb[0].mxu0 %v814
      %v856 = vpop.f32.mrb[0].mxu0
      %v857 = vadd.f32 0.0, %v856
      %v858 = vpop.f32.mrb[0].mxu0
      %v859 = vadd.f32 0.0, %v858
      %v860 = vpop.f32.mrb[0].mxu0
      %v861 = vpop.f32.mrb[0].mxu0
      %862 = vdwg.mxu0
      %v863 = vadd.f32 %v796, %v857
      %v864 = vadd.f32 %v797, %v859
      %865 = vst [vmem:[%s231] sm:$0xff] %v863
      %866 = vst [vmem:[%s231 + $0x8] sm:$0xff] %v864
      %v867 = vadd.f32 %v863, %v864
      %868 = vadd.xlane.f32.xlu0 %v867
      %v869 = vpop.xlane.xlu0 %868
      %v870 = vmul.f32 %v863, %v863
      %v871 = vmul.f32 %v864, %v864
      %v872 = vadd.f32 %v870, %v871
      %873 = vadd.xlane.f32.xlu0 %v872
      %v874 = vpop.xlane.xlu0 %873
      %v875 = vsel %vm479, %v869, %v874
      %vm876 = vcmask 15360
      %877 = vst.msk [vmem:[%s235] sm:$0xff] %vm876, %v875
      %p878 = scmp.lt.s32.totalorder %s17, 1
      %s879 = scalar_select %p878, %s17, 1
      %s880 = smul.addr %s879, 2
      %s881 = smul.addr %s880, 8
      %s882 = scalar_lea.vmem %s4, %s881
      %p883 = scmp.lt.s32.totalorder %s17, 1
      %s884 = scalar_select %p883, %s17, 1
      %s885 = smul.addr %s884, 8
      %s886 = scalar_lea.vmem %s5, %s885
      // Predicated region
      $region37: #{downblock_forward.3} parent=35 // pred_check
        %p887 = pneg %p124
      $region38: #{downblock_forward.3} parent=35 // pred_check_branch
        %889 = sbr.rel (%p887) target = $region40
      $region39: #{downblock_forward.3} parent=35 // pred_region
        _
      $region40: #{downblock_forward.3} parent=35 // pred_fallthru
        _
      // Predicated region
      $region41: #{downblock_forward.3} parent=35 // pred_check
        %p890 = pneg %p150
      $region42: #{downblock_forward.3} parent=35 // pred_check_branch
        %892 = sbr.rel (%p890) target = $region44
      $region43: #{downblock_forward.3} parent=35 // pred_region
        _
      $region44: #{downblock_forward.3} parent=35 // pred_fallthru
        _
    $region36: #{downblock_forward.3} parent=5 // pred_fallthru
      _
    %p893 = scmp.le.s32.totalorder 2, %s12
    // Predicated region
    $region45: #{downblock_forward.3} parent=5 // pred_check
      %p894 = pneg %p893
    $region46: #{downblock_forward.3} parent=5 // pred_check_branch
      %896 = sbr.rel (%p894) target = $region48
    $region47: #{downblock_forward.3} parent=5 // pred_region
      %s897 = ssub.s32 %s12, 2
      // Predicated region
      $region49: #{downblock_forward.3} parent=47 // pred_check
        %p898 = pneg %p130
      $region50: #{downblock_forward.3} parent=47 // pred_check_branch
        %900 = sbr.rel (%p898) target = $region52
      $region51: #{downblock_forward.3} parent=47 // pred_region
        %p901 = scmp.lt.s32.totalorder %s18, 1
        %s902 = scalar_select %p901, %s18, 1
        %s903 = smul.addr %s902, 2
        %s904 = smul.addr %s903, 8
        %s905 = scalar_lea.vmem %s4, %s904
      $region52: #{downblock_forward.3} parent=47 // pred_fallthru
        _
      // Predicated region
      $region53: #{downblock_forward.3} parent=47 // pred_check
        %p906 = pneg %p156
      $region54: #{downblock_forward.3} parent=47 // pred_check_branch
        %908 = sbr.rel (%p906) target = $region56
      $region55: #{downblock_forward.3} parent=47 // pred_region
        %p909 = scmp.lt.s32.totalorder %s18, 1
        %s910 = scalar_select %p909, %s18, 1
        %s911 = smul.addr %s910, 8
        %s912 = scalar_lea.vmem %s5, %s911
      $region56: #{downblock_forward.3} parent=47 // pred_fallthru
        _
    $region48: #{downblock_forward.3} parent=5 // pred_fallthru
      _
  $region6: #{downblock_forward.3} parent=0 // loop_footer
    %s16 = sadd.s32 1, %s12
  $region7: #{downblock_forward.3} parent=0 // loop_footer_branch
    %11 = sbr.rel target = $region3
  $region8: #{downblock_forward.3} parent=0 // loop_exit
    _

</llo_original>
